<compile_context>
chip_gen: v7x
topology: tpu7x:2x2x1
jax: 0.10.0
libtpu: 0.0.40
codegen_flags: <defaults>
</compile_context>

<pallas_src>
import functools
import math

import jax
import jax.numpy as jnp
from jax.experimental import pallas as pl
from jax.experimental.pallas import tpu as pltpu

DTYPE = jnp.bfloat16          # matmul operand / activation dtype (MXU-native)
LN_EPS = 1e-12
# Scoped-VMEM ceiling handed to Mosaic.  v5e/v6e: 128 MiB physical (defaults
# 16/32 MiB scoped); v7x: 64 MiB physical -- tiles below are sized so that
# single-buffered weights + double-buffered activations stay well under this.
VMEM_LIMIT = 64 * 1024 * 1024


def _cparams(*dims):
    return pltpu.CompilerParams(dimension_semantics=dims,
                                vmem_limit_bytes=VMEM_LIMIT)


def _const_spec(shape):
    """BlockSpec for a grid-invariant operand (weights / biases / LN params).

    index_map returns block (0,...,0) every step, so the block is fetched once;
    pl.Buffered(1) drops the useless second pipeline buffer, halving the
    resident footprint of large weights.  Falls back to the default spec if
    this jax version does not accept the kwarg.
    """
    index_map = lambda *_: (0,) * len(shape)
    try:
        return pl.BlockSpec(shape, index_map, pipeline_mode=pl.Buffered(1))
    except (AttributeError, TypeError, ValueError):
        return pl.BlockSpec(shape, index_map)


def _gelu_f32(x):
    # TODO(synk): HF BERT uses erf GELU; erf has no guaranteed Mosaic lowering,
    # so the tanh approximation is used (tiny systematic deviation).
    c = jnp.float32(math.sqrt(2.0 / math.pi))
    return 0.5 * x * (1.0 + jnp.tanh(c * (x + 0.044715 * x * x * x)))


def _layernorm_f32(x, gamma, beta, eps):
    mu = jnp.mean(x, axis=-1, keepdims=True)
    xc = x - mu
    var = jnp.mean(xc * xc, axis=-1, keepdims=True)
    return xc * jax.lax.rsqrt(var + eps) * gamma + beta


# -------------------------------------------------------------------------
# Embedding: (word + pos + type) sum fused with LayerNorm
# -------------------------------------------------------------------------

def _embed_ln_kernel(w_ref, pt_ref, g_ref, b_ref, o_ref, *, eps):
    x = w_ref[0].astype(jnp.float32) + pt_ref[...]            # (S, H) f32
    o_ref[0] = _layernorm_f32(x, g_ref[...], b_ref[...], eps).astype(o_ref.dtype)


def embed_layernorm(word, pos_type, gamma, beta, eps=LN_EPS):
    """LayerNorm(word_emb[tokens] + pos_emb + type_emb) -> [B, S, H] bf16.

    word:     [B, S, H] bf16 (token-gathered word embeddings)
    pos_type: [S, H]    f32  (position + token-type embeddings, precombined)
    TODO(synk): the token gather itself could also be folded in via
                PrefetchScalarGridSpec + pl.Element row gathers from word_emb.
    """
    B, S, H = word.shape
    blk = pl.BlockSpec((1, S, H), lambda b: (b, 0, 0))
    return pl.pallas_call(
        functools.partial(_embed_ln_kernel, eps=eps),
        out_shape=jax.ShapeDtypeStruct((B, S, H), DTYPE),
        grid=(B,),
        in_specs=[blk, _const_spec((S, H)), _const_spec((1, H)), _const_spec((1, H))],
        out_specs=blk,
        compiler_params=_cparams("parallel"),
    )(word, pos_type, gamma, beta)


# -------------------------------------------------------------------------
# Fused attention sub-layer: QKV proj + softmax attention + out proj + LN
# -------------------------------------------------------------------------

def _attn_block_kernel(x_ref, wqkv_ref, bqkv_ref, wo_ref, bo_ref, g_ref, b_ref,
                       o_ref, *, n_heads, head_dim, scale, eps):
    """One batch element's full sequence; I/O stays in lane-dense [S, H] layout,
    so no HBM transposes or qkv/ctx round trips are emitted around attention."""
    H = n_heads * head_dim
    x = x_ref[0]                                              # (S, H) bf16
    qkv = jnp.dot(x, wqkv_ref[...], preferred_element_type=jnp.float32)
    qkv = qkv + bqkv_ref[...]                                 # (S, 3H) f32
    # fold 1/sqrt(Dh) into q once (S*H multiplies, not S*S per head)
    q = (qkv[:, :H] * scale).astype(x.dtype)
    k = qkv[:, H:2 * H].astype(x.dtype)
    v = qkv[:, 2 * H:].astype(x.dtype)

    ctx = []
    for h in range(n_heads):                                  # static unroll
        sl = slice(h * head_dim, (h + 1) * head_dim)
        s = jnp.einsum("qd,kd->qk", q[:, sl], k[:, sl],
                       preferred_element_type=jnp.float32)    # (S, S) f32
        m = jnp.max(s, axis=-1, keepdims=True)
        e = jnp.exp(s - m)
        p = e * pl.reciprocal(jnp.sum(e, axis=-1, keepdims=True), approx=True)
        ctx.append(jnp.dot(p.astype(x.dtype), v[:, sl],
                           preferred_element_type=jnp.float32))
    ctx = jnp.concatenate(ctx, axis=-1).astype(x.dtype)       # (S, H) lane-dense

    acc = jnp.dot(ctx, wo_ref[...], preferred_element_type=jnp.float32)
    acc = acc + bo_ref[...] + x.astype(jnp.float32)           # residual
    o_ref[0] = _layernorm_f32(acc, g_ref[...], b_ref[...], eps).astype(o_ref.dtype)


def attention_block(x, p, n_heads, eps=LN_EPS):
    B, S, H = x.shape
    head_dim = H // n_heads
    scale = 1.0 / math.sqrt(head_dim)
    blk = pl.BlockSpec((1, S, H), lambda b: (b, 0, 0))
    # TODO(synk): for S >= 512 add a kv-tile grid axis with flash-style online
    #             softmax; at encoder sizes the per-head S x S score fits VMEM.
    # TODO(synk): no attention/padding mask (matches BertModel called without
    #             attention_mask, i.e. all tokens attended).
    return pl.pallas_call(
        functools.partial(_attn_block_kernel, n_heads=n_heads,
                          head_dim=head_dim, scale=scale, eps=eps),
        out_shape=jax.ShapeDtypeStruct((B, S, H), x.dtype),
        grid=(B,),
        in_specs=[
            blk,
            _const_spec((H, 3 * H)),
            _const_spec((1, 3 * H)),
            _const_spec((H, H)),
            _const_spec((1, H)),
            _const_spec((1, H)),
            _const_spec((1, H)),
        ],
        out_specs=blk,
        compiler_params=_cparams("parallel"),
    )(x, p["wqkv"], p["bqkv"], p["wo"], p["bo"], p["ln1_g"], p["ln1_b"])


# -------------------------------------------------------------------------
# Fused FFN sub-layer: GELU(x@w1+b1)@w2 + b2 + x, then LayerNorm
# -------------------------------------------------------------------------

def _ffn_kernel(x_ref, w1_ref, b1_ref, w2_ref, b2_ref, g_ref, b_ref, o_ref, *, eps):
    x = x_ref[...]                                            # (tm, H) bf16
    h1 = jnp.dot(x, w1_ref[...], preferred_element_type=jnp.float32) + b1_ref[...]
    h1 = _gelu_f32(h1).astype(x.dtype)                        # (tm, I) stays in VMEM
    acc = jnp.dot(h1, w2_ref[...], preferred_element_type=jnp.float32)
    acc = acc + b2_ref[...] + x.astype(jnp.float32)           # residual
    o_ref[...] = _layernorm_f32(acc, g_ref[...], b_ref[...], eps).astype(o_ref.dtype)


def ffn_block(x, p, eps=LN_EPS, tile_m=256):
    M, H = x.shape
    inter = p["w1"].shape[1]
    tm = min(tile_m, M)
    return pl.pallas_call(
        functools.partial(_ffn_kernel, eps=eps),
        out_shape=jax.ShapeDtypeStruct((M, H), x.dtype),
        grid=(pl.cdiv(M, tm),),
        in_specs=[
            pl.BlockSpec((tm, H), lambda i: (i, 0)),
            _const_spec((H, inter)),
            _const_spec((1, inter)),
            _const_spec((inter, H)),
            _const_spec((1, H)),
            _const_spec((1, H)),
            _const_spec((1, H)),
        ],
        out_specs=pl.BlockSpec((tm, H), lambda i: (i, 0)),
        compiler_params=_cparams("parallel"),
    )(x, p["w1"], p["b1"], p["w2"], p["b2"], p["ln2_g"], p["ln2_b"])


# -------------------------------------------------------------------------
# Classifier: V-tiled two-pass softmax(x @ W + b)
# -------------------------------------------------------------------------

def _cls_stats_kernel(x_ref, w_ref, b_ref, m_ref, l_ref, m_sc, l_sc):
    """Pass 1: online row-max / row-sum-exp over vocab tiles."""
    j = pl.program_id(1)

    @pl.when(j == 0)
    def _():
        m_sc[...] = jnp.full_like(m_sc, -jnp.inf)
        l_sc[...] = jnp.zeros_like(l_sc)

    logits = jnp.dot(x_ref[...], w_ref[...], preferred_element_type=jnp.float32)
    logits = logits + b_ref[...]                              # (tm, tv) f32
    m_new = jnp.maximum(m_sc[...], jnp.max(logits, axis=-1, keepdims=True))
    l_sc[...] = (l_sc[...] * jnp.exp(m_sc[...] - m_new)
                 + jnp.sum(jnp.exp(logits - m_new), axis=-1, keepdims=True))
    m_sc[...] = m_new

    @pl.when(j == pl.num_programs(1) - 1)
    def _():
        m_ref[...] = m_sc[...]
        l_ref[...] = l_sc[...]


def _cls_norm_kernel(x_ref, w_ref, b_ref, m_ref, l_ref, o_ref):
    """Pass 2: recompute the logit tile and normalize with an exact divide."""
    logits = jnp.dot(x_ref[...], w_ref[...], preferred_element_type=jnp.float32)
    logits = logits + b_ref[...]
    o_ref[...] = (jnp.exp(logits - m_ref[...]) / l_ref[...]).astype(o_ref.dtype)


def classify_softmax(x, w, b, tile_m=256, tile_v=2048, out_dtype=jnp.float32):
    """softmax(x @ w + b, axis=-1), tiled over the vocab dimension.

    Only an [H, tv] weight slice and a [tm, tv] logits tile live in VMEM at a
    time, so realistic V (~30K) fits v7x's 64 MiB.  The weight is streamed
    twice (max/sum pass + normalize pass); at large V one could instead cache
    bf16 logits between passes.  Set out_dtype=jnp.bfloat16 to halve the
    [M, V] probability write at scale.
    """
    M, H = x.shape
    V = w.shape[1]
    tm = min(tile_m, M)
    tv = min(tile_v, V)
    mg, vg = pl.cdiv(M, tm), pl.cdiv(V, tv)

    x_spec = pl.BlockSpec((tm, H), lambda i, j: (i, 0))
    w_spec = pl.BlockSpec((H, tv), lambda i, j: (0, j))
    b_spec = pl.BlockSpec((1, tv), lambda i, j: (0, j))
    stat_spec = pl.BlockSpec((tm, 1), lambda i, j: (i, 0))

    m_rows, l_rows = pl.pallas_call(
        _cls_stats_kernel,
        out_shape=(jax.ShapeDtypeStruct((M, 1), jnp.float32),
                   jax.ShapeDtypeStruct((M, 1), jnp.float32)),
        grid=(mg, vg),
        in_specs=[x_spec, w_spec, b_spec],
        out_specs=(stat_spec, stat_spec),
        scratch_shapes=[pltpu.VMEM((tm, 1), jnp.float32),
                        pltpu.VMEM((tm, 1), jnp.float32)],
        compiler_params=_cparams("parallel", "arbitrary"),
    )(x, w, b)

    return pl.pallas_call(
        _cls_norm_kernel,
        out_shape=jax.ShapeDtypeStruct((M, V), out_dtype),
        grid=(mg, vg),
        in_specs=[x_spec, w_spec, b_spec, stat_spec, stat_spec],
        out_specs=pl.BlockSpec((tm, tv), lambda i, j: (i, j)),
        compiler_params=_cparams("parallel", "parallel"),
    )(x, w, b, m_rows, l_rows)


# -------------------------------------------------------------------------
# Parameter init (deterministic, synthetic "pretrained" BERT)
# -------------------------------------------------------------------------

def init_params(key, vocab_size, hidden, num_layers, intermediate,
                max_pos=64, type_vocab=2):
    def nrm(k, shape):
        return (0.02 * jax.random.normal(k, shape, dtype=jnp.float32)).astype(DTYPE)

    keys = jax.random.split(key, 4 + num_layers)
    params = {
        "word_emb": nrm(keys[0], (vocab_size, hidden)),
        "pos_emb": nrm(keys[1], (max_pos, hidden)),
        "type_emb": nrm(keys[2], (type_vocab, hidden)),
        "emb_ln_g": jnp.ones((1, hidden), jnp.float32),
        "emb_ln_b": jnp.zeros((1, hidden), jnp.float32),
        "cls_w": nrm(keys[3], (hidden, vocab_size)),
        "cls_b": jnp.zeros((1, vocab_size), jnp.float32),
        "layers": [],
    }
    for li in range(num_layers):
        ks = jax.random.split(keys[4 + li], 4)
        params["layers"].append({
            "wqkv": nrm(ks[0], (hidden, 3 * hidden)),     # fused Q|K|V weight
            "bqkv": jnp.zeros((1, 3 * hidden), jnp.float32),
            "wo": nrm(ks[1], (hidden, hidden)),
            "bo": jnp.zeros((1, hidden), jnp.float32),
            "ln1_g": jnp.ones((1, hidden), jnp.float32),
            "ln1_b": jnp.zeros((1, hidden), jnp.float32),
            "w1": nrm(ks[2], (hidden, intermediate)),
            "b1": jnp.zeros((1, intermediate), jnp.float32),
            "w2": nrm(ks[3], (intermediate, hidden)),
            "b2": jnp.zeros((1, hidden), jnp.float32),
            "ln2_g": jnp.ones((1, hidden), jnp.float32),
            "ln2_b": jnp.zeros((1, hidden), jnp.float32),
        })
    return params


# -------------------------------------------------------------------------
# Forward pass (thin JAX glue; hot path lives in the fused Pallas kernels)
# -------------------------------------------------------------------------

def sft_forward(params, token_ids, *, num_heads):
    """Equivalent of SFTModel.forward(x, y=None): softmax(classify(bert(x)[0])).

    TODO(synk): the y-is-not-None branch (CrossEntropyLoss) is not implemented;
                only the inference (softmax) path is built.
    """
    B, S = token_ids.shape
    H = params["word_emb"].shape[1]

    # Token-id gather stays in XLA glue; sum + LN are fused in Pallas.
    word = jnp.take(params["word_emb"], token_ids, axis=0)              # [B,S,H]
    pos_type = (params["pos_emb"][:S].astype(jnp.float32)
                + params["type_emb"][0][None, :].astype(jnp.float32))   # [S,H]
    h = embed_layernorm(word, pos_type, params["emb_ln_g"], params["emb_ln_b"])

    for lp in params["layers"]:
        h = attention_block(h, lp, num_heads)                     # [B, S, H]
        h = ffn_block(h.reshape(B * S, H), lp).reshape(B, S, H)   # row-tiled

    probs = classify_softmax(h.reshape(B * S, H), params["cls_w"], params["cls_b"])
    return probs.reshape(B, S, -1)


# -------------------------------------------------------------------------
# Main
# -------------------------------------------------------------------------

if __name__ == "__main__":
    B, S = 2, 8
    VOCAB, HIDDEN, N_LAYERS, N_HEADS, INTERMEDIATE = 64, 32, 2, 4, 64

    key = jax.random.PRNGKey(0)
    k_params, k_tokens = jax.random.split(key)
    params = init_params(k_params, VOCAB, HIDDEN, N_LAYERS, INTERMEDIATE)
    token_ids = jax.random.randint(k_tokens, (B, S), 0, VOCAB, dtype=jnp.int32)

    fwd = jax.jit(functools.partial(sft_forward, num_heads=N_HEADS))
    probs = jax.block_until_ready(fwd(params, token_ids))

    assert probs.shape == (B, S, VOCAB)
    assert bool(jnp.all(jnp.isfinite(probs)))
    row_sums = jnp.sum(probs, axis=-1)
    # exact divide in the classifier softmax -> rows sum to 1 at f32 precision
    assert bool(jnp.all(jnp.abs(row_sums - 1.0) < 1e-3))
    print("KERNEL_OK")
</pallas_src>

<mosaic_0001>
module attributes {stable_mosaic.version = 11 : i64} {
  func.func @_embed_ln_kernel(%arg0: i32, %arg1: memref<1x8x32xbf16, #tpu.memory_space<vmem>>, %arg2: memref<8x32xf32, #tpu.memory_space<vmem>>, %arg3: memref<1x32xf32, #tpu.memory_space<vmem>>, %arg4: memref<1x32xf32, #tpu.memory_space<vmem>>, %arg5: memref<1x8x32xbf16, #tpu.memory_space<vmem>>) attributes {dimension_semantics = [#tpu.dimension_semantics<parallel>], iteration_bounds = array<i64: 2>, scalar_prefetch = 0 : i64, scratch_operands = 0 : i64, tpu.core_type = #tpu.core_type<tc>, window_params = [{transform_indices = @transform_0, window_bounds = array<i64: 1, 8, 32>}, {pipeline_mode = #tpu.pipeline_mode<synchronous>, transform_indices = @transform_1, window_bounds = array<i64: 8, 32>}, {pipeline_mode = #tpu.pipeline_mode<synchronous>, transform_indices = @transform_2, window_bounds = array<i64: 1, 32>}, {pipeline_mode = #tpu.pipeline_mode<synchronous>, transform_indices = @transform_3, window_bounds = array<i64: 1, 32>}, {transform_indices = @transform_4, window_bounds = array<i64: 1, 8, 32>}]} {
    %c0 = arith.constant 0 : index
    %c0_0 = arith.constant 0 : index
    %c0_1 = arith.constant 0 : index
    %0 = vector.load %arg1[%c0, %c0_0, %c0_1] : memref<1x8x32xbf16, #tpu.memory_space<vmem>>, vector<1x8x32xbf16>
    %1 = vector.shape_cast %0 : vector<1x8x32xbf16> to vector<8x32xbf16>
    %2 = arith.extf %1 : vector<8x32xbf16> to vector<8x32xf32>
    %c0_2 = arith.constant 0 : index
    %c0_3 = arith.constant 0 : index
    %3 = vector.load %arg2[%c0_2, %c0_3] : memref<8x32xf32, #tpu.memory_space<vmem>>, vector<8x32xf32>
    %4 = arith.addf %2, %3 : vector<8x32xf32>
    %c0_4 = arith.constant 0 : index
    %c0_5 = arith.constant 0 : index
    %5 = vector.load %arg3[%c0_4, %c0_5] : memref<1x32xf32, #tpu.memory_space<vmem>>, vector<1x32xf32>
    %c0_6 = arith.constant 0 : index
    %c0_7 = arith.constant 0 : index
    %6 = vector.load %arg4[%c0_6, %c0_7] : memref<1x32xf32, #tpu.memory_space<vmem>>, vector<1x32xf32>
    %cst = arith.constant dense<0.000000e+00> : vector<8xf32>
    %7 = vector.multi_reduction <add>, %4, %cst [1] : vector<8x32xf32> to vector<8xf32>
    %8 = vector.shape_cast %7 : vector<8xf32> to vector<8x1xf32>
    %cst_8 = arith.constant 3.200000e+01 : f32
    %9 = vector.broadcast %cst_8 : f32 to vector<8x1xf32>
    %10 = arith.divf %8, %9 : vector<8x1xf32>
    %11 = vector.broadcast %10 : vector<8x1xf32> to vector<8x32xf32>
    %12 = arith.subf %4, %11 : vector<8x32xf32>
    %13 = arith.mulf %12, %12 : vector<8x32xf32>
    %cst_9 = arith.constant dense<0.000000e+00> : vector<8xf32>
    %14 = vector.multi_reduction <add>, %13, %cst_9 [1] : vector<8x32xf32> to vector<8xf32>
    %15 = vector.shape_cast %14 : vector<8xf32> to vector<8x1xf32>
    %cst_10 = arith.constant 3.200000e+01 : f32
    %16 = vector.broadcast %cst_10 : f32 to vector<8x1xf32>
    %17 = arith.divf %15, %16 : vector<8x1xf32>
    %cst_11 = arith.constant 9.99999996E-13 : f32
    %18 = vector.broadcast %cst_11 : f32 to vector<8x1xf32>
    %19 = arith.addf %17, %18 : vector<8x1xf32>
    %20 = math.rsqrt %19 : vector<8x1xf32>
    %21 = vector.broadcast %20 : vector<8x1xf32> to vector<8x32xf32>
    %22 = arith.mulf %12, %21 : vector<8x32xf32>
    %23 = vector.broadcast %5 : vector<1x32xf32> to vector<8x32xf32>
    %24 = arith.mulf %22, %23 : vector<8x32xf32>
    %25 = vector.broadcast %6 : vector<1x32xf32> to vector<8x32xf32>
    %26 = arith.addf %24, %25 : vector<8x32xf32>
    %27 = arith.truncf %26 : vector<8x32xf32> to vector<8x32xbf16>
    %c0_12 = arith.constant 0 : index
    %c0_13 = arith.constant 0 : index
    %c0_14 = arith.constant 0 : index
    %28 = vector.load %arg5[%c0_12, %c0_13, %c0_14] : memref<1x8x32xbf16, #tpu.memory_space<vmem>>, vector<1x8x32xbf16>
    %29 = vector.shape_cast %28 : vector<1x8x32xbf16> to vector<8x32xbf16>
    %30 = vector.shape_cast %27 : vector<8x32xbf16> to vector<1x8x32xbf16>
    tpu.vector_store %arg5[%c0_12, %c0_13, %c0_14], %30 {strides = array<i32>} : memref<1x8x32xbf16, #tpu.memory_space<vmem>>, vector<1x8x32xbf16>,
    return
  }
  func.func @transform_0(%arg0: i32) -> (i32, i32, i32) {
    %c0_i32 = arith.constant 0 : i32
    %c0_i32_0 = arith.constant 0 : i32
    %c0_i32_1 = arith.constant 0 : i32
    return %arg0, %c0_i32, %c0_i32_0 : i32, i32, i32
  }
  func.func @transform_1(%arg0: i32) -> (i32, i32) {
    %c0_i32 = arith.constant 0 : i32
    %c0_i32_0 = arith.constant 0 : i32
    %c0_i32_1 = arith.constant 0 : i32
    return %c0_i32, %c0_i32_0 : i32, i32
  }
  func.func @transform_2(%arg0: i32) -> (i32, i32) {
    %c0_i32 = arith.constant 0 : i32
    %c0_i32_0 = arith.constant 0 : i32
    %c0_i32_1 = arith.constant 0 : i32
    return %c0_i32, %c0_i32_0 : i32, i32
  }
  func.func @transform_3(%arg0: i32) -> (i32, i32) {
    %c0_i32 = arith.constant 0 : i32
    %c0_i32_0 = arith.constant 0 : i32
    %c0_i32_1 = arith.constant 0 : i32
    return %c0_i32, %c0_i32_0 : i32, i32
  }
  func.func @transform_4(%arg0: i32) -> (i32, i32, i32) {
    %c0_i32 = arith.constant 0 : i32
    %c0_i32_0 = arith.constant 0 : i32
    %c0_i32_1 = arith.constant 0 : i32
    return %arg0, %c0_i32, %c0_i32_0 : i32, i32, i32
  }
}

module attributes {stable_mosaic.version = 11 : i64} {
  func.func @_attn_block_kernel(%arg0: i32, %arg1: memref<1x8x32xbf16, #tpu.memory_space<vmem>>, %arg2: memref<32x96xbf16, #tpu.memory_space<vmem>>, %arg3: memref<1x96xf32, #tpu.memory_space<vmem>>, %arg4: memref<32x32xbf16, #tpu.memory_space<vmem>>, %arg5: memref<1x32xf32, #tpu.memory_space<vmem>>, %arg6: memref<1x32xf32, #tpu.memory_space<vmem>>, %arg7: memref<1x32xf32, #tpu.memory_space<vmem>>, %arg8: memref<1x8x32xbf16, #tpu.memory_space<vmem>>) attributes {dimension_semantics = [#tpu.dimension_semantics<parallel>], iteration_bounds = array<i64: 2>, scalar_prefetch = 0 : i64, scratch_operands = 0 : i64, tpu.core_type = #tpu.core_type<tc>, window_params = [{transform_indices = @transform_0, window_bounds = array<i64: 1, 8, 32>}, {pipeline_mode = #tpu.pipeline_mode<synchronous>, transform_indices = @transform_1, window_bounds = array<i64: 32, 96>}, {pipeline_mode = #tpu.pipeline_mode<synchronous>, transform_indices = @transform_2, window_bounds = array<i64: 1, 96>}, {pipeline_mode = #tpu.pipeline_mode<synchronous>, transform_indices = @transform_3, window_bounds = array<i64: 32, 32>}, {pipeline_mode = #tpu.pipeline_mode<synchronous>, transform_indices = @transform_4, window_bounds = array<i64: 1, 32>}, {pipeline_mode = #tpu.pipeline_mode<synchronous>, transform_indices = @transform_5, window_bounds = array<i64: 1, 32>}, {pipeline_mode = #tpu.pipeline_mode<synchronous>, transform_indices = @transform_6, window_bounds = array<i64: 1, 32>}, {transform_indices = @transform_7, window_bounds = array<i64: 1, 8, 32>}]} {
    %c0 = arith.constant 0 : index
    %c0_0 = arith.constant 0 : index
    %c0_1 = arith.constant 0 : index
    %0 = vector.load %arg1[%c0, %c0_0, %c0_1] : memref<1x8x32xbf16, #tpu.memory_space<vmem>>, vector<1x8x32xbf16>
    %1 = vector.shape_cast %0 : vector<1x8x32xbf16> to vector<8x32xbf16>
    %c0_2 = arith.constant 0 : index
    %c0_3 = arith.constant 0 : index
    %2 = vector.load %arg2[%c0_2, %c0_3] : memref<32x96xbf16, #tpu.memory_space<vmem>>, vector<32x96xbf16>
    %cst = arith.constant dense<0.000000e+00> : vector<8x96xf32>
    %3 = tpu.matmul %1, %2, %cst {dimension_numbers = #tpu.dot_dimension_numbers<[1], [0], [0], [1], [0, 0, 1, 1], [], []>} : vector<8x32xbf16>, vector<32x96xbf16>, vector<8x96xf32> -> vector<8x96xf32>
    %c0_4 = arith.constant 0 : index
    %c0_5 = arith.constant 0 : index
    %4 = vector.load %arg3[%c0_4, %c0_5] : memref<1x96xf32, #tpu.memory_space<vmem>>, vector<1x96xf32>
    %5 = vector.broadcast %4 : vector<1x96xf32> to vector<8x96xf32>
    %6 = arith.addf %3, %5 : vector<8x96xf32>
    %7 = vector.extract_strided_slice %6 {offsets = [0, 0], sizes = [8, 32], strides = [1, 1]} : vector<8x96xf32> to vector<8x32xf32>
    %cst_6 = arith.constant 0.353553385 : f32
    %8 = vector.broadcast %cst_6 : f32 to vector<8x32xf32>
    %9 = arith.mulf %7, %8 : vector<8x32xf32>
    %10 = arith.truncf %9 : vector<8x32xf32> to vector<8x32xbf16>
    %11 = vector.extract_strided_slice %6 {offsets = [0, 32], sizes = [8, 32], strides = [1, 1]} : vector<8x96xf32> to vector<8x32xf32>
    %12 = arith.truncf %11 : vector<8x32xf32> to vector<8x32xbf16>
    %13 = vector.extract_strided_slice %6 {offsets = [0, 64], sizes = [8, 32], strides = [1, 1]} : vector<8x96xf32> to vector<8x32xf32>
    %14 = arith.truncf %13 : vector<8x32xf32> to vector<8x32xbf16>
    %15 = vector.extract_strided_slice %10 {offsets = [0, 0], sizes = [8, 8], strides = [1, 1]} : vector<8x32xbf16> to vector<8x8xbf16>
    %16 = vector.extract_strided_slice %12 {offsets = [0, 0], sizes = [8, 8], strides = [1, 1]} : vector<8x32xbf16> to vector<8x8xbf16>
    "tpu.trace_start"() <{level = 10 : i32, message = "qd,kd->qk"}> : () -> ()
    %cst_7 = arith.constant dense<0.000000e+00> : vector<8x8xf32>
    %17 = tpu.matmul %15, %16, %cst_7 {dimension_numbers = #tpu.dot_dimension_numbers<[1], [1], [0], [0], [0, 0, 1, 0], [], []>} : vector<8x8xbf16>, vector<8x8xbf16>, vector<8x8xf32> -> vector<8x8xf32>
    "tpu.trace_stop"() : () -> ()
    %cst_8 = arith.constant dense<0xFF800000> : vector<8xf32>
    %18 = vector.multi_reduction <maximumf>, %17, %cst_8 [1] : vector<8x8xf32> to vector<8xf32>
    %19 = vector.shape_cast %18 : vector<8xf32> to vector<8x1xf32>
    %20 = vector.broadcast %19 : vector<8x1xf32> to vector<8x8xf32>
    %21 = arith.subf %17, %20 : vector<8x8xf32>
    %22 = math.exp %21 : vector<8x8xf32>
    %cst_9 = arith.constant dense<0.000000e+00> : vector<8xf32>
    %23 = vector.multi_reduction <add>, %22, %cst_9 [1] : vector<8x8xf32> to vector<8xf32>
    %24 = vector.shape_cast %23 : vector<8xf32> to vector<8x1xf32>
    %25 = tpu.reciprocal %24 {approx = true} : vector<8x1xf32> -> vector<8x1xf32>
    %26 = vector.broadcast %25 : vector<8x1xf32> to vector<8x8xf32>
    %27 = arith.mulf %22, %26 : vector<8x8xf32>
    %28 = arith.truncf %27 : vector<8x8xf32> to vector<8x8xbf16>
    %29 = vector.extract_strided_slice %14 {offsets = [0, 0], sizes = [8, 8], strides = [1, 1]} : vector<8x32xbf16> to vector<8x8xbf16>
    %cst_10 = arith.constant dense<0.000000e+00> : vector<8x8xf32>
    %30 = tpu.matmul %28, %29, %cst_10 {dimension_numbers = #tpu.dot_dimension_numbers<[1], [0], [0], [1], [0, 0, 1, 1], [], []>} : vector<8x8xbf16>, vector<8x8xbf16>, vector<8x8xf32> -> vector<8x8xf32>
    %31 = vector.extract_strided_slice %10 {offsets = [0, 8], sizes = [8, 8], strides = [1, 1]} : vector<8x32xbf16> to vector<8x8xbf16>
    %32 = vector.extract_strided_slice %12 {offsets = [0, 8], sizes = [8, 8], strides = [1, 1]} : vector<8x32xbf16> to vector<8x8xbf16>
    "tpu.trace_start"() <{level = 10 : i32, message = "qd,kd->qk"}> : () -> ()
    %cst_11 = arith.constant dense<0.000000e+00> : vector<8x8xf32>
    %33 = tpu.matmul %31, %32, %cst_11 {dimension_numbers = #tpu.dot_dimension_numbers<[1], [1], [0], [0], [0, 0, 1, 0], [], []>} : vector<8x8xbf16>, vector<8x8xbf16>, vector<8x8xf32> -> vector<8x8xf32>
    "tpu.trace_stop"() : () -> ()
    %cst_12 = arith.constant dense<0xFF800000> : vector<8xf32>
    %34 = vector.multi_reduction <maximumf>, %33, %cst_12 [1] : vector<8x8xf32> to vector<8xf32>
    %35 = vector.shape_cast %34 : vector<8xf32> to vector<8x1xf32>
    %36 = vector.broadcast %35 : vector<8x1xf32> to vector<8x8xf32>
    %37 = arith.subf %33, %36 : vector<8x8xf32>
    %38 = math.exp %37 : vector<8x8xf32>
    %cst_13 = arith.constant dense<0.000000e+00> : vector<8xf32>
    %39 = vector.multi_reduction <add>, %38, %cst_13 [1] : vector<8x8xf32> to vector<8xf32>
    %40 = vector.shape_cast %39 : vector<8xf32> to vector<8x1xf32>
    %41 = tpu.reciprocal %40 {approx = true} : vector<8x1xf32> -> vector<8x1xf32>
    %42 = vector.broadcast %41 : vector<8x1xf32> to vector<8x8xf32>
    %43 = arith.mulf %38, %42 : vector<8x8xf32>
    %44 = arith.truncf %43 : vector<8x8xf32> to vector<8x8xbf16>
    %45 = vector.extract_strided_slice %14 {offsets = [0, 8], sizes = [8, 8], strides = [1, 1]} : vector<8x32xbf16> to vector<8x8xbf16>
    %cst_14 = arith.constant dense<0.000000e+00> : vector<8x8xf32>
    %46 = tpu.matmul %44, %45, %cst_14 {dimension_numbers = #tpu.dot_dimension_numbers<[1], [0], [0], [1], [0, 0, 1, 1], [], []>} : vector<8x8xbf16>, vector<8x8xbf16>, vector<8x8xf32> -> vector<8x8xf32>
    %47 = vector.extract_strided_slice %10 {offsets = [0, 16], sizes = [8, 8], strides = [1, 1]} : vector<8x32xbf16> to vector<8x8xbf16>
    %48 = vector.extract_strided_slice %12 {offsets = [0, 16], sizes = [8, 8], strides = [1, 1]} : vector<8x32xbf16> to vector<8x8xbf16>
    "tpu.trace_start"() <{level = 10 : i32, message = "qd,kd->qk"}> : () -> ()
    %cst_15 = arith.constant dense<0.000000e+00> : vector<8x8xf32>
    %49 = tpu.matmul %47, %48, %cst_15 {dimension_numbers = #tpu.dot_dimension_numbers<[1], [1], [0], [0], [0, 0, 1, 0], [], []>} : vector<8x8xbf16>, vector<8x8xbf16>, vector<8x8xf32> -> vector<8x8xf32>
    "tpu.trace_stop"() : () -> ()
    %cst_16 = arith.constant dense<0xFF800000> : vector<8xf32>
    %50 = vector.multi_reduction <maximumf>, %49, %cst_16 [1] : vector<8x8xf32> to vector<8xf32>
    %51 = vector.shape_cast %50 : vector<8xf32> to vector<8x1xf32>
    %52 = vector.broadcast %51 : vector<8x1xf32> to vector<8x8xf32>
    %53 = arith.subf %49, %52 : vector<8x8xf32>
    %54 = math.exp %53 : vector<8x8xf32>
    %cst_17 = arith.constant dense<0.000000e+00> : vector<8xf32>
    %55 = vector.multi_reduction <add>, %54, %cst_17 [1] : vector<8x8xf32> to vector<8xf32>
    %56 = vector.shape_cast %55 : vector<8xf32> to vector<8x1xf32>
    %57 = tpu.reciprocal %56 {approx = true} : vector<8x1xf32> -> vector<8x1xf32>
    %58 = vector.broadcast %57 : vector<8x1xf32> to vector<8x8xf32>
    %59 = arith.mulf %54, %58 : vector<8x8xf32>
    %60 = arith.truncf %59 : vector<8x8xf32> to vector<8x8xbf16>
    %61 = vector.extract_strided_slice %14 {offsets = [0, 16], sizes = [8, 8], strides = [1, 1]} : vector<8x32xbf16> to vector<8x8xbf16>
    %cst_18 = arith.constant dense<0.000000e+00> : vector<8x8xf32>
    %62 = tpu.matmul %60, %61, %cst_18 {dimension_numbers = #tpu.dot_dimension_numbers<[1], [0], [0], [1], [0, 0, 1, 1], [], []>} : vector<8x8xbf16>, vector<8x8xbf16>, vector<8x8xf32> -> vector<8x8xf32>
    %63 = vector.extract_strided_slice %10 {offsets = [0, 24], sizes = [8, 8], strides = [1, 1]} : vector<8x32xbf16> to vector<8x8xbf16>
    %64 = vector.extract_strided_slice %12 {offsets = [0, 24], sizes = [8, 8], strides = [1, 1]} : vector<8x32xbf16> to vector<8x8xbf16>
    "tpu.trace_start"() <{level = 10 : i32, message = "qd,kd->qk"}> : () -> ()
    %cst_19 = arith.constant dense<0.000000e+00> : vector<8x8xf32>
    %65 = tpu.matmul %63, %64, %cst_19 {dimension_numbers = #tpu.dot_dimension_numbers<[1], [1], [0], [0], [0, 0, 1, 0], [], []>} : vector<8x8xbf16>, vector<8x8xbf16>, vector<8x8xf32> -> vector<8x8xf32>
    "tpu.trace_stop"() : () -> ()
    %cst_20 = arith.constant dense<0xFF800000> : vector<8xf32>
    %66 = vector.multi_reduction <maximumf>, %65, %cst_20 [1] : vector<8x8xf32> to vector<8xf32>
    %67 = vector.shape_cast %66 : vector<8xf32> to vector<8x1xf32>
    %68 = vector.broadcast %67 : vector<8x1xf32> to vector<8x8xf32>
    %69 = arith.subf %65, %68 : vector<8x8xf32>
    %70 = math.exp %69 : vector<8x8xf32>
    %cst_21 = arith.constant dense<0.000000e+00> : vector<8xf32>
    %71 = vector.multi_reduction <add>, %70, %cst_21 [1] : vector<8x8xf32> to vector<8xf32>
    %72 = vector.shape_cast %71 : vector<8xf32> to vector<8x1xf32>
    %73 = tpu.reciprocal %72 {approx = true} : vector<8x1xf32> -> vector<8x1xf32>
    %74 = vector.broadcast %73 : vector<8x1xf32> to vector<8x8xf32>
    %75 = arith.mulf %70, %74 : vector<8x8xf32>
    %76 = arith.truncf %75 : vector<8x8xf32> to vector<8x8xbf16>
    %77 = vector.extract_strided_slice %14 {offsets = [0, 24], sizes = [8, 8], strides = [1, 1]} : vector<8x32xbf16> to vector<8x8xbf16>
    %cst_22 = arith.constant dense<0.000000e+00> : vector<8x8xf32>
    %78 = tpu.matmul %76, %77, %cst_22 {dimension_numbers = #tpu.dot_dimension_numbers<[1], [0], [0], [1], [0, 0, 1, 1], [], []>} : vector<8x8xbf16>, vector<8x8xbf16>, vector<8x8xf32> -> vector<8x8xf32>
    %79 = tpu.concatenate %30, %46, %62, %78 in 1 : vector<8x8xf32>, vector<8x8xf32>, vector<8x8xf32>, vector<8x8xf32> -> vector<8x32xf32>
    %80 = arith.truncf %79 : vector<8x32xf32> to vector<8x32xbf16>
    %c0_23 = arith.constant 0 : index
    %c0_24 = arith.constant 0 : index
    %81 = vector.load %arg4[%c0_23, %c0_24] : memref<32x32xbf16, #tpu.memory_space<vmem>>, vector<32x32xbf16>
    %cst_25 = arith.constant dense<0.000000e+00> : vector<8x32xf32>
    %82 = tpu.matmul %80, %81, %cst_25 {dimension_numbers = #tpu.dot_dimension_numbers<[1], [0], [0], [1], [0, 0, 1, 1], [], []>} : vector<8x32xbf16>, vector<32x32xbf16>, vector<8x32xf32> -> vector<8x32xf32>
    %c0_26 = arith.constant 0 : index
    %c0_27 = arith.constant 0 : index
    %83 = vector.load %arg5[%c0_26, %c0_27] : memref<1x32xf32, #tpu.memory_space<vmem>>, vector<1x32xf32>
    %84 = vector.broadcast %83 : vector<1x32xf32> to vector<8x32xf32>
    %85 = arith.addf %82, %84 : vector<8x32xf32>
    %86 = arith.extf %1 : vector<8x32xbf16> to vector<8x32xf32>
    %87 = arith.addf %85, %86 : vector<8x32xf32>
    %c0_28 = arith.constant 0 : index
    %c0_29 = arith.constant 0 : index
    %88 = vector.load %arg6[%c0_28, %c0_29] : memref<1x32xf32, #tpu.memory_space<vmem>>, vector<1x32xf32>
    %c0_30 = arith.constant 0 : index
    %c0_31 = arith.constant 0 : index
    %89 = vector.load %arg7[%c0_30, %c0_31] : memref<1x32xf32, #tpu.memory_space<vmem>>, vector<1x32xf32>
    %cst_32 = arith.constant dense<0.000000e+00> : vector<8xf32>
    %90 = vector.multi_reduction <add>, %87, %cst_32 [1] : vector<8x32xf32> to vector<8xf32>
    %91 = vector.shape_cast %90 : vector<8xf32> to vector<8x1xf32>
    %cst_33 = arith.constant 3.200000e+01 : f32
    %92 = vector.broadcast %cst_33 : f32 to vector<8x1xf32>
    %93 = arith.divf %91, %92 : vector<8x1xf32>
    %94 = vector.broadcast %93 : vector<8x1xf32> to vector<8x32xf32>
    %95 = arith.subf %87, %94 : vector<8x32xf32>
    %96 = arith.mulf %95, %95 : vector<8x32xf32>
    %cst_34 = arith.constant dense<0.000000e+00> : vector<8xf32>
    %97 = vector.multi_reduction <add>, %96, %cst_34 [1] : vector<8x32xf32> to vector<8xf32>
    %98 = vector.shape_cast %97 : vector<8xf32> to vector<8x1xf32>
    %cst_35 = arith.constant 3.200000e+01 : f32
    %99 = vector.broadcast %cst_35 : f32 to vector<8x1xf32>
    %100 = arith.divf %98, %99 : vector<8x1xf32>
    %cst_36 = arith.constant 9.99999996E-13 : f32
    %101 = vector.broadcast %cst_36 : f32 to vector<8x1xf32>
    %102 = arith.addf %100, %101 : vector<8x1xf32>
    %103 = math.rsqrt %102 : vector<8x1xf32>
    %104 = vector.broadcast %103 : vector<8x1xf32> to vector<8x32xf32>
    %105 = arith.mulf %95, %104 : vector<8x32xf32>
    %106 = vector.broadcast %88 : vector<1x32xf32> to vector<8x32xf32>
    %107 = arith.mulf %105, %106 : vector<8x32xf32>
    %108 = vector.broadcast %89 : vector<1x32xf32> to vector<8x32xf32>
    %109 = arith.addf %107, %108 : vector<8x32xf32>
    %110 = arith.truncf %109 : vector<8x32xf32> to vector<8x32xbf16>
    %c0_37 = arith.constant 0 : index
    %c0_38 = arith.constant 0 : index
    %c0_39 = arith.constant 0 : index
    %111 = vector.load %arg8[%c0_37, %c0_38, %c0_39] : memref<1x8x32xbf16, #tpu.memory_space<vmem>>, vector<1x8x32xbf16>
    %112 = vector.shape_cast %111 : vector<1x8x32xbf16> to vector<8x32xbf16>
    %113 = vector.shape_cast %110 : vector<8x32xbf16> to vector<1x8x32xbf16>
    tpu.vector_store %arg8[%c0_37, %c0_38, %c0_39], %113 {strides = array<i32>} : memref<1x8x32xbf16, #tpu.memory_space<vmem>>, vector<1x8x32xbf16>,
    return
  }
  func.func @transform_0(%arg0: i32) -> (i32, i32, i32) {
    %c0_i32 = arith.constant 0 : i32
    %c0_i32_0 = arith.constant 0 : i32
    %c0_i32_1 = arith.constant 0 : i32
    return %arg0, %c0_i32, %c0_i32_0 : i32, i32, i32
  }
  func.func @transform_1(%arg0: i32) -> (i32, i32) {
    %c0_i32 = arith.constant 0 : i32
    %c0_i32_0 = arith.constant 0 : i32
    %c0_i32_1 = arith.constant 0 : i32
    return %c0_i32, %c0_i32_0 : i32, i32
  }
  func.func @transform_2(%arg0: i32) -> (i32, i32) {
    %c0_i32 = arith.constant 0 : i32
    %c0_i32_0 = arith.constant 0 : i32
    %c0_i32_1 = arith.constant 0 : i32
    return %c0_i32, %c0_i32_0 : i32, i32
  }
  func.func @transform_3(%arg0: i32) -> (i32, i32) {
    %c0_i32 = arith.constant 0 : i32
    %c0_i32_0 = arith.constant 0 : i32
    %c0_i32_1 = arith.constant 0 : i32
    return %c0_i32, %c0_i32_0 : i32, i32
  }
  func.func @transform_4(%arg0: i32) -> (i32, i32) {
    %c0_i32 = arith.constant 0 : i32
    %c0_i32_0 = arith.constant 0 : i32
    %c0_i32_1 = arith.constant 0 : i32
    return %c0_i32, %c0_i32_0 : i32, i32
  }
  func.func @transform_5(%arg0: i32) -> (i32, i32) {
    %c0_i32 = arith.constant 0 : i32
    %c0_i32_0 = arith.constant 0 : i32
    %c0_i32_1 = arith.constant 0 : i32
    return %c0_i32, %c0_i32_0 : i32, i32
  }
  func.func @transform_6(%arg0: i32) -> (i32, i32) {
    %c0_i32 = arith.constant 0 : i32
    %c0_i32_0 = arith.constant 0 : i32
    %c0_i32_1 = arith.constant 0 : i32
    return %c0_i32, %c0_i32_0 : i32, i32
  }
  func.func @transform_7(%arg0: i32) -> (i32, i32, i32) {
    %c0_i32 = arith.constant 0 : i32
    %c0_i32_0 = arith.constant 0 : i32
    %c0_i32_1 = arith.constant 0 : i32
    return %arg0, %c0_i32, %c0_i32_0 : i32, i32, i32
  }
}

module attributes {stable_mosaic.version = 11 : i64} {
  func.func @_ffn_kernel(%arg0: i32, %arg1: memref<16x32xbf16, #tpu.memory_space<vmem>>, %arg2: memref<32x64xbf16, #tpu.memory_space<vmem>>, %arg3: memref<1x64xf32, #tpu.memory_space<vmem>>, %arg4: memref<64x32xbf16, #tpu.memory_space<vmem>>, %arg5: memref<1x32xf32, #tpu.memory_space<vmem>>, %arg6: memref<1x32xf32, #tpu.memory_space<vmem>>, %arg7: memref<1x32xf32, #tpu.memory_space<vmem>>, %arg8: memref<16x32xbf16, #tpu.memory_space<vmem>>) attributes {dimension_semantics = [#tpu.dimension_semantics<parallel>], iteration_bounds = array<i64: 1>, scalar_prefetch = 0 : i64, scratch_operands = 0 : i64, tpu.core_type = #tpu.core_type<tc>, window_params = [{transform_indices = @transform_0, window_bounds = array<i64: 16, 32>}, {pipeline_mode = #tpu.pipeline_mode<synchronous>, transform_indices = @transform_1, window_bounds = array<i64: 32, 64>}, {pipeline_mode = #tpu.pipeline_mode<synchronous>, transform_indices = @transform_2, window_bounds = array<i64: 1, 64>}, {pipeline_mode = #tpu.pipeline_mode<synchronous>, transform_indices = @transform_3, window_bounds = array<i64: 64, 32>}, {pipeline_mode = #tpu.pipeline_mode<synchronous>, transform_indices = @transform_4, window_bounds = array<i64: 1, 32>}, {pipeline_mode = #tpu.pipeline_mode<synchronous>, transform_indices = @transform_5, window_bounds = array<i64: 1, 32>}, {pipeline_mode = #tpu.pipeline_mode<synchronous>, transform_indices = @transform_6, window_bounds = array<i64: 1, 32>}, {transform_indices = @transform_7, window_bounds = array<i64: 16, 32>}]} {
    %c0 = arith.constant 0 : index
    %c0_0 = arith.constant 0 : index
    %0 = vector.load %arg1[%c0, %c0_0] : memref<16x32xbf16, #tpu.memory_space<vmem>>, vector<16x32xbf16>
    %c0_1 = arith.constant 0 : index
    %c0_2 = arith.constant 0 : index
    %1 = vector.load %arg2[%c0_1, %c0_2] : memref<32x64xbf16, #tpu.memory_space<vmem>>, vector<32x64xbf16>
    %cst = arith.constant dense<0.000000e+00> : vector<16x64xf32>
    %2 = tpu.matmul %0, %1, %cst {dimension_numbers = #tpu.dot_dimension_numbers<[1], [0], [0], [1], [0, 0, 1, 1], [], []>} : vector<16x32xbf16>, vector<32x64xbf16>, vector<16x64xf32> -> vector<16x64xf32>
    %c0_3 = arith.constant 0 : index
    %c0_4 = arith.constant 0 : index
    %3 = vector.load %arg3[%c0_3, %c0_4] : memref<1x64xf32, #tpu.memory_space<vmem>>, vector<1x64xf32>
    %4 = vector.broadcast %3 : vector<1x64xf32> to vector<16x64xf32>
    %5 = arith.addf %2, %4 : vector<16x64xf32>
    %cst_5 = arith.constant 5.000000e-01 : f32
    %6 = vector.broadcast %cst_5 : f32 to vector<16x64xf32>
    %7 = arith.mulf %6, %5 : vector<16x64xf32>
    %cst_6 = arith.constant 4.471500e-02 : f32
    %8 = vector.broadcast %cst_6 : f32 to vector<16x64xf32>
    %9 = arith.mulf %8, %5 : vector<16x64xf32>
    %10 = arith.mulf %9, %5 : vector<16x64xf32>
    %11 = arith.mulf %10, %5 : vector<16x64xf32>
    %12 = arith.addf %5, %11 : vector<16x64xf32>
    %cst_7 = arith.constant 0.797884583 : f32
    %13 = vector.broadcast %cst_7 : f32 to vector<16x64xf32>
    %14 = arith.mulf %13, %12 : vector<16x64xf32>
    %15 = math.tanh %14 : vector<16x64xf32>
    %cst_8 = arith.constant 1.000000e+00 : f32
    %16 = vector.broadcast %cst_8 : f32 to vector<16x64xf32>
    %17 = arith.addf %16, %15 : vector<16x64xf32>
    %18 = arith.mulf %7, %17 : vector<16x64xf32>
    %19 = arith.truncf %18 : vector<16x64xf32> to vector<16x64xbf16>
    %c0_9 = arith.constant 0 : index
    %c0_10 = arith.constant 0 : index
    %20 = vector.load %arg4[%c0_9, %c0_10] : memref<64x32xbf16, #tpu.memory_space<vmem>>, vector<64x32xbf16>
    %cst_11 = arith.constant dense<0.000000e+00> : vector<16x32xf32>
    %21 = tpu.matmul %19, %20, %cst_11 {dimension_numbers = #tpu.dot_dimension_numbers<[1], [0], [0], [1], [0, 0, 1, 1], [], []>} : vector<16x64xbf16>, vector<64x32xbf16>, vector<16x32xf32> -> vector<16x32xf32>
    %c0_12 = arith.constant 0 : index
    %c0_13 = arith.constant 0 : index
    %22 = vector.load %arg5[%c0_12, %c0_13] : memref<1x32xf32, #tpu.memory_space<vmem>>, vector<1x32xf32>
    %23 = vector.broadcast %22 : vector<1x32xf32> to vector<16x32xf32>
    %24 = arith.addf %21, %23 : vector<16x32xf32>
    %25 = arith.extf %0 : vector<16x32xbf16> to vector<16x32xf32>
    %26 = arith.addf %24, %25 : vector<16x32xf32>
    %c0_14 = arith.constant 0 : index
    %c0_15 = arith.constant 0 : index
    %27 = vector.load %arg6[%c0_14, %c0_15] : memref<1x32xf32, #tpu.memory_space<vmem>>, vector<1x32xf32>
    %c0_16 = arith.constant 0 : index
    %c0_17 = arith.constant 0 : index
    %28 = vector.load %arg7[%c0_16, %c0_17] : memref<1x32xf32, #tpu.memory_space<vmem>>, vector<1x32xf32>
    %cst_18 = arith.constant dense<0.000000e+00> : vector<16xf32>
    %29 = vector.multi_reduction <add>, %26, %cst_18 [1] : vector<16x32xf32> to vector<16xf32>
    %30 = vector.shape_cast %29 : vector<16xf32> to vector<16x1xf32>
    %cst_19 = arith.constant 3.200000e+01 : f32
    %31 = vector.broadcast %cst_19 : f32 to vector<16x1xf32>
    %32 = arith.divf %30, %31 : vector<16x1xf32>
    %33 = vector.broadcast %32 : vector<16x1xf32> to vector<16x32xf32>
    %34 = arith.subf %26, %33 : vector<16x32xf32>
    %35 = arith.mulf %34, %34 : vector<16x32xf32>
    %cst_20 = arith.constant dense<0.000000e+00> : vector<16xf32>
    %36 = vector.multi_reduction <add>, %35, %cst_20 [1] : vector<16x32xf32> to vector<16xf32>
    %37 = vector.shape_cast %36 : vector<16xf32> to vector<16x1xf32>
    %cst_21 = arith.constant 3.200000e+01 : f32
    %38 = vector.broadcast %cst_21 : f32 to vector<16x1xf32>
    %39 = arith.divf %37, %38 : vector<16x1xf32>
    %cst_22 = arith.constant 9.99999996E-13 : f32
    %40 = vector.broadcast %cst_22 : f32 to vector<16x1xf32>
    %41 = arith.addf %39, %40 : vector<16x1xf32>
    %42 = math.rsqrt %41 : vector<16x1xf32>
    %43 = vector.broadcast %42 : vector<16x1xf32> to vector<16x32xf32>
    %44 = arith.mulf %34, %43 : vector<16x32xf32>
    %45 = vector.broadcast %27 : vector<1x32xf32> to vector<16x32xf32>
    %46 = arith.mulf %44, %45 : vector<16x32xf32>
    %47 = vector.broadcast %28 : vector<1x32xf32> to vector<16x32xf32>
    %48 = arith.addf %46, %47 : vector<16x32xf32>
    %49 = arith.truncf %48 : vector<16x32xf32> to vector<16x32xbf16>
    %c0_23 = arith.constant 0 : index
    %c0_24 = arith.constant 0 : index
    %50 = vector.load %arg8[%c0_23, %c0_24] : memref<16x32xbf16, #tpu.memory_space<vmem>>, vector<16x32xbf16>
    tpu.vector_store %arg8[%c0_23, %c0_24], %49 {strides = array<i32>} : memref<16x32xbf16, #tpu.memory_space<vmem>>, vector<16x32xbf16>,
    return
  }
  func.func @transform_0(%arg0: i32) -> (i32, i32) {
    %c0_i32 = arith.constant 0 : i32
    %c0_i32_0 = arith.constant 0 : i32
    return %arg0, %c0_i32 : i32, i32
  }
  func.func @transform_1(%arg0: i32) -> (i32, i32) {
    %c0_i32 = arith.constant 0 : i32
    %c0_i32_0 = arith.constant 0 : i32
    %c0_i32_1 = arith.constant 0 : i32
    return %c0_i32, %c0_i32_0 : i32, i32
  }
  func.func @transform_2(%arg0: i32) -> (i32, i32) {
    %c0_i32 = arith.constant 0 : i32
    %c0_i32_0 = arith.constant 0 : i32
    %c0_i32_1 = arith.constant 0 : i32
    return %c0_i32, %c0_i32_0 : i32, i32
  }
  func.func @transform_3(%arg0: i32) -> (i32, i32) {
    %c0_i32 = arith.constant 0 : i32
    %c0_i32_0 = arith.constant 0 : i32
    %c0_i32_1 = arith.constant 0 : i32
    return %c0_i32, %c0_i32_0 : i32, i32
  }
  func.func @transform_4(%arg0: i32) -> (i32, i32) {
    %c0_i32 = arith.constant 0 : i32
    %c0_i32_0 = arith.constant 0 : i32
    %c0_i32_1 = arith.constant 0 : i32
    return %c0_i32, %c0_i32_0 : i32, i32
  }
  func.func @transform_5(%arg0: i32) -> (i32, i32) {
    %c0_i32 = arith.constant 0 : i32
    %c0_i32_0 = arith.constant 0 : i32
    %c0_i32_1 = arith.constant 0 : i32
    return %c0_i32, %c0_i32_0 : i32, i32
  }
  func.func @transform_6(%arg0: i32) -> (i32, i32) {
    %c0_i32 = arith.constant 0 : i32
    %c0_i32_0 = arith.constant 0 : i32
    %c0_i32_1 = arith.constant 0 : i32
    return %c0_i32, %c0_i32_0 : i32, i32
  }
  func.func @transform_7(%arg0: i32) -> (i32, i32) {
    %c0_i32 = arith.constant 0 : i32
    %c0_i32_0 = arith.constant 0 : i32
    return %arg0, %c0_i32 : i32, i32
  }
}

module attributes {stable_mosaic.version = 11 : i64} {
  func.func @_cls_stats_kernel(%arg0: i32, %arg1: i32, %arg2: memref<16x32xbf16, #tpu.memory_space<vmem>>, %arg3: memref<32x64xbf16, #tpu.memory_space<vmem>>, %arg4: memref<1x64xf32, #tpu.memory_space<vmem>>, %arg5: memref<16x1xf32, #tpu.memory_space<vmem>>, %arg6: memref<16x1xf32, #tpu.memory_space<vmem>>, %arg7: memref<16x1xf32, #tpu.memory_space<vmem>>, %arg8: memref<16x1xf32, #tpu.memory_space<vmem>>) attributes {dimension_semantics = [#tpu.dimension_semantics<parallel>, #tpu.dimension_semantics<arbitrary>], iteration_bounds = array<i64: 1, 1>, scalar_prefetch = 0 : i64, scratch_operands = 2 : i64, tpu.core_type = #tpu.core_type<tc>, window_params = [{transform_indices = @transform_0, window_bounds = array<i64: 16, 32>}, {transform_indices = @transform_1, window_bounds = array<i64: 32, 64>}, {transform_indices = @transform_2, window_bounds = array<i64: 1, 64>}, {transform_indices = @transform_3, window_bounds = array<i64: 16, 1>}, {transform_indices = @transform_4, window_bounds = array<i64: 16, 1>}]} {
    %c0_i32 = arith.constant 0 : i32
    %0 = arith.cmpi eq, %arg1, %c0_i32 : i32
    %1 = arith.extui %0 : i1 to i32
    %c0_i32_0 = arith.constant 0 : i32
    %2 = arith.cmpi ne, %1, %c0_i32_0 : i32
    scf.if %2 {
      %cst_20 = arith.constant 0xFF800000 : f32
      %29 = vector.broadcast %cst_20 : f32 to vector<16x1xf32>
      %c0_21 = arith.constant 0 : index
      %c0_22 = arith.constant 0 : index
      %30 = vector.load %arg7[%c0_21, %c0_22] : memref<16x1xf32, #tpu.memory_space<vmem>>, vector<16x1xf32>
      tpu.vector_store %arg7[%c0_21, %c0_22], %29 {strides = array<i32>} : memref<16x1xf32, #tpu.memory_space<vmem>>, vector<16x1xf32>,
      %cst_23 = arith.constant 0.000000e+00 : f32
      %31 = vector.broadcast %cst_23 : f32 to vector<16x1xf32>
      %c0_24 = arith.constant 0 : index
      %c0_25 = arith.constant 0 : index
      %32 = vector.load %arg8[%c0_24, %c0_25] : memref<16x1xf32, #tpu.memory_space<vmem>>, vector<16x1xf32>
      tpu.vector_store %arg8[%c0_24, %c0_25], %31 {strides = array<i32>} : memref<16x1xf32, #tpu.memory_space<vmem>>, vector<16x1xf32>,
    } else {
    }
    %c0 = arith.constant 0 : index
    %c0_1 = arith.constant 0 : index
    %3 = vector.load %arg2[%c0, %c0_1] : memref<16x32xbf16, #tpu.memory_space<vmem>>, vector<16x32xbf16>
    %c0_2 = arith.constant 0 : index
    %c0_3 = arith.constant 0 : index
    %4 = vector.load %arg3[%c0_2, %c0_3] : memref<32x64xbf16, #tpu.memory_space<vmem>>, vector<32x64xbf16>
    %cst = arith.constant dense<0.000000e+00> : vector<16x64xf32>
    %5 = tpu.matmul %3, %4, %cst {dimension_numbers = #tpu.dot_dimension_numbers<[1], [0], [0], [1], [0, 0, 1, 1], [], []>} : vector<16x32xbf16>, vector<32x64xbf16>, vector<16x64xf32> -> vector<16x64xf32>
    %c0_4 = arith.constant 0 : index
    %c0_5 = arith.constant 0 : index
    %6 = vector.load %arg4[%c0_4, %c0_5] : memref<1x64xf32, #tpu.memory_space<vmem>>, vector<1x64xf32>
    %7 = vector.broadcast %6 : vector<1x64xf32> to vector<16x64xf32>
    %8 = arith.addf %5, %7 : vector<16x64xf32>
    %c0_6 = arith.constant 0 : index
    %c0_7 = arith.constant 0 : index
    %9 = vector.load %arg7[%c0_6, %c0_7] : memref<16x1xf32, #tpu.memory_space<vmem>>, vector<16x1xf32>
    %cst_8 = arith.constant dense<0xFF800000> : vector<16xf32>
    %10 = vector.multi_reduction <maximumf>, %8, %cst_8 [1] : vector<16x64xf32> to vector<16xf32>
    %11 = vector.shape_cast %10 : vector<16xf32> to vector<16x1xf32>
    %12 = arith.maximumf %9, %11 : vector<16x1xf32>
    %c0_9 = arith.constant 0 : index
    %c0_10 = arith.constant 0 : index
    %13 = vector.load %arg8[%c0_9, %c0_10] : memref<16x1xf32, #tpu.memory_space<vmem>>, vector<16x1xf32>
    %c0_11 = arith.constant 0 : index
    %c0_12 = arith.constant 0 : index
    %14 = vector.load %arg7[%c0_11, %c0_12] : memref<16x1xf32, #tpu.memory_space<vmem>>, vector<16x1xf32>
    %15 = arith.subf %14, %12 : vector<16x1xf32>
    %16 = math.exp %15 : vector<16x1xf32>
    %17 = arith.mulf %13, %16 : vector<16x1xf32>
    %18 = vector.broadcast %12 : vector<16x1xf32> to vector<16x64xf32>
    %19 = arith.subf %8, %18 : vector<16x64xf32>
    %20 = math.exp %19 : vector<16x64xf32>
    %cst_13 = arith.constant dense<0.000000e+00> : vector<16xf32>
    %21 = vector.multi_reduction <add>, %20, %cst_13 [1] : vector<16x64xf32> to vector<16xf32>
    %22 = vector.shape_cast %21 : vector<16xf32> to vector<16x1xf32>
    %23 = arith.addf %17, %22 : vector<16x1xf32>
    %c0_14 = arith.constant 0 : index
    %c0_15 = arith.constant 0 : index
    %24 = vector.load %arg8[%c0_14, %c0_15] : memref<16x1xf32, #tpu.memory_space<vmem>>, vector<16x1xf32>
    tpu.vector_store %arg8[%c0_14, %c0_15], %23 {strides = array<i32>} : memref<16x1xf32, #tpu.memory_space<vmem>>, vector<16x1xf32>,
    %c0_16 = arith.constant 0 : index
    %c0_17 = arith.constant 0 : index
    %25 = vector.load %arg7[%c0_16, %c0_17] : memref<16x1xf32, #tpu.memory_space<vmem>>, vector<16x1xf32>
    tpu.vector_store %arg7[%c0_16, %c0_17], %12 {strides = array<i32>} : memref<16x1xf32, #tpu.memory_space<vmem>>, vector<16x1xf32>,
    %c0_i32_18 = arith.constant 0 : i32
    %26 = arith.cmpi eq, %arg1, %c0_i32_18 : i32
    %27 = arith.extui %26 : i1 to i32
    %c0_i32_19 = arith.constant 0 : i32
    %28 = arith.cmpi ne, %27, %c0_i32_19 : i32
    scf.if %28 {
      %c0_20 = arith.constant 0 : index
      %c0_21 = arith.constant 0 : index
      %29 = vector.load %arg7[%c0_20, %c0_21] : memref<16x1xf32, #tpu.memory_space<vmem>>, vector<16x1xf32>
      %c0_22 = arith.constant 0 : index
      %c0_23 = arith.constant 0 : index
      %30 = vector.load %arg5[%c0_22, %c0_23] : memref<16x1xf32, #tpu.memory_space<vmem>>, vector<16x1xf32>
      tpu.vector_store %arg5[%c0_22, %c0_23], %29 {strides = array<i32>} : memref<16x1xf32, #tpu.memory_space<vmem>>, vector<16x1xf32>,
      %c0_24 = arith.constant 0 : index
      %c0_25 = arith.constant 0 : index
      %31 = vector.load %arg8[%c0_24, %c0_25] : memref<16x1xf32, #tpu.memory_space<vmem>>, vector<16x1xf32>
      %c0_26 = arith.constant 0 : index
      %c0_27 = arith.constant 0 : index
      %32 = vector.load %arg6[%c0_26, %c0_27] : memref<16x1xf32, #tpu.memory_space<vmem>>, vector<16x1xf32>
      tpu.vector_store %arg6[%c0_26, %c0_27], %31 {strides = array<i32>} : memref<16x1xf32, #tpu.memory_space<vmem>>, vector<16x1xf32>,
    } else {
    }
    return
  }
  func.func @transform_0(%arg0: i32, %arg1: i32) -> (i32, i32) {
    %c0_i32 = arith.constant 0 : i32
    %c0_i32_0 = arith.constant 0 : i32
    return %arg0, %c0_i32 : i32, i32
  }
  func.func @transform_1(%arg0: i32, %arg1: i32) -> (i32, i32) {
    %c0_i32 = arith.constant 0 : i32
    %c0_i32_0 = arith.constant 0 : i32
    return %c0_i32, %arg1 : i32, i32
  }
  func.func @transform_2(%arg0: i32, %arg1: i32) -> (i32, i32) {
    %c0_i32 = arith.constant 0 : i32
    %c0_i32_0 = arith.constant 0 : i32
    return %c0_i32, %arg1 : i32, i32
  }
  func.func @transform_3(%arg0: i32, %arg1: i32) -> (i32, i32) {
    %c0_i32 = arith.constant 0 : i32
    %c0_i32_0 = arith.constant 0 : i32
    return %arg0, %c0_i32 : i32, i32
  }
  func.func @transform_4(%arg0: i32, %arg1: i32) -> (i32, i32) {
    %c0_i32 = arith.constant 0 : i32
    %c0_i32_0 = arith.constant 0 : i32
    return %arg0, %c0_i32 : i32, i32
  }
}

module attributes {stable_mosaic.version = 11 : i64} {
  func.func @_cls_norm_kernel(%arg0: i32, %arg1: i32, %arg2: memref<16x32xbf16, #tpu.memory_space<vmem>>, %arg3: memref<32x64xbf16, #tpu.memory_space<vmem>>, %arg4: memref<1x64xf32, #tpu.memory_space<vmem>>, %arg5: memref<16x1xf32, #tpu.memory_space<vmem>>, %arg6: memref<16x1xf32, #tpu.memory_space<vmem>>, %arg7: memref<16x64xf32, #tpu.memory_space<vmem>>) attributes {dimension_semantics = [#tpu.dimension_semantics<parallel>, #tpu.dimension_semantics<parallel>], iteration_bounds = array<i64: 1, 1>, scalar_prefetch = 0 : i64, scratch_operands = 0 : i64, tpu.core_type = #tpu.core_type<tc>, window_params = [{transform_indices = @transform_0, window_bounds = array<i64: 16, 32>}, {transform_indices = @transform_1, window_bounds = array<i64: 32, 64>}, {transform_indices = @transform_2, window_bounds = array<i64: 1, 64>}, {transform_indices = @transform_3, window_bounds = array<i64: 16, 1>}, {transform_indices = @transform_4, window_bounds = array<i64: 16, 1>}, {transform_indices = @transform_5, window_bounds = array<i64: 16, 64>}]} {
    %c0 = arith.constant 0 : index
    %c0_0 = arith.constant 0 : index
    %0 = vector.load %arg2[%c0, %c0_0] : memref<16x32xbf16, #tpu.memory_space<vmem>>, vector<16x32xbf16>
    %c0_1 = arith.constant 0 : index
    %c0_2 = arith.constant 0 : index
    %1 = vector.load %arg3[%c0_1, %c0_2] : memref<32x64xbf16, #tpu.memory_space<vmem>>, vector<32x64xbf16>
    %cst = arith.constant dense<0.000000e+00> : vector<16x64xf32>
    %2 = tpu.matmul %0, %1, %cst {dimension_numbers = #tpu.dot_dimension_numbers<[1], [0], [0], [1], [0, 0, 1, 1], [], []>} : vector<16x32xbf16>, vector<32x64xbf16>, vector<16x64xf32> -> vector<16x64xf32>
    %c0_3 = arith.constant 0 : index
    %c0_4 = arith.constant 0 : index
    %3 = vector.load %arg4[%c0_3, %c0_4] : memref<1x64xf32, #tpu.memory_space<vmem>>, vector<1x64xf32>
    %4 = vector.broadcast %3 : vector<1x64xf32> to vector<16x64xf32>
    %5 = arith.addf %2, %4 : vector<16x64xf32>
    %c0_5 = arith.constant 0 : index
    %c0_6 = arith.constant 0 : index
    %6 = vector.load %arg5[%c0_5, %c0_6] : memref<16x1xf32, #tpu.memory_space<vmem>>, vector<16x1xf32>
    %7 = vector.broadcast %6 : vector<16x1xf32> to vector<16x64xf32>
    %8 = arith.subf %5, %7 : vector<16x64xf32>
    %9 = math.exp %8 : vector<16x64xf32>
    %c0_7 = arith.constant 0 : index
    %c0_8 = arith.constant 0 : index
    %10 = vector.load %arg6[%c0_7, %c0_8] : memref<16x1xf32, #tpu.memory_space<vmem>>, vector<16x1xf32>
    %11 = vector.broadcast %10 : vector<16x1xf32> to vector<16x64xf32>
    %12 = arith.divf %9, %11 : vector<16x64xf32>
    %c0_9 = arith.constant 0 : index
    %c0_10 = arith.constant 0 : index
    %13 = vector.load %arg7[%c0_9, %c0_10] : memref<16x64xf32, #tpu.memory_space<vmem>>, vector<16x64xf32>
    tpu.vector_store %arg7[%c0_9, %c0_10], %12 {strides = array<i32>} : memref<16x64xf32, #tpu.memory_space<vmem>>, vector<16x64xf32>,
    return
  }
  func.func @transform_0(%arg0: i32, %arg1: i32) -> (i32, i32) {
    %c0_i32 = arith.constant 0 : i32
    %c0_i32_0 = arith.constant 0 : i32
    return %arg0, %c0_i32 : i32, i32
  }
  func.func @transform_1(%arg0: i32, %arg1: i32) -> (i32, i32) {
    %c0_i32 = arith.constant 0 : i32
    %c0_i32_0 = arith.constant 0 : i32
    return %c0_i32, %arg1 : i32, i32
  }
  func.func @transform_2(%arg0: i32, %arg1: i32) -> (i32, i32) {
    %c0_i32 = arith.constant 0 : i32
    %c0_i32_0 = arith.constant 0 : i32
    return %c0_i32, %arg1 : i32, i32
  }
  func.func @transform_3(%arg0: i32, %arg1: i32) -> (i32, i32) {
    %c0_i32 = arith.constant 0 : i32
    %c0_i32_0 = arith.constant 0 : i32
    return %arg0, %c0_i32 : i32, i32
  }
  func.func @transform_4(%arg0: i32, %arg1: i32) -> (i32, i32) {
    %c0_i32 = arith.constant 0 : i32
    %c0_i32_0 = arith.constant 0 : i32
    return %arg0, %c0_i32 : i32, i32
  }
  func.func @transform_5(%arg0: i32, %arg1: i32) -> (i32, i32) {
    %c0_i32 = arith.constant 0 : i32
    return %arg0, %arg1 : i32, i32
  }
}

</mosaic_0001>

<llo_original>
// kernel: sft_forward.7
$region0: #{sft_forward.7}
  #allocation0 [shape = 'u32[]', space=smem, size = 0x4, offset = 0x4, fixed_abs, tag = 'smem constant byte address 0x4 - core index']
  #allocation1 [shape = 'u32[144,128]{1,0:T(1,128)}', space=vmem, size = 0x12000, scoped, tag = 'internal scratch']
  %s0 = inlined_call_operand.hbm [shape: bf16[2,8,32], index: 0, kind: input, shape index: {}]
  %s1 = inlined_call_operand.hbm [shape: f32[8,32], index: 1, kind: input, shape index: {}]
  %s2 = inlined_call_operand.hbm [shape: f32[1,32], index: 2, kind: input, shape index: {}]
  %s3 = inlined_call_operand.hbm [shape: f32[1,32], index: 3, kind: input, shape index: {}]
  %s4 = inlined_call_operand.hbm [shape: bf16[2,8,32], index: 4, kind: output, shape index: {}]
  %s5 = sld [smem:[#allocation0]]
  $region65: #{sft_forward.7} parent=0
    _
  %s7 = ssub.s32 1, %s5
  %s8 = scalar_select 0, %s7, %s5
  $region1: #{sft_forward.7} parent=0
    #allocation2 [shape = 'u8[4096]{0}', space=vmem, size = 0x1000, scoped, tag = 'input window, operand 0']
    #allocation3 [shape = 's32[2]{0}', space=sflag, size = 0x8, scoped, tag = 'scoped memory for sft_forward.7']
    #allocation4 [shape = 's32[2]{0}', space=sflag, size = 0x8, scoped, tag = 'scoped memory for sft_forward.7']
    #allocation5 [shape = 'u8[4096]{0}', space=vmem, size = 0x1000, scoped, tag = 'input window, operand 1, single buffered']
    #allocation6 [shape = 's32[1]{0}', space=sflag, size = 0x4, scoped, tag = 'scoped memory for sft_forward.7']
    #allocation7 [shape = 'u8[512]{0}', space=vmem, size = 0x400, scoped, tag = 'input window, operand 2, single buffered']
    #allocation8 [shape = 'u8[512]{0}', space=vmem, size = 0x400, scoped, tag = 'input window, operand 3, single buffered']
    #allocation9 [shape = 's32[1]{0}', space=sflag, size = 0x4, scoped, tag = 'scoped memory for sft_forward.7']
    #allocation10 [shape = 'u8[4096]{0}', space=vmem, size = 0x1000, scoped, tag = 'output window, operand 0']
    %9 = vsyncpa [#allocation3], 0
    %s10 = scalar_lea.sflag [#allocation3], 1
    %11 = vsyncpa %s10, 0
    %12 = vsyncpa [#allocation6], 0
    %13 = vsyncpa [#allocation9], 0
    %14 = vsyncpa [#allocation4], 0
    %s15 = scalar_lea.sflag [#allocation4], 1
    %16 = vsyncpa %s15, 0
    loop: start=0, step=1, limit=4
    $region2: #{sft_forward.7} parent=1 // loop_pre_header
      _
    $region3: #{sft_forward.7} parent=1 // loop_header
      %s18 = sphi 0, %s22
      %p19 = scmp.ge.s32.totalorder %s18, 4
      %s28 = sphi 0, %s30
      %s31 = sphi 0, %s28
      %s32 = sphi 0, %s31
      %s48 = sphi 0, %s32
      %s52 = sphi 0, %s52
      %s54 = sphi 0, %s52
      %s55 = sphi 0, %s54
      %s69 = sphi 0, %s55
      %s73 = sphi 0, %s73
      %s75 = sphi 0, %s73
      %s76 = sphi 0, %s75
      %s90 = sphi 0, %s76
      %s94 = sphi 0, %s94
      %s96 = sphi 0, %s94
      %s97 = sphi 0, %s96
      %s111 = sphi 0, %s97
      %s117 = sphi 0, %s119
      %s120 = sphi 0, %s117
      %s121 = sphi 0, %s120
      %s137 = sphi 0, %s121
    $region4: #{sft_forward.7} parent=1 // loop_header_branch
      %21 = sbr.rel (%p19) target = $region8
    $region5: #{sft_forward.7} parent=1 // loop_body
      %s23 = ssub.s32 %s18, 1
      %s24 = ssub.s32 %s18, 2
      %s25 = sadd.s32 %s18, 1
      %s26 = ssub.s32 %s18, %s25
      %p27 = scmp.eq.s32.totalorder %s26, 0
      %s29 = sadd.s32 %s28, 1
      %s30 = scalar_select %p27, %s28, %s29
      %p33 = pneg %p27
      %p34 = scmp.eq.s32.totalorder %s18, 1
      %p35 = por %p33, %p34
      %p36 = scmp.ne.s32.totalorder %s28, %s31
      %p37 = scmp.eq.s32.totalorder %s18, 0
      %p38 = por %p36, %p37
      %p39 = scmp.ne.s32.totalorder %s28, %s31
      %p40 = scmp.eq.s32.totalorder %s23, 1
      %p41 = por %p39, %p40
      %p42 = scmp.ne.s32.totalorder %s31, %s32
      %p43 = scmp.eq.s32.totalorder %s23, 0
      %p44 = por %p42, %p43
      %p45 = scmp.ne.s32.totalorder %s31, %s32
      %p46 = scmp.eq.s32.totalorder %s24, 1
      %p47 = por %p45, %p46
      %p49 = scmp.ne.s32.totalorder %s32, %s48
      %p50 = scmp.eq.s32.totalorder %s24, 0
      %p51 = por %p49, %p50
      %s53 = sadd.s32 %s52, 1
      %p56 = scmp.eq.s32.totalorder %s18, 1
      %p57 = scmp.ne.s32.totalorder %s52, %s54
      %p58 = scmp.eq.s32.totalorder %s18, 0
      %p59 = por %p57, %p58
      %p60 = scmp.ne.s32.totalorder %s52, %s54
      %p61 = scmp.eq.s32.totalorder %s23, 1
      %p62 = por %p60, %p61
      %p63 = scmp.ne.s32.totalorder %s54, %s55
      %p64 = scmp.eq.s32.totalorder %s23, 0
      %p65 = por %p63, %p64
      %p66 = scmp.ne.s32.totalorder %s54, %s55
      %p67 = scmp.eq.s32.totalorder %s24, 1
      %p68 = por %p66, %p67
      %p70 = scmp.ne.s32.totalorder %s55, %s69
      %p71 = scmp.eq.s32.totalorder %s24, 0
      %p72 = por %p70, %p71
      %s74 = sadd.s32 %s73, 1
      %p77 = scmp.eq.s32.totalorder %s18, 1
      %p78 = scmp.ne.s32.totalorder %s73, %s75
      %p79 = scmp.eq.s32.totalorder %s18, 0
      %p80 = por %p78, %p79
      %p81 = scmp.ne.s32.totalorder %s73, %s75
      %p82 = scmp.eq.s32.totalorder %s23, 1
      %p83 = por %p81, %p82
      %p84 = scmp.ne.s32.totalorder %s75, %s76
      %p85 = scmp.eq.s32.totalorder %s23, 0
      %p86 = por %p84, %p85
      %p87 = scmp.ne.s32.totalorder %s75, %s76
      %p88 = scmp.eq.s32.totalorder %s24, 1
      %p89 = por %p87, %p88
      %p91 = scmp.ne.s32.totalorder %s76, %s90
      %p92 = scmp.eq.s32.totalorder %s24, 0
      %p93 = por %p91, %p92
      %s95 = sadd.s32 %s94, 1
      %p98 = scmp.eq.s32.totalorder %s18, 1
      %p99 = scmp.ne.s32.totalorder %s94, %s96
      %p100 = scmp.eq.s32.totalorder %s18, 0
      %p101 = por %p99, %p100
      %p102 = scmp.ne.s32.totalorder %s94, %s96
      %p103 = scmp.eq.s32.totalorder %s23, 1
      %p104 = por %p102, %p103
      %p105 = scmp.ne.s32.totalorder %s96, %s97
      %p106 = scmp.eq.s32.totalorder %s23, 0
      %p107 = por %p105, %p106
      %p108 = scmp.ne.s32.totalorder %s96, %s97
      %p109 = scmp.eq.s32.totalorder %s24, 1
      %p110 = por %p108, %p109
      %p112 = scmp.ne.s32.totalorder %s97, %s111
      %p113 = scmp.eq.s32.totalorder %s24, 0
      %p114 = por %p112, %p113
      %s115 = ssub.s32 %s18, %s25
      %p116 = scmp.eq.s32.totalorder %s115, 0
      %s118 = sadd.s32 %s117, 1
      %s119 = scalar_select %p116, %s117, %s118
      %p122 = pneg %p116
      %p123 = scmp.eq.s32.totalorder %s18, 1
      %p124 = por %p122, %p123
      %p125 = scmp.ne.s32.totalorder %s117, %s120
      %p126 = scmp.eq.s32.totalorder %s18, 0
      %p127 = por %p125, %p126
      %p128 = scmp.ne.s32.totalorder %s117, %s120
      %p129 = scmp.eq.s32.totalorder %s23, 1
      %p130 = por %p128, %p129
      %p131 = scmp.ne.s32.totalorder %s120, %s121
      %p132 = scmp.eq.s32.totalorder %s23, 0
      %p133 = por %p131, %p132
      %p134 = scmp.ne.s32.totalorder %s120, %s121
      %p135 = scmp.eq.s32.totalorder %s24, 1
      %p136 = por %p134, %p135
      %p138 = scmp.ne.s32.totalorder %s121, %s137
      %p139 = scmp.eq.s32.totalorder %s24, 0
      %p140 = por %p138, %p139
      %p141 = scmp.le.s32.totalorder 1, %s18
      %p142 = scmp.lt.s32.totalorder %s18, 3
      %p143 = pnand %p141, %p142
      %p144 = pneg %p143
      // Predicated region
      $region9: #{sft_forward.7} parent=5 // pred_check
        _
      $region10: #{sft_forward.7} parent=5 // pred_check_branch
        %146 = sbr.rel (%p143) target = $region12
      $region11: #{sft_forward.7} parent=5 // pred_region
        %s147 = ssub.s32 %s18, 1
        // Predicated region
        $region13: #{sft_forward.7} parent=11 // pred_check
          %p148 = pneg %p65
        $region14: #{sft_forward.7} parent=11 // pred_check_branch
          %150 = sbr.rel (%p148) target = $region16
        $region15: #{sft_forward.7} parent=11 // pred_region
          %s152 = ssub.s32 128, 128
          %153 = vsyncadd [#allocation6], %s152
          %s155 = sshll.u32 [#allocation5], 4
          %s156 = int_to_ptr.vmem [resolvable:$true] %s155
          %158 = dma.hbm_to_vmem [thread:$0]  %s1, 128, %s156, [#allocation6]
        $region16: #{sft_forward.7} parent=11 // pred_fallthru
          _
        // Predicated region
        $region17: #{sft_forward.7} parent=11 // pred_check
          %p159 = pneg %p86
        $region18: #{sft_forward.7} parent=11 // pred_check_branch
          %161 = sbr.rel (%p159) target = $region20
        $region19: #{sft_forward.7} parent=11 // pred_region
          %s163 = ssub.s32 16, 16
          %164 = vsyncadd [#allocation6], %s163
          %s166 = sshll.u32 [#allocation7], 4
          %s167 = int_to_ptr.vmem [resolvable:$true] %s166
          %169 = dma.hbm_to_vmem [thread:$0]  %s2, 16, %s167, [#allocation6]
        $region20: #{sft_forward.7} parent=11 // pred_fallthru
          _
        // Predicated region
        $region21: #{sft_forward.7} parent=11 // pred_check
          %p170 = pneg %p107
        $region22: #{sft_forward.7} parent=11 // pred_check_branch
          %172 = sbr.rel (%p170) target = $region24
        $region23: #{sft_forward.7} parent=11 // pred_region
          %s174 = ssub.s32 16, 16
          %175 = vsyncadd [#allocation9], %s174
          %s177 = sshll.u32 [#allocation8], 4
          %s178 = int_to_ptr.vmem [resolvable:$true] %s177
          %180 = dma.hbm_to_vmem [thread:$0]  %s3, 16, %s178, [#allocation9]
        $region24: #{sft_forward.7} parent=11 // pred_fallthru
          _
      $region12: #{sft_forward.7} parent=5 // pred_fallthru
        _
      %p181 = scmp.lt.s32.totalorder %s18, 2
      // Predicated region
      $region25: #{sft_forward.7} parent=5 // pred_check
        %p182 = pneg %p181
      $region26: #{sft_forward.7} parent=5 // pred_check_branch
        %184 = sbr.rel (%p182) target = $region28
      $region27: #{sft_forward.7} parent=5 // pred_region
        // Predicated region
        $region29: #{sft_forward.7} parent=27 // pred_check
          %p185 = pneg %p38
        $region30: #{sft_forward.7} parent=27 // pred_check_branch
          %187 = sbr.rel (%p185) target = $region32
        $region31: #{sft_forward.7} parent=27 // pred_region
          %s188 = sand.u32 %s28, 1
          %s189 = scalar_lea.sflag [#allocation3], %s188
          %s190 = sand.u32 %s28, 1
          %s191 = smul.addr %s190, 4
          %s192 = scalar_lea.vmem [#allocation2], %s191
          %s194 = ssub.s32 64, 64
          %195 = vsyncadd %s189, %s194
          %s196 = smul.addr %s18, 64
          %s197 = scalar_lea.hbm %s0, %s196
          %s199 = sshll.u32 %s192, 4
          %s200 = int_to_ptr.vmem [resolvable:$true] %s199
          %202 = dma.hbm_to_vmem [thread:$0]  %s197, 64, %s200, %s189
        $region32: #{sft_forward.7} parent=27 // pred_fallthru
          _
      $region28: #{sft_forward.7} parent=5 // pred_fallthru
        _
      %p203 = scmp.le.s32.totalorder 1, %s18
      %p204 = scmp.lt.s32.totalorder %s18, 3
      %p205 = pnand %p203, %p204
      %p206 = pneg %p205
      // Predicated region
      $region33: #{sft_forward.7} parent=5 // pred_check
        _
      $region34: #{sft_forward.7} parent=5 // pred_check_branch
        %208 = sbr.rel (%p205) target = $region36
      $region35: #{sft_forward.7} parent=5 // pred_region
        %s209 = ssub.s32 %s18, 1
        %s210 = sand.u32 %s31, 1
        %s211 = scalar_lea.sflag [#allocation3], %s210
        %s212 = sand.u32 %s31, 1
        %s213 = smul.addr %s212, 4
        %s214 = scalar_lea.vmem [#allocation2], %s213
        // Predicated region
        $region37: #{sft_forward.7} parent=35 // pred_check
          %p215 = pneg %p44
        $region38: #{sft_forward.7} parent=35 // pred_check_branch
          %217 = sbr.rel (%p215) target = $region40
        $region39: #{sft_forward.7} parent=35 // pred_region
          %218 = dma.done %s211, 64
        $region40: #{sft_forward.7} parent=35 // pred_fallthru
          _
        // Predicated region
        $region41: #{sft_forward.7} parent=35 // pred_check
          %p219 = pneg %p65
        $region42: #{sft_forward.7} parent=35 // pred_check_branch
          %221 = sbr.rel (%p219) target = $region44
        $region43: #{sft_forward.7} parent=35 // pred_region
          %222 = dma.done [#allocation6], 128
        $region44: #{sft_forward.7} parent=35 // pred_fallthru
          _
        // Predicated region
        $region45: #{sft_forward.7} parent=35 // pred_check
          %p223 = pneg %p86
        $region46: #{sft_forward.7} parent=35 // pred_check_branch
          %225 = sbr.rel (%p223) target = $region48
        $region47: #{sft_forward.7} parent=35 // pred_region
          %226 = dma.done [#allocation6], 16
        $region48: #{sft_forward.7} parent=35 // pred_fallthru
          _
        // Predicated region
        $region49: #{sft_forward.7} parent=35 // pred_check
          %p227 = pneg %p107
        $region50: #{sft_forward.7} parent=35 // pred_check_branch
          %229 = sbr.rel (%p227) target = $region52
        $region51: #{sft_forward.7} parent=35 // pred_region
          %230 = dma.done [#allocation9], 16
        $region52: #{sft_forward.7} parent=35 // pred_fallthru
          _
        %s231 = sand.u32 %s31, 1
        %s232 = scalar_lea.sflag [#allocation3], %s231
        %s233 = sand.u32 %s31, 1
        %s234 = smul.addr %s233, 4
        %s235 = scalar_lea.vmem [#allocation2], %s234
        %p236 = pneg %p44
        %p237 = pneg %p41
        %p238 = pneg %p65
        %p239 = pneg %p62
        %p240 = pneg %p86
        %p241 = pneg %p83
        %p242 = pneg %p107
        %p243 = pneg %p104
        %p244 = pneg %p133
        %p245 = pneg %p130
        %s246 = sand.u32 %s120, 1
        %s247 = scalar_lea.sflag [#allocation4], %s246
        %s248 = sand.u32 %s120, 1
        %s249 = smul.addr %s248, 4
        %s250 = scalar_lea.vmem [#allocation10], %s249
        %v251 = vld [vmem:[%s214] sm:$0xf]
        %v252 = vunpack.c.l.bf16 %v251
        %v253 = vld [vmem:[#allocation5] sm:$0xff]
        %v254 = vadd.f32 %v252, %v253
        %v255 = vld [vmem:[#allocation7] sm:$0x1]
        %v256 = vld [vmem:[#allocation8] sm:$0x1]
        %vm257 = vcmask 261120
        %v258 = vsel %vm257, %v254, 0.0
        %259 = vadd.xlane.f32.xlu0 %v258
        %v260 = vpop.xlane.xlu0 %259
        %v261 = vrcp.pop 32.0
        %v262 = vmul.f32 %v260, %v261
        %v263 = vsub.f32 %v254, %v262
        %v264 = vmul.f32 %v263, %v263
        %v265 = vsel %vm257, %v264, 0.0
        %266 = vadd.xlane.f32.xlu0 %v265
        %v267 = vpop.xlane.xlu0 %266
        %v268 = vmul.f32 %v267, %v261
        %v269 = vadd.f32 %v268, 1e-12
        %v270 = vrsqrt.pop %v269
        %v271 = vmul.f32 %v263, %v270
        %v273 = vlaneseq
        %v274 = vshrl.u32 %v273, 7
        %v275 = vsub.s32 0, %v274
        %v276 = vrot.slane %v255, %v275
        %v278 = vmul.f32 %v271, %v276
        %v280 = vlaneseq
        %v281 = vshrl.u32 %v280, 7
        %v282 = vsub.s32 0, %v281
        %v283 = vrot.slane %v256, %v282
        %v285 = vadd.f32 %v278, %v283
        %v286 = vpack.c.bf16 %v285, %v285
        %vm287 = vcmask 257024
        %288 = vst.msk [vmem:[%s250] sm:$0xf] %vm287, %v286
        %s289 = sand.u32 %s120, 1
        %s290 = scalar_lea.sflag [#allocation4], %s289
        %s291 = sand.u32 %s120, 1
        %s292 = smul.addr %s291, 4
        %s293 = scalar_lea.vmem [#allocation10], %s292
        // Predicated region
        $region53: #{sft_forward.7} parent=35 // pred_check
          %p294 = pneg %p130
        $region54: #{sft_forward.7} parent=35 // pred_check_branch
          %296 = sbr.rel (%p294) target = $region56
        $region55: #{sft_forward.7} parent=35 // pred_region
          %s298 = ssub.s32 64, 64
          %299 = vsyncadd %s290, %s298
          %s300 = smul.addr %s23, 64
          %s301 = scalar_lea.hbm %s4, %s300
          %s303 = sshll.u32 %s293, 4
          %s304 = int_to_ptr.vmem [resolvable:$true] %s303
          %306 = dma.vmem_to_hbm [thread:$0]  %s304, 64, %s301, %s290
        $region56: #{sft_forward.7} parent=35 // pred_fallthru
          _
      $region36: #{sft_forward.7} parent=5 // pred_fallthru
        _
      %p307 = scmp.le.s32.totalorder 2, %s18
      // Predicated region
      $region57: #{sft_forward.7} parent=5 // pred_check
        %p308 = pneg %p307
      $region58: #{sft_forward.7} parent=5 // pred_check_branch
        %310 = sbr.rel (%p308) target = $region60
      $region59: #{sft_forward.7} parent=5 // pred_region
        %s311 = ssub.s32 %s18, 2
        // Predicated region
        $region61: #{sft_forward.7} parent=59 // pred_check
          %p312 = pneg %p136
        $region62: #{sft_forward.7} parent=59 // pred_check_branch
          %314 = sbr.rel (%p312) target = $region64
        $region63: #{sft_forward.7} parent=59 // pred_region
          %s315 = sand.u32 %s121, 1
          %s316 = scalar_lea.sflag [#allocation4], %s315
          %s317 = sand.u32 %s121, 1
          %s318 = smul.addr %s317, 4
          %s319 = scalar_lea.vmem [#allocation10], %s318
          %320 = dma.done %s316, 64
        $region64: #{sft_forward.7} parent=59 // pred_fallthru
          _
      $region60: #{sft_forward.7} parent=5 // pred_fallthru
        _
    $region6: #{sft_forward.7} parent=1 // loop_footer
      %s22 = sadd.s32 1, %s18
    $region7: #{sft_forward.7} parent=1 // loop_footer_branch
      %17 = sbr.rel target = $region3
    $region8: #{sft_forward.7} parent=1 // loop_exit
      _
    %321 = vsyncpa [#allocation3], 1
    %s322 = scalar_lea.sflag [#allocation3], 1
    %323 = vsyncpa %s322, 1
    %324 = vsyncpa [#allocation6], 1
    %325 = vsyncpa [#allocation9], 1
    %326 = vsyncpa [#allocation4], 1
    %s327 = scalar_lea.sflag [#allocation4], 1
    %328 = vsyncpa %s327, 1

// kernel: sft_forward.12
$region0: #{sft_forward.12}
  #allocation0 [shape = 'u32[]', space=smem, size = 0x4, offset = 0x4, fixed_abs, tag = 'smem constant byte address 0x4 - core index']
  #allocation1 [shape = 'u32[144,128]{1,0:T(1,128)}', space=vmem, size = 0x12000, scoped, tag = 'internal scratch']
  #allocation2 [shape = 'f32[16,1]{1,0:T(8,128)}', space=vmem, size = 0x2000, scoped, tag = 'scratch operand']
  #allocation3 [shape = 'f32[16,1]{1,0:T(8,128)}', space=vmem, size = 0x2000, scoped, tag = 'scratch operand']
  %s0 = inlined_call_operand.hbm [shape: bf16[16,32], index: 0, kind: input, shape index: {}]
  %s1 = inlined_call_operand.hbm [shape: bf16[32,64], index: 1, kind: input, shape index: {}]
  %s2 = inlined_call_operand.hbm [shape: f32[1,64], index: 2, kind: input, shape index: {}]
  %s3 = inlined_call_operand.hbm [shape: f32[16,1], index: 3, kind: output, shape index: {0}]
  %s4 = inlined_call_operand.hbm [shape: f32[16,1], index: 4, kind: output, shape index: {1}]
  %5 = xla_tuple %s3, %s4
  %s6 = sld [smem:[#allocation0]]
  $region50: #{sft_forward.12} parent=0
    _
  %s8 = ssub.s32 1, %s6
  %s9 = scalar_select 0, %s8, %s6
  $region1: #{sft_forward.12} parent=0
    #allocation4 [shape = 'u8[4096]{0}', space=vmem, size = 0x1000, scoped, tag = 'input window, operand 0, single buffered']
    #allocation5 [shape = 's32[1]{0}', space=sflag, size = 0x4, scoped, tag = 'scoped memory for sft_forward.12']
    #allocation6 [shape = 's32[1]{0}', space=sflag, size = 0x4, scoped, tag = 'scoped memory for sft_forward.12']
    #allocation7 [shape = 'u8[8192]{0}', space=vmem, size = 0x2000, scoped, tag = 'input window, operand 1, single buffered']
    #allocation8 [shape = 's32[1]{0}', space=sflag, size = 0x4, scoped, tag = 'scoped memory for sft_forward.12']
    #allocation9 [shape = 'u8[512]{0}', space=vmem, size = 0x400, scoped, tag = 'input window, operand 2, single buffered']
    #allocation10 [shape = 'u8[8192]{0}', space=vmem, size = 0x2000, scoped, tag = 'output window, operand 0, single buffered']
    #allocation11 [shape = 'u8[8192]{0}', space=vmem, size = 0x2000, scoped, tag = 'output window, operand 1, single buffered']
    #allocation12 [shape = 's32[1]{0}', space=sflag, size = 0x4, scoped, tag = 'scoped memory for sft_forward.12']
    %10 = vsyncpa [#allocation5], 0
    %11 = vsyncpa [#allocation8], 0
    %12 = vsyncpa [#allocation6], 0
    %13 = vsyncpa [#allocation12], 0
    // Predicated region
    $region2: #{sft_forward.12} parent=1 // pred_check
      _
    $region3: #{sft_forward.12} parent=1 // pred_check_branch
      %15 = sbr.rel (0) target = $region5
    $region4: #{sft_forward.12} parent=1 // pred_region
      %s17 = ssub.s32 128, 128
      %18 = vsyncadd [#allocation5], %s17
      %s19 = sshll.u32 [#allocation4], 4
      %s20 = int_to_ptr.vmem [resolvable:$true] %s19
      %25 = dma.hbm_to_vmem [thread:$0]  %s0, 128, %s20, [#allocation5], 64, 64, 4
    $region5: #{sft_forward.12} parent=1 // pred_fallthru
      _
    // Predicated region
    $region6: #{sft_forward.12} parent=1 // pred_check
      _
    $region7: #{sft_forward.12} parent=1 // pred_check_branch
      %27 = sbr.rel (0) target = $region9
    $region8: #{sft_forward.12} parent=1 // pred_region
      %s29 = ssub.s32 256, 256
      %30 = vsyncadd [#allocation8], %s29
      %s31 = sshll.u32 [#allocation7], 4
      %s32 = int_to_ptr.vmem [resolvable:$true] %s31
      %37 = dma.hbm_to_vmem [thread:$0]  %s1, 256, %s32, [#allocation8], 64, 64, 4
    $region9: #{sft_forward.12} parent=1 // pred_fallthru
      _
    // Predicated region
    $region10: #{sft_forward.12} parent=1 // pred_check
      _
    $region11: #{sft_forward.12} parent=1 // pred_check_branch
      %39 = sbr.rel (0) target = $region13
    $region12: #{sft_forward.12} parent=1 // pred_region
      %s41 = ssub.s32 16, 16
      %42 = vsyncadd [#allocation8], %s41
      %s44 = sshll.u32 [#allocation9], 4
      %s45 = int_to_ptr.vmem [resolvable:$true] %s44
      %47 = dma.hbm_to_vmem [thread:$0]  %s2, 16, %s45, [#allocation8]
    $region13: #{sft_forward.12} parent=1 // pred_fallthru
      _
    // Predicated region
    $region14: #{sft_forward.12} parent=1 // pred_check
      _
    $region15: #{sft_forward.12} parent=1 // pred_check_branch
      %49 = sbr.rel (0) target = $region17
    $region16: #{sft_forward.12} parent=1 // pred_region
      %50 = dma.done [#allocation5], 128
    $region17: #{sft_forward.12} parent=1 // pred_fallthru
      _
    // Predicated region
    $region18: #{sft_forward.12} parent=1 // pred_check
      _
    $region19: #{sft_forward.12} parent=1 // pred_check_branch
      %52 = sbr.rel (0) target = $region21
    $region20: #{sft_forward.12} parent=1 // pred_region
      %53 = dma.done [#allocation8], 256
    $region21: #{sft_forward.12} parent=1 // pred_fallthru
      _
    // Predicated region
    $region22: #{sft_forward.12} parent=1 // pred_check
      _
    $region23: #{sft_forward.12} parent=1 // pred_check_branch
      %55 = sbr.rel (0) target = $region25
    $region24: #{sft_forward.12} parent=1 // pred_region
      %56 = dma.done [#allocation8], 16
    $region25: #{sft_forward.12} parent=1 // pred_fallthru
      _
    %p58 = scmp.eq.s32.totalorder 0, 0
    // Predicated region
    $region26: #{sft_forward.12} parent=1 // pred_check
      %p59 = pneg %p58
    $region27: #{sft_forward.12} parent=1 // pred_check_branch
      %61 = sbr.rel (%p59) target = $region29
    $region28: #{sft_forward.12} parent=1 // pred_region
      %vm62 = vcmask 7168
      %63 = vst.msk [vmem:[#allocation2] sm:$0xff] %vm62, -inf
      %64 = vst.msk [vmem:[#allocation2 + $0x8] sm:$0xff] %vm62, -inf
      %65 = vst.msk [vmem:[#allocation3] sm:$0xff] %vm62, 0.0
      %66 = vst.msk [vmem:[#allocation3 + $0x8] sm:$0xff] %vm62, 0.0
    $region29: #{sft_forward.12} parent=1 // pred_fallthru
      _
    %v67 = vld [vmem:[#allocation4] sm:$0xf]
    %v68 = vld [vmem:[#allocation4 + $0x4] sm:$0xf]
    %v69 = vld [vmem:[#allocation7] sm:$0xf]
    %v70 = vld [vmem:[#allocation7 + $0x4] sm:$0xf]
    %v71 = vld [vmem:[#allocation7 + $0x8] sm:$0xf]
    %v72 = vld [vmem:[#allocation7 + $0xc] sm:$0xf]
    %v73 = vld [vmem:[#allocation9] sm:$0x1]
    %v75 = vlaneseq
    %v76 = vshrl.u32 %v75, 7
    %v77 = vsub.s32 0, %v76
    %v78 = vrot.slane %v73, %v77
    %v82 = vunpack.c.l.b16 %v67
    %v83 = vunpack.c.l.b16 %v68
    %v84 = vpack.c.b16 %v83, %v82
    %v89 = vunpack.c.l.b16 %v69
    %v90 = vunpack.c.l.b16 %v70
    %v91 = vunpack.c.l.b16 %v71
    %v92 = vunpack.c.l.b16 %v72
    %v93 = vpack.c.b16 %v90, %v89
    %v94 = vpack.c.b16 %v92, %v91
    %vm97 = vcmask 261120
    %v99 = vsel %vm97, %v84, 0
    %101 = vmatprep.subr.bf16.mxu0 0
    %102 = vmatpush1.bf16.msra.mxu0 %v93
    %103 = vmatprep.subr.bf16.mxu0 0
    %104 = vmatpush1.bf16.msra.mxu0 %v94
    %105 = vmatprep.subr.bf16.mxu0 0
    %106 = vmatpush1.bf16.msra.mxu0 0
    %107 = vmatprep.subr.bf16.mxu0 0
    %108 = vmatpush1.bf16.msra.mxu0 0
    %109 = vmatprep.subr.bf16.mxu0 0
    %110 = vmatpush1.bf16.msra.mxu0 0
    %111 = vmatprep.subr.bf16.mxu0 0
    %112 = vmatpush1.bf16.msra.mxu0 0
    %113 = vmatprep.subr.bf16.mxu0 0
    %114 = vmatpush1.bf16.msra.mxu0 0
    %115 = vmatprep.subr.bf16.mxu0 0
    %116 = vmatpush1.bf16.msra.mxu0 0
    %117 = vmatprep.subr.bf16.mxu0 0
    %118 = vmatpush1.bf16.msra.mxu0 0
    %119 = vmatprep.subr.bf16.mxu0 0
    %120 = vmatpush1.bf16.msra.mxu0 0
    %121 = vmatprep.subr.bf16.mxu0 0
    %122 = vmatpush1.bf16.msra.mxu0 0
    %123 = vmatprep.subr.bf16.mxu0 0
    %124 = vmatpush1.bf16.msra.mxu0 0
    %125 = vmatprep.subr.bf16.mxu0 0
    %126 = vmatpush1.bf16.msra.mxu0 0
    %127 = vmatprep.subr.bf16.mxu0 0
    %128 = vmatpush1.bf16.msra.mxu0 0
    %129 = vmatprep.subr.bf16.mxu0 0
    %130 = vmatpush1.bf16.msra.mxu0 0
    %131 = vmatprep.subr.bf16.mxu0 0
    %132 = vmatpush1.bf16.msra.mxu0 0
    %133 = vmatprep.mubr.bf16.mxu0 0
    %134 = vmatmul.mubr.bf16.gmra.mrb[0].mxu0 %v99
    %v135 = vpop.f32.mrb[0].mxu0
    %v136 = vadd.f32 %v78, %v135
    %v137 = vpop.f32.mrb[0].mxu0
    %v138 = vpop.f32.mrb[0].mxu0
    %v139 = vadd.f32 %v78, %v138
    %v140 = vpop.f32.mrb[0].mxu0
    %141 = vdwg.mxu0
    %v142 = vld [vmem:[#allocation2] sm:$0xff]
    %v143 = vld [vmem:[#allocation2 + $0x8] sm:$0xff]
    %vm144 = vcmask 523264
    %v145 = vsel %vm144, %v136, -inf
    %146 = vmax.xlane.f32.xlu0 %v145
    %v147 = vpop.xlane.xlu0 %146
    %v148 = vsel %vm144, %v139, -inf
    %149 = vmax.xlane.f32.xlu0 %v148
    %v150 = vpop.xlane.xlu0 %149
    %v151 = vmax.f32 %v142, %v147
    %v152 = vmax.f32 %v143, %v150
    %v153 = vld [vmem:[#allocation3] sm:$0xff]
    %v154 = vld [vmem:[#allocation3 + $0x8] sm:$0xff]
    %v155 = vsub.f32 %v142, %v151
    %v156 = vsub.f32 %v143, %v152
    %v157 = vmul.f32 %v155, 1.442695
    %v158 = vpow.pop %v157
    %v159 = vmul.f32 %v156, 1.442695
    %v160 = vpow.pop %v159
    %v161 = vmul.f32 %v153, %v158
    %v162 = vmul.f32 %v154, %v160
    %164 = vset.pattern.permute.xlu0 0
    %165 = vperm.xlu0 %164, %v151
    %v166 = vpop.permute.xlu0 %165
    %169 = vset.pattern.permute.xlu0 0
    %170 = vperm.xlu0 %169, %v152
    %v171 = vpop.permute.xlu0 %170
    %v173 = vsub.f32 %v136, %v166
    %v174 = vsub.f32 %v139, %v171
    %v175 = vmul.f32 %v173, 1.442695
    %v176 = vpow.pop %v175
    %v177 = vmul.f32 %v174, 1.442695
    %v178 = vpow.pop %v177
    %v179 = vsel %vm144, %v176, 0.0
    %180 = vadd.xlane.f32.xlu0 %v179
    %v181 = vpop.xlane.xlu0 %180
    %v182 = vsel %vm144, %v178, 0.0
    %183 = vadd.xlane.f32.xlu0 %v182
    %v184 = vpop.xlane.xlu0 %183
    %v185 = vadd.f32 %v161, %v181
    %v186 = vadd.f32 %v162, %v184
    %vm187 = vcmask 7168
    %188 = vst.msk [vmem:[#allocation3] sm:$0xff] %vm187, %v185
    %189 = vst.msk [vmem:[#allocation3 + $0x8] sm:$0xff] %vm187, %v186
    %190 = vst.msk [vmem:[#allocation2] sm:$0xff] %vm187, %v151
    %191 = vst.msk [vmem:[#allocation2 + $0x8] sm:$0xff] %vm187, %v152
    // Predicated region
    $region30: #{sft_forward.12} parent=1 // pred_check
      %p192 = pneg %p58
    $region31: #{sft_forward.12} parent=1 // pred_check_branch
      %194 = sbr.rel (%p192) target = $region33
    $region32: #{sft_forward.12} parent=1 // pred_region
      %v195 = vld [vmem:[#allocation2] sm:$0xff]
      %v196 = vld [vmem:[#allocation2 + $0x8] sm:$0xff]
      %197 = vst.msk [vmem:[#allocation10] sm:$0xff] %vm187, %v195
      %198 = vst.msk [vmem:[#allocation10 + $0x8] sm:$0xff] %vm187, %v196
      %v199 = vld [vmem:[#allocation3] sm:$0xff]
      %v200 = vld [vmem:[#allocation3 + $0x8] sm:$0xff]
      %201 = vst.msk [vmem:[#allocation11] sm:$0xff] %vm187, %v199
      %202 = vst.msk [vmem:[#allocation11 + $0x8] sm:$0xff] %vm187, %v200
    $region33: #{sft_forward.12} parent=1 // pred_fallthru
      _
    // Predicated region
    $region34: #{sft_forward.12} parent=1 // pred_check
      _
    $region35: #{sft_forward.12} parent=1 // pred_check_branch
      %204 = sbr.rel (0) target = $region37
    $region36: #{sft_forward.12} parent=1 // pred_region
      %s206 = ssub.s32 256, 256
      %207 = vsyncadd [#allocation6], %s206
      %s208 = sshll.u32 [#allocation10], 4
      %s209 = int_to_ptr.vmem [resolvable:$true] %s208
      %214 = dma.vmem_to_hbm [thread:$0]  %s209, 256, %s3, [#allocation6], 128, 128, 8
    $region37: #{sft_forward.12} parent=1 // pred_fallthru
      _
    // Predicated region
    $region38: #{sft_forward.12} parent=1 // pred_check
      _
    $region39: #{sft_forward.12} parent=1 // pred_check_branch
      %216 = sbr.rel (0) target = $region41
    $region40: #{sft_forward.12} parent=1 // pred_region
      %s218 = ssub.s32 256, 256
      %219 = vsyncadd [#allocation12], %s218
      %s220 = sshll.u32 [#allocation11], 4
      %s221 = int_to_ptr.vmem [resolvable:$true] %s220
      %226 = dma.vmem_to_hbm [thread:$0]  %s221, 256, %s4, [#allocation12], 128, 128, 8
    $region41: #{sft_forward.12} parent=1 // pred_fallthru
      _
    // Predicated region
    $region42: #{sft_forward.12} parent=1 // pred_check
      _
    $region43: #{sft_forward.12} parent=1 // pred_check_branch
      %228 = sbr.rel (0) target = $region45
    $region44: #{sft_forward.12} parent=1 // pred_region
      %229 = dma.done [#allocation6], 256
    $region45: #{sft_forward.12} parent=1 // pred_fallthru
      _
    // Predicated region
    $region46: #{sft_forward.12} parent=1 // pred_check
      _
    $region47: #{sft_forward.12} parent=1 // pred_check_branch
      %231 = sbr.rel (0) target = $region49
    $region48: #{sft_forward.12} parent=1 // pred_region
      %232 = dma.done [#allocation12], 256
    $region49: #{sft_forward.12} parent=1 // pred_fallthru
      _
    %233 = vsyncpa [#allocation5], 1
    %234 = vsyncpa [#allocation8], 1
    %235 = vsyncpa [#allocation6], 1
    %236 = vsyncpa [#allocation12], 1

// kernel: sft_forward.9
$region0: #{sft_forward.9}
  #allocation0 [shape = 'u32[]', space=smem, size = 0x4, offset = 0x4, fixed_abs, tag = 'smem constant byte address 0x4 - core index']
  #allocation1 [shape = 'u32[144,128]{1,0:T(1,128)}', space=vmem, size = 0x12000, scoped, tag = 'internal scratch']
  %s0 = inlined_call_operand.hbm [shape: bf16[16,32], index: 0, kind: input, shape index: {}]
  %s1 = inlined_call_operand.hbm [shape: bf16[32,64], index: 1, kind: input, shape index: {}]
  %s2 = inlined_call_operand.hbm [shape: f32[1,64], index: 2, kind: input, shape index: {}]
  %s3 = inlined_call_operand.hbm [shape: bf16[64,32], index: 3, kind: input, shape index: {}]
  %s4 = inlined_call_operand.hbm [shape: f32[1,32], index: 4, kind: input, shape index: {}]
  %s5 = inlined_call_operand.hbm [shape: f32[1,32], index: 5, kind: input, shape index: {}]
  %s6 = inlined_call_operand.hbm [shape: f32[1,32], index: 6, kind: input, shape index: {}]
  %s7 = inlined_call_operand.hbm [shape: bf16[16,32], index: 7, kind: output, shape index: {}]
  %s8 = sld [smem:[#allocation0]]
  $region66: #{sft_forward.9} parent=0
    _
  %s10 = ssub.s32 1, %s8
  %s11 = scalar_select 0, %s10, %s8
  $region1: #{sft_forward.9} parent=0
    #allocation2 [shape = 'u8[4096]{0}', space=vmem, size = 0x1000, scoped, tag = 'input window, operand 0, single buffered']
    #allocation3 [shape = 's32[1]{0}', space=sflag, size = 0x4, scoped, tag = 'scoped memory for sft_forward.9']
    #allocation4 [shape = 's32[1]{0}', space=sflag, size = 0x4, scoped, tag = 'scoped memory for sft_forward.9']
    #allocation5 [shape = 'u8[8192]{0}', space=vmem, size = 0x2000, scoped, tag = 'input window, operand 1, single buffered']
    #allocation6 [shape = 's32[1]{0}', space=sflag, size = 0x4, scoped, tag = 'scoped memory for sft_forward.9']
    #allocation7 [shape = 'u8[512]{0}', space=vmem, size = 0x400, scoped, tag = 'input window, operand 2, single buffered']
    #allocation8 [shape = 'u8[16384]{0}', space=vmem, size = 0x4000, scoped, tag = 'input window, operand 3, single buffered']
    #allocation9 [shape = 's32[1]{0}', space=sflag, size = 0x4, scoped, tag = 'scoped memory for sft_forward.9']
    #allocation10 [shape = 'u8[512]{0}', space=vmem, size = 0x400, scoped, tag = 'input window, operand 4, single buffered']
    #allocation11 [shape = 'u8[512]{0}', space=vmem, size = 0x400, scoped, tag = 'input window, operand 5, single buffered']
    #allocation12 [shape = 's32[1]{0}', space=sflag, size = 0x4, scoped, tag = 'scoped memory for sft_forward.9']
    #allocation13 [shape = 'u8[512]{0}', space=vmem, size = 0x400, scoped, tag = 'input window, operand 6, single buffered']
    #allocation14 [shape = 'u8[4096]{0}', space=vmem, size = 0x1000, scoped, tag = 'output window, operand 0, single buffered']
    %12 = vsyncpa [#allocation3], 0
    %13 = vsyncpa [#allocation6], 0
    %14 = vsyncpa [#allocation9], 0
    %15 = vsyncpa [#allocation12], 0
    %16 = vsyncpa [#allocation4], 0
    // Predicated region
    $region2: #{sft_forward.9} parent=1 // pred_check
      _
    $region3: #{sft_forward.9} parent=1 // pred_check_branch
      %18 = sbr.rel (0) target = $region5
    $region4: #{sft_forward.9} parent=1 // pred_region
      %s20 = ssub.s32 128, 128
      %21 = vsyncadd [#allocation3], %s20
      %s22 = sshll.u32 [#allocation2], 4
      %s23 = int_to_ptr.vmem [resolvable:$true] %s22
      %28 = dma.hbm_to_vmem [thread:$0]  %s0, 128, %s23, [#allocation3], 64, 64, 4
    $region5: #{sft_forward.9} parent=1 // pred_fallthru
      _
    // Predicated region
    $region6: #{sft_forward.9} parent=1 // pred_check
      _
    $region7: #{sft_forward.9} parent=1 // pred_check_branch
      %30 = sbr.rel (0) target = $region9
    $region8: #{sft_forward.9} parent=1 // pred_region
      %s32 = ssub.s32 256, 256
      %33 = vsyncadd [#allocation6], %s32
      %s34 = sshll.u32 [#allocation5], 4
      %s35 = int_to_ptr.vmem [resolvable:$true] %s34
      %40 = dma.hbm_to_vmem [thread:$0]  %s1, 256, %s35, [#allocation6], 64, 64, 4
    $region9: #{sft_forward.9} parent=1 // pred_fallthru
      _
    // Predicated region
    $region10: #{sft_forward.9} parent=1 // pred_check
      _
    $region11: #{sft_forward.9} parent=1 // pred_check_branch
      %42 = sbr.rel (0) target = $region13
    $region12: #{sft_forward.9} parent=1 // pred_region
      %s44 = ssub.s32 16, 16
      %45 = vsyncadd [#allocation6], %s44
      %s47 = sshll.u32 [#allocation7], 4
      %s48 = int_to_ptr.vmem [resolvable:$true] %s47
      %50 = dma.hbm_to_vmem [thread:$0]  %s2, 16, %s48, [#allocation6]
    $region13: #{sft_forward.9} parent=1 // pred_fallthru
      _
    // Predicated region
    $region14: #{sft_forward.9} parent=1 // pred_check
      _
    $region15: #{sft_forward.9} parent=1 // pred_check_branch
      %52 = sbr.rel (0) target = $region17
    $region16: #{sft_forward.9} parent=1 // pred_region
      %s54 = ssub.s32 512, 512
      %55 = vsyncadd [#allocation9], %s54
      %s56 = sshll.u32 [#allocation8], 4
      %s57 = int_to_ptr.vmem [resolvable:$true] %s56
      %62 = dma.hbm_to_vmem [thread:$0]  %s3, 512, %s57, [#allocation9], 64, 64, 4
    $region17: #{sft_forward.9} parent=1 // pred_fallthru
      _
    // Predicated region
    $region18: #{sft_forward.9} parent=1 // pred_check
      _
    $region19: #{sft_forward.9} parent=1 // pred_check_branch
      %64 = sbr.rel (0) target = $region21
    $region20: #{sft_forward.9} parent=1 // pred_region
      %s66 = ssub.s32 16, 16
      %67 = vsyncadd [#allocation9], %s66
      %s69 = sshll.u32 [#allocation10], 4
      %s70 = int_to_ptr.vmem [resolvable:$true] %s69
      %72 = dma.hbm_to_vmem [thread:$0]  %s4, 16, %s70, [#allocation9]
    $region21: #{sft_forward.9} parent=1 // pred_fallthru
      _
    // Predicated region
    $region22: #{sft_forward.9} parent=1 // pred_check
      _
    $region23: #{sft_forward.9} parent=1 // pred_check_branch
      %74 = sbr.rel (0) target = $region25
    $region24: #{sft_forward.9} parent=1 // pred_region
      %s76 = ssub.s32 16, 16
      %77 = vsyncadd [#allocation12], %s76
      %s79 = sshll.u32 [#allocation11], 4
      %s80 = int_to_ptr.vmem [resolvable:$true] %s79
      %82 = dma.hbm_to_vmem [thread:$0]  %s5, 16, %s80, [#allocation12]
    $region25: #{sft_forward.9} parent=1 // pred_fallthru
      _
    // Predicated region
    $region26: #{sft_forward.9} parent=1 // pred_check
      _
    $region27: #{sft_forward.9} parent=1 // pred_check_branch
      %84 = sbr.rel (0) target = $region29
    $region28: #{sft_forward.9} parent=1 // pred_region
      %s86 = ssub.s32 16, 16
      %87 = vsyncadd [#allocation12], %s86
      %s89 = sshll.u32 [#allocation13], 4
      %s90 = int_to_ptr.vmem [resolvable:$true] %s89
      %92 = dma.hbm_to_vmem [thread:$0]  %s6, 16, %s90, [#allocation12]
    $region29: #{sft_forward.9} parent=1 // pred_fallthru
      _
    // Predicated region
    $region30: #{sft_forward.9} parent=1 // pred_check
      _
    $region31: #{sft_forward.9} parent=1 // pred_check_branch
      %94 = sbr.rel (0) target = $region33
    $region32: #{sft_forward.9} parent=1 // pred_region
      %95 = dma.done [#allocation3], 128
    $region33: #{sft_forward.9} parent=1 // pred_fallthru
      _
    // Predicated region
    $region34: #{sft_forward.9} parent=1 // pred_check
      _
    $region35: #{sft_forward.9} parent=1 // pred_check_branch
      %97 = sbr.rel (0) target = $region37
    $region36: #{sft_forward.9} parent=1 // pred_region
      %98 = dma.done [#allocation6], 256
    $region37: #{sft_forward.9} parent=1 // pred_fallthru
      _
    // Predicated region
    $region38: #{sft_forward.9} parent=1 // pred_check
      _
    $region39: #{sft_forward.9} parent=1 // pred_check_branch
      %100 = sbr.rel (0) target = $region41
    $region40: #{sft_forward.9} parent=1 // pred_region
      %101 = dma.done [#allocation6], 16
    $region41: #{sft_forward.9} parent=1 // pred_fallthru
      _
    // Predicated region
    $region42: #{sft_forward.9} parent=1 // pred_check
      _
    $region43: #{sft_forward.9} parent=1 // pred_check_branch
      %103 = sbr.rel (0) target = $region45
    $region44: #{sft_forward.9} parent=1 // pred_region
      %104 = dma.done [#allocation9], 512
    $region45: #{sft_forward.9} parent=1 // pred_fallthru
      _
    // Predicated region
    $region46: #{sft_forward.9} parent=1 // pred_check
      _
    $region47: #{sft_forward.9} parent=1 // pred_check_branch
      %106 = sbr.rel (0) target = $region49
    $region48: #{sft_forward.9} parent=1 // pred_region
      %107 = dma.done [#allocation9], 16
    $region49: #{sft_forward.9} parent=1 // pred_fallthru
      _
    // Predicated region
    $region50: #{sft_forward.9} parent=1 // pred_check
      _
    $region51: #{sft_forward.9} parent=1 // pred_check_branch
      %109 = sbr.rel (0) target = $region53
    $region52: #{sft_forward.9} parent=1 // pred_region
      %110 = dma.done [#allocation12], 16
    $region53: #{sft_forward.9} parent=1 // pred_fallthru
      _
    // Predicated region
    $region54: #{sft_forward.9} parent=1 // pred_check
      _
    $region55: #{sft_forward.9} parent=1 // pred_check_branch
      %112 = sbr.rel (0) target = $region57
    $region56: #{sft_forward.9} parent=1 // pred_region
      %113 = dma.done [#allocation12], 16
    $region57: #{sft_forward.9} parent=1 // pred_fallthru
      _
    %v115 = vld [vmem:[#allocation2] sm:$0xf]
    %v116 = vld [vmem:[#allocation2 + $0x4] sm:$0xf]
    %v117 = vld [vmem:[#allocation5] sm:$0xf]
    %v118 = vld [vmem:[#allocation5 + $0x4] sm:$0xf]
    %v119 = vld [vmem:[#allocation5 + $0x8] sm:$0xf]
    %v120 = vld [vmem:[#allocation5 + $0xc] sm:$0xf]
    %v121 = vld [vmem:[#allocation7] sm:$0x1]
    %v123 = vlaneseq
    %v124 = vshrl.u32 %v123, 7
    %v125 = vsub.s32 0, %v124
    %v126 = vrot.slane %v121, %v125
    %v130 = vunpack.c.l.b16 %v115
    %v131 = vunpack.c.l.b16 %v116
    %v132 = vpack.c.b16 %v131, %v130
    %v137 = vunpack.c.l.b16 %v117
    %v138 = vunpack.c.l.b16 %v118
    %v139 = vunpack.c.l.b16 %v119
    %v140 = vunpack.c.l.b16 %v120
    %v141 = vpack.c.b16 %v138, %v137
    %v142 = vpack.c.b16 %v140, %v139
    %vm145 = vcmask 261120
    %v147 = vsel %vm145, %v132, 0
    %149 = vmatprep.subr.bf16.mxu0 0
    %150 = vmatpush1.bf16.msra.mxu0 %v141
    %151 = vmatprep.subr.bf16.mxu0 0
    %152 = vmatpush1.bf16.msra.mxu0 %v142
    %153 = vmatprep.subr.bf16.mxu0 0
    %154 = vmatpush1.bf16.msra.mxu0 0
    %155 = vmatprep.subr.bf16.mxu0 0
    %156 = vmatpush1.bf16.msra.mxu0 0
    %157 = vmatprep.subr.bf16.mxu0 0
    %158 = vmatpush1.bf16.msra.mxu0 0
    %159 = vmatprep.subr.bf16.mxu0 0
    %160 = vmatpush1.bf16.msra.mxu0 0
    %161 = vmatprep.subr.bf16.mxu0 0
    %162 = vmatpush1.bf16.msra.mxu0 0
    %163 = vmatprep.subr.bf16.mxu0 0
    %164 = vmatpush1.bf16.msra.mxu0 0
    %165 = vmatprep.subr.bf16.mxu0 0
    %166 = vmatpush1.bf16.msra.mxu0 0
    %167 = vmatprep.subr.bf16.mxu0 0
    %168 = vmatpush1.bf16.msra.mxu0 0
    %169 = vmatprep.subr.bf16.mxu0 0
    %170 = vmatpush1.bf16.msra.mxu0 0
    %171 = vmatprep.subr.bf16.mxu0 0
    %172 = vmatpush1.bf16.msra.mxu0 0
    %173 = vmatprep.subr.bf16.mxu0 0
    %174 = vmatpush1.bf16.msra.mxu0 0
    %175 = vmatprep.subr.bf16.mxu0 0
    %176 = vmatpush1.bf16.msra.mxu0 0
    %177 = vmatprep.subr.bf16.mxu0 0
    %178 = vmatpush1.bf16.msra.mxu0 0
    %179 = vmatprep.subr.bf16.mxu0 0
    %180 = vmatpush1.bf16.msra.mxu0 0
    %181 = vmatprep.mubr.bf16.mxu0 0
    %182 = vmatmul.mubr.bf16.gmra.mrb[0].mxu0 %v147
    %v183 = vpop.f32.mrb[0].mxu0
    %v184 = vadd.f32 %v126, %v183
    %v185 = vpop.f32.mrb[0].mxu0
    %v186 = vpop.f32.mrb[0].mxu0
    %v187 = vadd.f32 %v126, %v186
    %v188 = vpop.f32.mrb[0].mxu0
    %189 = vdwg.mxu0
    %v190 = vmul.f32 %v184, 0.5
    %v191 = vmul.f32 %v187, 0.5
    %v192 = vmul.f32 %v184, 0.044715
    %v193 = vmul.f32 %v187, 0.044715
    %v194 = vmul.f32 %v192, %v184
    %v195 = vmul.f32 %v193, %v187
    %v196 = vmul.f32 %v194, %v184
    %v197 = vmul.f32 %v195, %v187
    %v198 = vadd.f32 %v184, %v196
    %v199 = vadd.f32 %v187, %v197
    %v200 = vmul.f32 %v198, 0.7978846
    %v201 = vmul.f32 %v199, 0.7978846
    %v202 = vtanh.pop %v200
    %v203 = vtanh.pop %v201
    %v204 = vadd.f32 %v202, 1.0
    %v205 = vadd.f32 %v203, 1.0
    %v206 = vmul.f32 %v190, %v204
    %v207 = vmul.f32 %v191, %v205
    %v208 = vpack.c.bf16 %v207, %v206
    %v209 = vld [vmem:[#allocation8] sm:$0xf]
    %v210 = vld [vmem:[#allocation8 + $0x4] sm:$0xf]
    %v211 = vld [vmem:[#allocation8 + $0x8] sm:$0xf]
    %v212 = vld [vmem:[#allocation8 + $0xc] sm:$0xf]
    %v213 = vld [vmem:[#allocation8 + $0x10] sm:$0xf]
    %v214 = vld [vmem:[#allocation8 + $0x14] sm:$0xf]
    %v215 = vld [vmem:[#allocation8 + $0x18] sm:$0xf]
    %v216 = vld [vmem:[#allocation8 + $0x1c] sm:$0xf]
    %v217 = vld [vmem:[#allocation10] sm:$0x1]
    %v219 = vlaneseq
    %v220 = vshrl.u32 %v219, 7
    %v221 = vsub.s32 0, %v220
    %v222 = vrot.slane %v217, %v221
    %v232 = vunpack.c.l.b16 %v209
    %v233 = vunpack.c.l.b16 %v210
    %v234 = vunpack.c.l.b16 %v211
    %v235 = vunpack.c.l.b16 %v212
    %v236 = vunpack.c.l.b16 %v213
    %v237 = vunpack.c.l.b16 %v214
    %v238 = vunpack.c.l.b16 %v215
    %v239 = vunpack.c.l.b16 %v216
    %v240 = vpack.c.b16 %v233, %v232
    %v241 = vpack.c.b16 %v235, %v234
    %v242 = vpack.c.b16 %v237, %v236
    %v243 = vpack.c.b16 %v239, %v238
    %vm248 = vcmask 523264
    %v250 = vsel %vm248, %v208, 0
    %252 = vmatprep.subr.bf16.mxu0 0
    %253 = vmatpush1.bf16.msra.mxu0 %v240
    %254 = vmatprep.subr.bf16.mxu0 0
    %255 = vmatpush1.bf16.msra.mxu0 %v241
    %256 = vmatprep.subr.bf16.mxu0 0
    %257 = vmatpush1.bf16.msra.mxu0 %v242
    %258 = vmatprep.subr.bf16.mxu0 0
    %259 = vmatpush1.bf16.msra.mxu0 %v243
    %260 = vmatprep.subr.bf16.mxu0 0
    %261 = vmatpush1.bf16.msra.mxu0 0
    %262 = vmatprep.subr.bf16.mxu0 0
    %263 = vmatpush1.bf16.msra.mxu0 0
    %264 = vmatprep.subr.bf16.mxu0 0
    %265 = vmatpush1.bf16.msra.mxu0 0
    %266 = vmatprep.subr.bf16.mxu0 0
    %267 = vmatpush1.bf16.msra.mxu0 0
    %268 = vmatprep.subr.bf16.mxu0 0
    %269 = vmatpush1.bf16.msra.mxu0 0
    %270 = vmatprep.subr.bf16.mxu0 0
    %271 = vmatpush1.bf16.msra.mxu0 0
    %272 = vmatprep.subr.bf16.mxu0 0
    %273 = vmatpush1.bf16.msra.mxu0 0
    %274 = vmatprep.subr.bf16.mxu0 0
    %275 = vmatpush1.bf16.msra.mxu0 0
    %276 = vmatprep.subr.bf16.mxu0 0
    %277 = vmatpush1.bf16.msra.mxu0 0
    %278 = vmatprep.subr.bf16.mxu0 0
    %279 = vmatpush1.bf16.msra.mxu0 0
    %280 = vmatprep.subr.bf16.mxu0 0
    %281 = vmatpush1.bf16.msra.mxu0 0
    %282 = vmatprep.subr.bf16.mxu0 0
    %283 = vmatpush1.bf16.msra.mxu0 0
    %284 = vmatprep.mubr.bf16.mxu0 0
    %285 = vmatmul.mubr.bf16.gmra.mrb[0].mxu0 %v250
    %v286 = vpop.f32.mrb[0].mxu0
    %v287 = vadd.f32 %v222, %v286
    %v288 = vpop.f32.mrb[0].mxu0
    %v289 = vpop.f32.mrb[0].mxu0
    %v290 = vadd.f32 %v222, %v289
    %v291 = vpop.f32.mrb[0].mxu0
    %292 = vdwg.mxu0
    %v293 = vunpack.c.l.bf16 %v115
    %v294 = vunpack.c.l.bf16 %v116
    %v295 = vadd.f32 %v287, %v293
    %v296 = vadd.f32 %v290, %v294
    %v297 = vld [vmem:[#allocation11] sm:$0x1]
    %v298 = vld [vmem:[#allocation13] sm:$0x1]
    %v299 = vsel %vm145, %v295, 0.0
    %300 = vadd.xlane.f32.xlu0 %v299
    %v301 = vpop.xlane.xlu0 %300
    %v302 = vsel %vm145, %v296, 0.0
    %303 = vadd.xlane.f32.xlu0 %v302
    %v304 = vpop.xlane.xlu0 %303
    %v305 = vrcp.pop 32.0
    %v306 = vmul.f32 %v301, %v305
    %v307 = vmul.f32 %v304, %v305
    %v308 = vsub.f32 %v295, %v306
    %v309 = vsub.f32 %v296, %v307
    %v310 = vmul.f32 %v308, %v308
    %v311 = vmul.f32 %v309, %v309
    %v312 = vsel %vm145, %v310, 0.0
    %313 = vadd.xlane.f32.xlu0 %v312
    %v314 = vpop.xlane.xlu0 %313
    %v315 = vsel %vm145, %v311, 0.0
    %316 = vadd.xlane.f32.xlu0 %v315
    %v317 = vpop.xlane.xlu0 %316
    %v318 = vmul.f32 %v314, %v305
    %v319 = vmul.f32 %v317, %v305
    %v320 = vadd.f32 %v318, 1e-12
    %v321 = vadd.f32 %v319, 1e-12
    %v322 = vrsqrt.pop %v320
    %v323 = vrsqrt.pop %v321
    %v324 = vmul.f32 %v308, %v322
    %v325 = vmul.f32 %v309, %v323
    %v327 = vlaneseq
    %v328 = vshrl.u32 %v327, 7
    %v329 = vsub.s32 0, %v328
    %v330 = vrot.slane %v297, %v329
    %v332 = vmul.f32 %v324, %v330
    %v333 = vmul.f32 %v325, %v330
    %v335 = vlaneseq
    %v336 = vshrl.u32 %v335, 7
    %v337 = vsub.s32 0, %v336
    %v338 = vrot.slane %v298, %v337
    %v340 = vadd.f32 %v332, %v338
    %v341 = vadd.f32 %v333, %v338
    %v342 = vpack.c.bf16 %v341, %v340
    %v344 = vunpack.c.l.b16 %v342
    %v345 = vunpack.c.h.b16 %v342
    %v346 = vpack.c.b16 %v344, %v344
    %v347 = vpack.c.b16 %v345, %v345
    %vm350 = vcmask 257024
    %351 = vst.msk [vmem:[#allocation14] sm:$0xf] %vm350, %v346
    %352 = vst.msk [vmem:[#allocation14 + $0x4] sm:$0xf] %vm350, %v347
    // Predicated region
    $region58: #{sft_forward.9} parent=1 // pred_check
      _
    $region59: #{sft_forward.9} parent=1 // pred_check_branch
      %354 = sbr.rel (0) target = $region61
    $region60: #{sft_forward.9} parent=1 // pred_region
      %s356 = ssub.s32 128, 128
      %357 = vsyncadd [#allocation4], %s356
      %s358 = sshll.u32 [#allocation14], 4
      %s359 = int_to_ptr.vmem [resolvable:$true] %s358
      %364 = dma.vmem_to_hbm [thread:$0]  %s359, 128, %s7, [#allocation4], 64, 64, 4
    $region61: #{sft_forward.9} parent=1 // pred_fallthru
      _
    // Predicated region
    $region62: #{sft_forward.9} parent=1 // pred_check
      _
    $region63: #{sft_forward.9} parent=1 // pred_check_branch
      %366 = sbr.rel (0) target = $region65
    $region64: #{sft_forward.9} parent=1 // pred_region
      %367 = dma.done [#allocation4], 128
    $region65: #{sft_forward.9} parent=1 // pred_fallthru
      _
    %368 = vsyncpa [#allocation3], 1
    %369 = vsyncpa [#allocation6], 1
    %370 = vsyncpa [#allocation9], 1
    %371 = vsyncpa [#allocation12], 1
    %372 = vsyncpa [#allocation4], 1

// kernel: sft_forward.8
$region0: #{sft_forward.8}
  #allocation0 [shape = 'u32[]', space=smem, size = 0x4, offset = 0x4, fixed_abs, tag = 'smem constant byte address 0x4 - core index']
  #allocation1 [shape = 'u32[144,128]{1,0:T(1,128)}', space=vmem, size = 0x12000, scoped, tag = 'internal scratch']
  %s0 = inlined_call_operand.hbm [shape: bf16[2,8,32], index: 0, kind: input, shape index: {}]
  %s1 = inlined_call_operand.hbm [shape: bf16[32,96], index: 1, kind: input, shape index: {}]
  %s2 = inlined_call_operand.hbm [shape: f32[1,96], index: 2, kind: input, shape index: {}]
  %s3 = inlined_call_operand.hbm [shape: bf16[32,32], index: 3, kind: input, shape index: {}]
  %s4 = inlined_call_operand.hbm [shape: f32[1,32], index: 4, kind: input, shape index: {}]
  %s5 = inlined_call_operand.hbm [shape: f32[1,32], index: 5, kind: input, shape index: {}]
  %s6 = inlined_call_operand.hbm [shape: f32[1,32], index: 6, kind: input, shape index: {}]
  %s7 = inlined_call_operand.hbm [shape: bf16[2,8,32], index: 7, kind: output, shape index: {}]
  %s8 = sld [smem:[#allocation0]]
  $region89: #{sft_forward.8} parent=0
    _
  %s10 = ssub.s32 1, %s8
  %s11 = scalar_select 0, %s10, %s8
  $region1: #{sft_forward.8} parent=0
    #allocation2 [shape = 'u8[4096]{0}', space=vmem, size = 0x1000, scoped, tag = 'input window, operand 0']
    #allocation3 [shape = 's32[2]{0}', space=sflag, size = 0x8, scoped, tag = 'scoped memory for sft_forward.8']
    #allocation4 [shape = 's32[2]{0}', space=sflag, size = 0x8, scoped, tag = 'scoped memory for sft_forward.8']
    #allocation5 [shape = 'u8[8192]{0}', space=vmem, size = 0x2000, scoped, tag = 'input window, operand 1, single buffered']
    #allocation6 [shape = 's32[1]{0}', space=sflag, size = 0x4, scoped, tag = 'scoped memory for sft_forward.8']
    #allocation7 [shape = 'u8[512]{0}', space=vmem, size = 0x400, scoped, tag = 'input window, operand 2, single buffered']
    #allocation8 [shape = 'u8[8192]{0}', space=vmem, size = 0x2000, scoped, tag = 'input window, operand 3, single buffered']
    #allocation9 [shape = 's32[1]{0}', space=sflag, size = 0x4, scoped, tag = 'scoped memory for sft_forward.8']
    #allocation10 [shape = 'u8[512]{0}', space=vmem, size = 0x400, scoped, tag = 'input window, operand 4, single buffered']
    #allocation11 [shape = 'u8[512]{0}', space=vmem, size = 0x400, scoped, tag = 'input window, operand 5, single buffered']
    #allocation12 [shape = 's32[1]{0}', space=sflag, size = 0x4, scoped, tag = 'scoped memory for sft_forward.8']
    #allocation13 [shape = 'u8[512]{0}', space=vmem, size = 0x400, scoped, tag = 'input window, operand 6, single buffered']
    #allocation14 [shape = 'u8[4096]{0}', space=vmem, size = 0x1000, scoped, tag = 'output window, operand 0']
    %12 = vsyncpa [#allocation3], 0
    %s13 = scalar_lea.sflag [#allocation3], 1
    %14 = vsyncpa %s13, 0
    %15 = vsyncpa [#allocation6], 0
    %16 = vsyncpa [#allocation9], 0
    %17 = vsyncpa [#allocation12], 0
    %18 = vsyncpa [#allocation4], 0
    %s19 = scalar_lea.sflag [#allocation4], 1
    %20 = vsyncpa %s19, 0
    loop: start=0, step=1, limit=4
    $region2: #{sft_forward.8} parent=1 // loop_pre_header
      _
    $region3: #{sft_forward.8} parent=1 // loop_header
      %s22 = sphi 0, %s26
      %p23 = scmp.ge.s32.totalorder %s22, 4
      %s32 = sphi 0, %s34
      %s35 = sphi 0, %s32
      %s36 = sphi 0, %s35
      %s52 = sphi 0, %s36
      %s56 = sphi 0, %s56
      %s58 = sphi 0, %s56
      %s59 = sphi 0, %s58
      %s73 = sphi 0, %s59
      %s77 = sphi 0, %s77
      %s79 = sphi 0, %s77
      %s80 = sphi 0, %s79
      %s94 = sphi 0, %s80
      %s98 = sphi 0, %s98
      %s100 = sphi 0, %s98
      %s101 = sphi 0, %s100
      %s115 = sphi 0, %s101
      %s119 = sphi 0, %s119
      %s121 = sphi 0, %s119
      %s122 = sphi 0, %s121
      %s136 = sphi 0, %s122
      %s140 = sphi 0, %s140
      %s142 = sphi 0, %s140
      %s143 = sphi 0, %s142
      %s157 = sphi 0, %s143
      %s161 = sphi 0, %s161
      %s163 = sphi 0, %s161
      %s164 = sphi 0, %s163
      %s178 = sphi 0, %s164
      %s184 = sphi 0, %s186
      %s187 = sphi 0, %s184
      %s188 = sphi 0, %s187
      %s204 = sphi 0, %s188
    $region4: #{sft_forward.8} parent=1 // loop_header_branch
      %25 = sbr.rel (%p23) target = $region8
    $region5: #{sft_forward.8} parent=1 // loop_body
      %s27 = ssub.s32 %s22, 1
      %s28 = ssub.s32 %s22, 2
      %s29 = sadd.s32 %s22, 1
      %s30 = ssub.s32 %s22, %s29
      %p31 = scmp.eq.s32.totalorder %s30, 0
      %s33 = sadd.s32 %s32, 1
      %s34 = scalar_select %p31, %s32, %s33
      %p37 = pneg %p31
      %p38 = scmp.eq.s32.totalorder %s22, 1
      %p39 = por %p37, %p38
      %p40 = scmp.ne.s32.totalorder %s32, %s35
      %p41 = scmp.eq.s32.totalorder %s22, 0
      %p42 = por %p40, %p41
      %p43 = scmp.ne.s32.totalorder %s32, %s35
      %p44 = scmp.eq.s32.totalorder %s27, 1
      %p45 = por %p43, %p44
      %p46 = scmp.ne.s32.totalorder %s35, %s36
      %p47 = scmp.eq.s32.totalorder %s27, 0
      %p48 = por %p46, %p47
      %p49 = scmp.ne.s32.totalorder %s35, %s36
      %p50 = scmp.eq.s32.totalorder %s28, 1
      %p51 = por %p49, %p50
      %p53 = scmp.ne.s32.totalorder %s36, %s52
      %p54 = scmp.eq.s32.totalorder %s28, 0
      %p55 = por %p53, %p54
      %s57 = sadd.s32 %s56, 1
      %p60 = scmp.eq.s32.totalorder %s22, 1
      %p61 = scmp.ne.s32.totalorder %s56, %s58
      %p62 = scmp.eq.s32.totalorder %s22, 0
      %p63 = por %p61, %p62
      %p64 = scmp.ne.s32.totalorder %s56, %s58
      %p65 = scmp.eq.s32.totalorder %s27, 1
      %p66 = por %p64, %p65
      %p67 = scmp.ne.s32.totalorder %s58, %s59
      %p68 = scmp.eq.s32.totalorder %s27, 0
      %p69 = por %p67, %p68
      %p70 = scmp.ne.s32.totalorder %s58, %s59
      %p71 = scmp.eq.s32.totalorder %s28, 1
      %p72 = por %p70, %p71
      %p74 = scmp.ne.s32.totalorder %s59, %s73
      %p75 = scmp.eq.s32.totalorder %s28, 0
      %p76 = por %p74, %p75
      %s78 = sadd.s32 %s77, 1
      %p81 = scmp.eq.s32.totalorder %s22, 1
      %p82 = scmp.ne.s32.totalorder %s77, %s79
      %p83 = scmp.eq.s32.totalorder %s22, 0
      %p84 = por %p82, %p83
      %p85 = scmp.ne.s32.totalorder %s77, %s79
      %p86 = scmp.eq.s32.totalorder %s27, 1
      %p87 = por %p85, %p86
      %p88 = scmp.ne.s32.totalorder %s79, %s80
      %p89 = scmp.eq.s32.totalorder %s27, 0
      %p90 = por %p88, %p89
      %p91 = scmp.ne.s32.totalorder %s79, %s80
      %p92 = scmp.eq.s32.totalorder %s28, 1
      %p93 = por %p91, %p92
      %p95 = scmp.ne.s32.totalorder %s80, %s94
      %p96 = scmp.eq.s32.totalorder %s28, 0
      %p97 = por %p95, %p96
      %s99 = sadd.s32 %s98, 1
      %p102 = scmp.eq.s32.totalorder %s22, 1
      %p103 = scmp.ne.s32.totalorder %s98, %s100
      %p104 = scmp.eq.s32.totalorder %s22, 0
      %p105 = por %p103, %p104
      %p106 = scmp.ne.s32.totalorder %s98, %s100
      %p107 = scmp.eq.s32.totalorder %s27, 1
      %p108 = por %p106, %p107
      %p109 = scmp.ne.s32.totalorder %s100, %s101
      %p110 = scmp.eq.s32.totalorder %s27, 0
      %p111 = por %p109, %p110
      %p112 = scmp.ne.s32.totalorder %s100, %s101
      %p113 = scmp.eq.s32.totalorder %s28, 1
      %p114 = por %p112, %p113
      %p116 = scmp.ne.s32.totalorder %s101, %s115
      %p117 = scmp.eq.s32.totalorder %s28, 0
      %p118 = por %p116, %p117
      %s120 = sadd.s32 %s119, 1
      %p123 = scmp.eq.s32.totalorder %s22, 1
      %p124 = scmp.ne.s32.totalorder %s119, %s121
      %p125 = scmp.eq.s32.totalorder %s22, 0
      %p126 = por %p124, %p125
      %p127 = scmp.ne.s32.totalorder %s119, %s121
      %p128 = scmp.eq.s32.totalorder %s27, 1
      %p129 = por %p127, %p128
      %p130 = scmp.ne.s32.totalorder %s121, %s122
      %p131 = scmp.eq.s32.totalorder %s27, 0
      %p132 = por %p130, %p131
      %p133 = scmp.ne.s32.totalorder %s121, %s122
      %p134 = scmp.eq.s32.totalorder %s28, 1
      %p135 = por %p133, %p134
      %p137 = scmp.ne.s32.totalorder %s122, %s136
      %p138 = scmp.eq.s32.totalorder %s28, 0
      %p139 = por %p137, %p138
      %s141 = sadd.s32 %s140, 1
      %p144 = scmp.eq.s32.totalorder %s22, 1
      %p145 = scmp.ne.s32.totalorder %s140, %s142
      %p146 = scmp.eq.s32.totalorder %s22, 0
      %p147 = por %p145, %p146
      %p148 = scmp.ne.s32.totalorder %s140, %s142
      %p149 = scmp.eq.s32.totalorder %s27, 1
      %p150 = por %p148, %p149
      %p151 = scmp.ne.s32.totalorder %s142, %s143
      %p152 = scmp.eq.s32.totalorder %s27, 0
      %p153 = por %p151, %p152
      %p154 = scmp.ne.s32.totalorder %s142, %s143
      %p155 = scmp.eq.s32.totalorder %s28, 1
      %p156 = por %p154, %p155
      %p158 = scmp.ne.s32.totalorder %s143, %s157
      %p159 = scmp.eq.s32.totalorder %s28, 0
      %p160 = por %p158, %p159
      %s162 = sadd.s32 %s161, 1
      %p165 = scmp.eq.s32.totalorder %s22, 1
      %p166 = scmp.ne.s32.totalorder %s161, %s163
      %p167 = scmp.eq.s32.totalorder %s22, 0
      %p168 = por %p166, %p167
      %p169 = scmp.ne.s32.totalorder %s161, %s163
      %p170 = scmp.eq.s32.totalorder %s27, 1
      %p171 = por %p169, %p170
      %p172 = scmp.ne.s32.totalorder %s163, %s164
      %p173 = scmp.eq.s32.totalorder %s27, 0
      %p174 = por %p172, %p173
      %p175 = scmp.ne.s32.totalorder %s163, %s164
      %p176 = scmp.eq.s32.totalorder %s28, 1
      %p177 = por %p175, %p176
      %p179 = scmp.ne.s32.totalorder %s164, %s178
      %p180 = scmp.eq.s32.totalorder %s28, 0
      %p181 = por %p179, %p180
      %s182 = ssub.s32 %s22, %s29
      %p183 = scmp.eq.s32.totalorder %s182, 0
      %s185 = sadd.s32 %s184, 1
      %s186 = scalar_select %p183, %s184, %s185
      %p189 = pneg %p183
      %p190 = scmp.eq.s32.totalorder %s22, 1
      %p191 = por %p189, %p190
      %p192 = scmp.ne.s32.totalorder %s184, %s187
      %p193 = scmp.eq.s32.totalorder %s22, 0
      %p194 = por %p192, %p193
      %p195 = scmp.ne.s32.totalorder %s184, %s187
      %p196 = scmp.eq.s32.totalorder %s27, 1
      %p197 = por %p195, %p196
      %p198 = scmp.ne.s32.totalorder %s187, %s188
      %p199 = scmp.eq.s32.totalorder %s27, 0
      %p200 = por %p198, %p199
      %p201 = scmp.ne.s32.totalorder %s187, %s188
      %p202 = scmp.eq.s32.totalorder %s28, 1
      %p203 = por %p201, %p202
      %p205 = scmp.ne.s32.totalorder %s188, %s204
      %p206 = scmp.eq.s32.totalorder %s28, 0
      %p207 = por %p205, %p206
      %p208 = scmp.le.s32.totalorder 1, %s22
      %p209 = scmp.lt.s32.totalorder %s22, 3
      %p210 = pnand %p208, %p209
      %p211 = pneg %p210
      // Predicated region
      $region9: #{sft_forward.8} parent=5 // pred_check
        _
      $region10: #{sft_forward.8} parent=5 // pred_check_branch
        %213 = sbr.rel (%p210) target = $region12
      $region11: #{sft_forward.8} parent=5 // pred_region
        %s214 = ssub.s32 %s22, 1
        // Predicated region
        $region13: #{sft_forward.8} parent=11 // pred_check
          %p215 = pneg %p69
        $region14: #{sft_forward.8} parent=11 // pred_check_branch
          %217 = sbr.rel (%p215) target = $region16
        $region15: #{sft_forward.8} parent=11 // pred_region
          %s219 = ssub.s32 256, 256
          %220 = vsyncadd [#allocation6], %s219
          %s221 = sshll.u32 [#allocation5], 4
          %s222 = int_to_ptr.vmem [resolvable:$true] %s221
          %227 = dma.hbm_to_vmem [thread:$0]  %s1, 256, %s222, [#allocation6], 64, 64, 4
        $region16: #{sft_forward.8} parent=11 // pred_fallthru
          _
        // Predicated region
        $region17: #{sft_forward.8} parent=11 // pred_check
          %p228 = pneg %p90
        $region18: #{sft_forward.8} parent=11 // pred_check_branch
          %230 = sbr.rel (%p228) target = $region20
        $region19: #{sft_forward.8} parent=11 // pred_region
          %s232 = ssub.s32 16, 16
          %233 = vsyncadd [#allocation6], %s232
          %s235 = sshll.u32 [#allocation7], 4
          %s236 = int_to_ptr.vmem [resolvable:$true] %s235
          %238 = dma.hbm_to_vmem [thread:$0]  %s2, 16, %s236, [#allocation6]
        $region20: #{sft_forward.8} parent=11 // pred_fallthru
          _
        // Predicated region
        $region21: #{sft_forward.8} parent=11 // pred_check
          %p239 = pneg %p111
        $region22: #{sft_forward.8} parent=11 // pred_check_branch
          %241 = sbr.rel (%p239) target = $region24
        $region23: #{sft_forward.8} parent=11 // pred_region
          %s243 = ssub.s32 256, 256
          %244 = vsyncadd [#allocation9], %s243
          %s245 = sshll.u32 [#allocation8], 4
          %s246 = int_to_ptr.vmem [resolvable:$true] %s245
          %251 = dma.hbm_to_vmem [thread:$0]  %s3, 256, %s246, [#allocation9], 64, 64, 4
        $region24: #{sft_forward.8} parent=11 // pred_fallthru
          _
        // Predicated region
        $region25: #{sft_forward.8} parent=11 // pred_check
          %p252 = pneg %p132
        $region26: #{sft_forward.8} parent=11 // pred_check_branch
          %254 = sbr.rel (%p252) target = $region28
        $region27: #{sft_forward.8} parent=11 // pred_region
          %s256 = ssub.s32 16, 16
          %257 = vsyncadd [#allocation9], %s256
          %s259 = sshll.u32 [#allocation10], 4
          %s260 = int_to_ptr.vmem [resolvable:$true] %s259
          %262 = dma.hbm_to_vmem [thread:$0]  %s4, 16, %s260, [#allocation9]
        $region28: #{sft_forward.8} parent=11 // pred_fallthru
          _
        // Predicated region
        $region29: #{sft_forward.8} parent=11 // pred_check
          %p263 = pneg %p153
        $region30: #{sft_forward.8} parent=11 // pred_check_branch
          %265 = sbr.rel (%p263) target = $region32
        $region31: #{sft_forward.8} parent=11 // pred_region
          %s267 = ssub.s32 16, 16
          %268 = vsyncadd [#allocation12], %s267
          %s270 = sshll.u32 [#allocation11], 4
          %s271 = int_to_ptr.vmem [resolvable:$true] %s270
          %273 = dma.hbm_to_vmem [thread:$0]  %s5, 16, %s271, [#allocation12]
        $region32: #{sft_forward.8} parent=11 // pred_fallthru
          _
        // Predicated region
        $region33: #{sft_forward.8} parent=11 // pred_check
          %p274 = pneg %p174
        $region34: #{sft_forward.8} parent=11 // pred_check_branch
          %276 = sbr.rel (%p274) target = $region36
        $region35: #{sft_forward.8} parent=11 // pred_region
          %s278 = ssub.s32 16, 16
          %279 = vsyncadd [#allocation12], %s278
          %s281 = sshll.u32 [#allocation13], 4
          %s282 = int_to_ptr.vmem [resolvable:$true] %s281
          %284 = dma.hbm_to_vmem [thread:$0]  %s6, 16, %s282, [#allocation12]
        $region36: #{sft_forward.8} parent=11 // pred_fallthru
          _
      $region12: #{sft_forward.8} parent=5 // pred_fallthru
        _
      %p285 = scmp.lt.s32.totalorder %s22, 2
      // Predicated region
      $region37: #{sft_forward.8} parent=5 // pred_check
        %p286 = pneg %p285
      $region38: #{sft_forward.8} parent=5 // pred_check_branch
        %288 = sbr.rel (%p286) target = $region40
      $region39: #{sft_forward.8} parent=5 // pred_region
        // Predicated region
        $region41: #{sft_forward.8} parent=39 // pred_check
          %p289 = pneg %p42
        $region42: #{sft_forward.8} parent=39 // pred_check_branch
          %291 = sbr.rel (%p289) target = $region44
        $region43: #{sft_forward.8} parent=39 // pred_region
          %s292 = sand.u32 %s32, 1
          %s293 = scalar_lea.sflag [#allocation3], %s292
          %s294 = sand.u32 %s32, 1
          %s295 = smul.addr %s294, 4
          %s296 = scalar_lea.vmem [#allocation2], %s295
          %s298 = ssub.s32 64, 64
          %299 = vsyncadd %s293, %s298
          %s300 = smul.addr %s22, 64
          %s301 = scalar_lea.hbm %s0, %s300
          %s303 = sshll.u32 %s296, 4
          %s304 = int_to_ptr.vmem [resolvable:$true] %s303
          %306 = dma.hbm_to_vmem [thread:$0]  %s301, 64, %s304, %s293
        $region44: #{sft_forward.8} parent=39 // pred_fallthru
          _
      $region40: #{sft_forward.8} parent=5 // pred_fallthru
        _
      %p307 = scmp.le.s32.totalorder 1, %s22
      %p308 = scmp.lt.s32.totalorder %s22, 3
      %p309 = pnand %p307, %p308
      %p310 = pneg %p309
      // Predicated region
      $region45: #{sft_forward.8} parent=5 // pred_check
        _
      $region46: #{sft_forward.8} parent=5 // pred_check_branch
        %312 = sbr.rel (%p309) target = $region48
      $region47: #{sft_forward.8} parent=5 // pred_region
        %s313 = ssub.s32 %s22, 1
        %s314 = sand.u32 %s35, 1
        %s315 = scalar_lea.sflag [#allocation3], %s314
        %s316 = sand.u32 %s35, 1
        %s317 = smul.addr %s316, 4
        %s318 = scalar_lea.vmem [#allocation2], %s317
        // Predicated region
        $region49: #{sft_forward.8} parent=47 // pred_check
          %p319 = pneg %p48
        $region50: #{sft_forward.8} parent=47 // pred_check_branch
          %321 = sbr.rel (%p319) target = $region52
        $region51: #{sft_forward.8} parent=47 // pred_region
          %322 = dma.done %s315, 64
        $region52: #{sft_forward.8} parent=47 // pred_fallthru
          _
        // Predicated region
        $region53: #{sft_forward.8} parent=47 // pred_check
          %p323 = pneg %p69
        $region54: #{sft_forward.8} parent=47 // pred_check_branch
          %325 = sbr.rel (%p323) target = $region56
        $region55: #{sft_forward.8} parent=47 // pred_region
          %326 = dma.done [#allocation6], 256
        $region56: #{sft_forward.8} parent=47 // pred_fallthru
          _
        // Predicated region
        $region57: #{sft_forward.8} parent=47 // pred_check
          %p327 = pneg %p90
        $region58: #{sft_forward.8} parent=47 // pred_check_branch
          %329 = sbr.rel (%p327) target = $region60
        $region59: #{sft_forward.8} parent=47 // pred_region
          %330 = dma.done [#allocation6], 16
        $region60: #{sft_forward.8} parent=47 // pred_fallthru
          _
        // Predicated region
        $region61: #{sft_forward.8} parent=47 // pred_check
          %p331 = pneg %p111
        $region62: #{sft_forward.8} parent=47 // pred_check_branch
          %333 = sbr.rel (%p331) target = $region64
        $region63: #{sft_forward.8} parent=47 // pred_region
          %334 = dma.done [#allocation9], 256
        $region64: #{sft_forward.8} parent=47 // pred_fallthru
          _
        // Predicated region
        $region65: #{sft_forward.8} parent=47 // pred_check
          %p335 = pneg %p132
        $region66: #{sft_forward.8} parent=47 // pred_check_branch
          %337 = sbr.rel (%p335) target = $region68
        $region67: #{sft_forward.8} parent=47 // pred_region
          %338 = dma.done [#allocation9], 16
        $region68: #{sft_forward.8} parent=47 // pred_fallthru
          _
        // Predicated region
        $region69: #{sft_forward.8} parent=47 // pred_check
          %p339 = pneg %p153
        $region70: #{sft_forward.8} parent=47 // pred_check_branch
          %341 = sbr.rel (%p339) target = $region72
        $region71: #{sft_forward.8} parent=47 // pred_region
          %342 = dma.done [#allocation12], 16
        $region72: #{sft_forward.8} parent=47 // pred_fallthru
          _
        // Predicated region
        $region73: #{sft_forward.8} parent=47 // pred_check
          %p343 = pneg %p174
        $region74: #{sft_forward.8} parent=47 // pred_check_branch
          %345 = sbr.rel (%p343) target = $region76
        $region75: #{sft_forward.8} parent=47 // pred_region
          %346 = dma.done [#allocation12], 16
        $region76: #{sft_forward.8} parent=47 // pred_fallthru
          _
        %s347 = sand.u32 %s35, 1
        %s348 = scalar_lea.sflag [#allocation3], %s347
        %s349 = sand.u32 %s35, 1
        %s350 = smul.addr %s349, 4
        %s351 = scalar_lea.vmem [#allocation2], %s350
        %p352 = pneg %p48
        %p353 = pneg %p45
        %p354 = pneg %p69
        %p355 = pneg %p66
        %p356 = pneg %p90
        %p357 = pneg %p87
        %p358 = pneg %p111
        %p359 = pneg %p108
        %p360 = pneg %p132
        %p361 = pneg %p129
        %p362 = pneg %p153
        %p363 = pneg %p150
        %p364 = pneg %p174
        %p365 = pneg %p171
        %p366 = pneg %p200
        %p367 = pneg %p197
        %s368 = sand.u32 %s187, 1
        %s369 = scalar_lea.sflag [#allocation4], %s368
        %s370 = sand.u32 %s187, 1
        %s371 = smul.addr %s370, 4
        %s372 = scalar_lea.vmem [#allocation14], %s371
        %v374 = vld [vmem:[%s318] sm:$0xf]
        %v375 = vld [vmem:[#allocation5] sm:$0xf]
        %v376 = vld [vmem:[#allocation5 + $0x4] sm:$0xf]
        %v377 = vld [vmem:[#allocation5 + $0x8] sm:$0xf]
        %v378 = vld [vmem:[#allocation5 + $0xc] sm:$0xf]
        %v379 = vld [vmem:[#allocation7] sm:$0x1]
        %v381 = vlaneseq
        %v382 = vshrl.u32 %v381, 7
        %v383 = vsub.s32 0, %v382
        %v384 = vrot.slane %v379, %v383
        %v390 = vunpack.c.l.b16 %v375
        %v391 = vunpack.c.l.b16 %v376
        %v392 = vunpack.c.l.b16 %v377
        %v393 = vunpack.c.l.b16 %v378
        %v394 = vpack.c.b16 %v391, %v390
        %v395 = vpack.c.b16 %v393, %v392
        %vm398 = vcmask 261120
        %v400 = vsel %vm398, %v374, 0
        %402 = vmatprep.subr.bf16.mxu0 0
        %403 = vmatpush1.bf16.msra.mxu0 %v394
        %404 = vmatprep.subr.bf16.mxu0 0
        %405 = vmatpush1.bf16.msra.mxu0 %v395
        %406 = vmatprep.subr.bf16.mxu0 0
        %407 = vmatpush1.bf16.msra.mxu0 0
        %408 = vmatprep.subr.bf16.mxu0 0
        %409 = vmatpush1.bf16.msra.mxu0 0
        %410 = vmatprep.subr.bf16.mxu0 0
        %411 = vmatpush1.bf16.msra.mxu0 0
        %412 = vmatprep.subr.bf16.mxu0 0
        %413 = vmatpush1.bf16.msra.mxu0 0
        %414 = vmatprep.subr.bf16.mxu0 0
        %415 = vmatpush1.bf16.msra.mxu0 0
        %416 = vmatprep.subr.bf16.mxu0 0
        %417 = vmatpush1.bf16.msra.mxu0 0
        %418 = vmatprep.subr.bf16.mxu0 0
        %419 = vmatpush1.bf16.msra.mxu0 0
        %420 = vmatprep.subr.bf16.mxu0 0
        %421 = vmatpush1.bf16.msra.mxu0 0
        %422 = vmatprep.subr.bf16.mxu0 0
        %423 = vmatpush1.bf16.msra.mxu0 0
        %424 = vmatprep.subr.bf16.mxu0 0
        %425 = vmatpush1.bf16.msra.mxu0 0
        %426 = vmatprep.subr.bf16.mxu0 0
        %427 = vmatpush1.bf16.msra.mxu0 0
        %428 = vmatprep.subr.bf16.mxu0 0
        %429 = vmatpush1.bf16.msra.mxu0 0
        %430 = vmatprep.subr.bf16.mxu0 0
        %431 = vmatpush1.bf16.msra.mxu0 0
        %432 = vmatprep.subr.bf16.mxu0 0
        %433 = vmatpush1.bf16.msra.mxu0 0
        %434 = vmatprep.mubr.bf16.mxu0 0
        %435 = vmatmul.mubr.bf16.gmra.mrb[0].mxu0 %v400
        %v436 = vpop.f32.mrb[0].mxu0
        %v437 = vadd.f32 %v384, %v436
        %v438 = vpop.f32.mrb[0].mxu0
        %v439 = vpop.f32.mrb[0].mxu0
        %v440 = vpop.f32.mrb[0].mxu0
        %441 = vdwg.mxu0
        %v442 = vmul.f32 %v437, 0.35355338
        %v443 = vpack.c.bf16 %v442, %v442
        %v444 = vpack.c.bf16 %v437, %v437
        %446 = vrot.lane.b32.xlu0 %v444, 96
        %v447 = vpop.permute.xlu0 %446
        %vm448 = vcmask 64512
        %v450 = vsel %vm448, %v443, 0
        %v453 = vsel %vm448, %v447, 0
        %455 = vmatprep.subr.bf16.mxu0 0
        %456 = vmatpush1.bf16.xpose.msra.mxu0 %v453
        %457 = vmatprep.subr.bf16.mxu0 0
        %458 = vmatpush1.bf16.xpose.msra.mxu0 0
        %459 = vmatprep.subr.bf16.mxu0 0
        %460 = vmatpush1.bf16.xpose.msra.mxu0 0
        %461 = vmatprep.subr.bf16.mxu0 0
        %462 = vmatpush1.bf16.xpose.msra.mxu0 0
        %463 = vmatprep.subr.bf16.mxu0 0
        %464 = vmatpush1.bf16.xpose.msra.mxu0 0
        %465 = vmatprep.subr.bf16.mxu0 0
        %466 = vmatpush1.bf16.xpose.msra.mxu0 0
        %467 = vmatprep.subr.bf16.mxu0 0
        %468 = vmatpush1.bf16.xpose.msra.mxu0 0
        %469 = vmatprep.subr.bf16.mxu0 0
        %470 = vmatpush1.bf16.xpose.msra.mxu0 0
        %471 = vmatprep.subr.bf16.mxu0 0
        %472 = vmatpush1.bf16.xpose.msra.mxu0 0
        %473 = vmatprep.subr.bf16.mxu0 0
        %474 = vmatpush1.bf16.xpose.msra.mxu0 0
        %475 = vmatprep.subr.bf16.mxu0 0
        %476 = vmatpush1.bf16.xpose.msra.mxu0 0
        %477 = vmatprep.subr.bf16.mxu0 0
        %478 = vmatpush1.bf16.xpose.msra.mxu0 0
        %479 = vmatprep.subr.bf16.mxu0 0
        %480 = vmatpush1.bf16.xpose.msra.mxu0 0
        %481 = vmatprep.subr.bf16.mxu0 0
        %482 = vmatpush1.bf16.xpose.msra.mxu0 0
        %483 = vmatprep.subr.bf16.mxu0 0
        %484 = vmatpush1.bf16.xpose.msra.mxu0 0
        %485 = vmatprep.subr.bf16.mxu0 0
        %486 = vmatpush1.bf16.xpose.msra.mxu0 0
        %487 = vmatprep.mubr.bf16.mxu0 0
        %488 = vmatmul.mubr.bf16.gmra.mrb[0].mxu0 %v450
        %v489 = vpop.f32.mrb[0].mxu0
        %v490 = vadd.f32 0.0, %v489
        %v491 = vpop.f32.mrb[0].mxu0
        %v492 = vpop.f32.mrb[0].mxu0
        %v493 = vpop.f32.mrb[0].mxu0
        %494 = vdwg.mxu0
        %v495 = vsel %vm448, %v490, -inf
        %496 = vmax.xlane.f32.xlu0 %v495
        %v497 = vpop.xlane.xlu0 %496
        %v498 = vsub.f32 %v490, %v497
        %v499 = vmul.f32 %v498, 1.442695
        %v500 = vpow.pop %v499
        %v501 = vsel %vm448, %v500, 0.0
        %502 = vadd.xlane.f32.xlu0 %v501
        %v503 = vpop.xlane.xlu0 %502
        %v504 = vrcp.pop %v503
        %v505 = vmul.f32 %v500, %v504
        %v506 = vpack.c.bf16 %v505, %v505
        %507 = vrot.lane.b32.xlu0 %v444, 64
        %v508 = vpop.permute.xlu0 %507
        %v510 = vsel %vm448, %v506, 0
        %vm512 = vcmask 1043456
        %v514 = vsel %vm512, %v508, 0
        %516 = vmatprep.subr.bf16.mxu0 0
        %517 = vmatpush1.bf16.msra.mxu0 %v514
        %518 = vmatprep.subr.bf16.mxu0 0
        %519 = vmatpush1.bf16.msra.mxu0 0
        %520 = vmatprep.subr.bf16.mxu0 0
        %521 = vmatpush1.bf16.msra.mxu0 0
        %522 = vmatprep.subr.bf16.mxu0 0
        %523 = vmatpush1.bf16.msra.mxu0 0
        %524 = vmatprep.subr.bf16.mxu0 0
        %525 = vmatpush1.bf16.msra.mxu0 0
        %526 = vmatprep.subr.bf16.mxu0 0
        %527 = vmatpush1.bf16.msra.mxu0 0
        %528 = vmatprep.subr.bf16.mxu0 0
        %529 = vmatpush1.bf16.msra.mxu0 0
        %530 = vmatprep.subr.bf16.mxu0 0
        %531 = vmatpush1.bf16.msra.mxu0 0
        %532 = vmatprep.subr.bf16.mxu0 0
        %533 = vmatpush1.bf16.msra.mxu0 0
        %534 = vmatprep.subr.bf16.mxu0 0
        %535 = vmatpush1.bf16.msra.mxu0 0
        %536 = vmatprep.subr.bf16.mxu0 0
        %537 = vmatpush1.bf16.msra.mxu0 0
        %538 = vmatprep.subr.bf16.mxu0 0
        %539 = vmatpush1.bf16.msra.mxu0 0
        %540 = vmatprep.subr.bf16.mxu0 0
        %541 = vmatpush1.bf16.msra.mxu0 0
        %542 = vmatprep.subr.bf16.mxu0 0
        %543 = vmatpush1.bf16.msra.mxu0 0
        %544 = vmatprep.subr.bf16.mxu0 0
        %545 = vmatpush1.bf16.msra.mxu0 0
        %546 = vmatprep.subr.bf16.mxu0 0
        %547 = vmatpush1.bf16.msra.mxu0 0
        %548 = vmatprep.mubr.bf16.mxu0 0
        %549 = vmatmul.mubr.bf16.gmra.mrb[0].mxu0 %v510
        %v550 = vpop.f32.mrb[0].mxu0
        %v551 = vadd.f32 0.0, %v550
        %v552 = vpop.f32.mrb[0].mxu0
        %v553 = vpop.f32.mrb[0].mxu0
        %v554 = vpop.f32.mrb[0].mxu0
        %555 = vdwg.mxu0
        %557 = vrot.lane.b32.xlu0 %v443, 120
        %v558 = vpop.permute.xlu0 %557
        %559 = vrot.lane.b32.xlu0 %v444, 88
        %v560 = vpop.permute.xlu0 %559
        %v562 = vsel %vm448, %v558, 0
        %v565 = vsel %vm448, %v560, 0
        %567 = vmatprep.subr.bf16.mxu0 0
        %568 = vmatpush1.bf16.xpose.msra.mxu0 %v565
        %569 = vmatprep.subr.bf16.mxu0 0
        %570 = vmatpush1.bf16.xpose.msra.mxu0 0
        %571 = vmatprep.subr.bf16.mxu0 0
        %572 = vmatpush1.bf16.xpose.msra.mxu0 0
        %573 = vmatprep.subr.bf16.mxu0 0
        %574 = vmatpush1.bf16.xpose.msra.mxu0 0
        %575 = vmatprep.subr.bf16.mxu0 0
        %576 = vmatpush1.bf16.xpose.msra.mxu0 0
        %577 = vmatprep.subr.bf16.mxu0 0
        %578 = vmatpush1.bf16.xpose.msra.mxu0 0
        %579 = vmatprep.subr.bf16.mxu0 0
        %580 = vmatpush1.bf16.xpose.msra.mxu0 0
        %581 = vmatprep.subr.bf16.mxu0 0
        %582 = vmatpush1.bf16.xpose.msra.mxu0 0
        %583 = vmatprep.subr.bf16.mxu0 0
        %584 = vmatpush1.bf16.xpose.msra.mxu0 0
        %585 = vmatprep.subr.bf16.mxu0 0
        %586 = vmatpush1.bf16.xpose.msra.mxu0 0
        %587 = vmatprep.subr.bf16.mxu0 0
        %588 = vmatpush1.bf16.xpose.msra.mxu0 0
        %589 = vmatprep.subr.bf16.mxu0 0
        %590 = vmatpush1.bf16.xpose.msra.mxu0 0
        %591 = vmatprep.subr.bf16.mxu0 0
        %592 = vmatpush1.bf16.xpose.msra.mxu0 0
        %593 = vmatprep.subr.bf16.mxu0 0
        %594 = vmatpush1.bf16.xpose.msra.mxu0 0
        %595 = vmatprep.subr.bf16.mxu0 0
        %596 = vmatpush1.bf16.xpose.msra.mxu0 0
        %597 = vmatprep.subr.bf16.mxu0 0
        %598 = vmatpush1.bf16.xpose.msra.mxu0 0
        %599 = vmatprep.mubr.bf16.mxu0 0
        %600 = vmatmul.mubr.bf16.gmra.mrb[0].mxu0 %v562
        %v601 = vpop.f32.mrb[0].mxu0
        %v602 = vadd.f32 0.0, %v601
        %v603 = vpop.f32.mrb[0].mxu0
        %v604 = vpop.f32.mrb[0].mxu0
        %v605 = vpop.f32.mrb[0].mxu0
        %606 = vdwg.mxu0
        %v607 = vsel %vm448, %v602, -inf
        %608 = vmax.xlane.f32.xlu0 %v607
        %v609 = vpop.xlane.xlu0 %608
        %v610 = vsub.f32 %v602, %v609
        %v611 = vmul.f32 %v610, 1.442695
        %v612 = vpow.pop %v611
        %v613 = vsel %vm448, %v612, 0.0
        %614 = vadd.xlane.f32.xlu0 %v613
        %v615 = vpop.xlane.xlu0 %614
        %v616 = vrcp.pop %v615
        %v617 = vmul.f32 %v612, %v616
        %v618 = vpack.c.bf16 %v617, %v617
        %619 = vrot.lane.b32.xlu0 %v444, 56
        %v620 = vpop.permute.xlu0 %619
        %v622 = vsel %vm448, %v618, 0
        %v625 = vsel %vm512, %v620, 0
        %627 = vmatprep.subr.bf16.mxu0 0
        %628 = vmatpush1.bf16.msra.mxu0 %v625
        %629 = vmatprep.subr.bf16.mxu0 0
        %630 = vmatpush1.bf16.msra.mxu0 0
        %631 = vmatprep.subr.bf16.mxu0 0
        %632 = vmatpush1.bf16.msra.mxu0 0
        %633 = vmatprep.subr.bf16.mxu0 0
        %634 = vmatpush1.bf16.msra.mxu0 0
        %635 = vmatprep.subr.bf16.mxu0 0
        %636 = vmatpush1.bf16.msra.mxu0 0
        %637 = vmatprep.subr.bf16.mxu0 0
        %638 = vmatpush1.bf16.msra.mxu0 0
        %639 = vmatprep.subr.bf16.mxu0 0
        %640 = vmatpush1.bf16.msra.mxu0 0
        %641 = vmatprep.subr.bf16.mxu0 0
        %642 = vmatpush1.bf16.msra.mxu0 0
        %643 = vmatprep.subr.bf16.mxu0 0
        %644 = vmatpush1.bf16.msra.mxu0 0
        %645 = vmatprep.subr.bf16.mxu0 0
        %646 = vmatpush1.bf16.msra.mxu0 0
        %647 = vmatprep.subr.bf16.mxu0 0
        %648 = vmatpush1.bf16.msra.mxu0 0
        %649 = vmatprep.subr.bf16.mxu0 0
        %650 = vmatpush1.bf16.msra.mxu0 0
        %651 = vmatprep.subr.bf16.mxu0 0
        %652 = vmatpush1.bf16.msra.mxu0 0
        %653 = vmatprep.subr.bf16.mxu0 0
        %654 = vmatpush1.bf16.msra.mxu0 0
        %655 = vmatprep.subr.bf16.mxu0 0
        %656 = vmatpush1.bf16.msra.mxu0 0
        %657 = vmatprep.subr.bf16.mxu0 0
        %658 = vmatpush1.bf16.msra.mxu0 0
        %659 = vmatprep.mubr.bf16.mxu0 0
        %660 = vmatmul.mubr.bf16.gmra.mrb[0].mxu0 %v622
        %v661 = vpop.f32.mrb[0].mxu0
        %v662 = vadd.f32 0.0, %v661
        %v663 = vpop.f32.mrb[0].mxu0
        %v664 = vpop.f32.mrb[0].mxu0
        %v665 = vpop.f32.mrb[0].mxu0
        %666 = vdwg.mxu0
        %667 = vrot.lane.b32.xlu0 %v443, 112
        %v668 = vpop.permute.xlu0 %667
        %669 = vrot.lane.b32.xlu0 %v444, 80
        %v670 = vpop.permute.xlu0 %669
        %v672 = vsel %vm448, %v668, 0
        %v675 = vsel %vm448, %v670, 0
        %677 = vmatprep.subr.bf16.mxu0 0
        %678 = vmatpush1.bf16.xpose.msra.mxu0 %v675
        %679 = vmatprep.subr.bf16.mxu0 0
        %680 = vmatpush1.bf16.xpose.msra.mxu0 0
        %681 = vmatprep.subr.bf16.mxu0 0
        %682 = vmatpush1.bf16.xpose.msra.mxu0 0
        %683 = vmatprep.subr.bf16.mxu0 0
        %684 = vmatpush1.bf16.xpose.msra.mxu0 0
        %685 = vmatprep.subr.bf16.mxu0 0
        %686 = vmatpush1.bf16.xpose.msra.mxu0 0
        %687 = vmatprep.subr.bf16.mxu0 0
        %688 = vmatpush1.bf16.xpose.msra.mxu0 0
        %689 = vmatprep.subr.bf16.mxu0 0
        %690 = vmatpush1.bf16.xpose.msra.mxu0 0
        %691 = vmatprep.subr.bf16.mxu0 0
        %692 = vmatpush1.bf16.xpose.msra.mxu0 0
        %693 = vmatprep.subr.bf16.mxu0 0
        %694 = vmatpush1.bf16.xpose.msra.mxu0 0
        %695 = vmatprep.subr.bf16.mxu0 0
        %696 = vmatpush1.bf16.xpose.msra.mxu0 0
        %697 = vmatprep.subr.bf16.mxu0 0
        %698 = vmatpush1.bf16.xpose.msra.mxu0 0
        %699 = vmatprep.subr.bf16.mxu0 0
        %700 = vmatpush1.bf16.xpose.msra.mxu0 0
        %701 = vmatprep.subr.bf16.mxu0 0
        %702 = vmatpush1.bf16.xpose.msra.mxu0 0
        %703 = vmatprep.subr.bf16.mxu0 0
        %704 = vmatpush1.bf16.xpose.msra.mxu0 0
        %705 = vmatprep.subr.bf16.mxu0 0
        %706 = vmatpush1.bf16.xpose.msra.mxu0 0
        %707 = vmatprep.subr.bf16.mxu0 0
        %708 = vmatpush1.bf16.xpose.msra.mxu0 0
        %709 = vmatprep.mubr.bf16.mxu0 0
        %710 = vmatmul.mubr.bf16.gmra.mrb[0].mxu0 %v672
        %v711 = vpop.f32.mrb[0].mxu0
        %v712 = vadd.f32 0.0, %v711
        %v713 = vpop.f32.mrb[0].mxu0
        %v714 = vpop.f32.mrb[0].mxu0
        %v715 = vpop.f32.mrb[0].mxu0
        %716 = vdwg.mxu0
        %v717 = vsel %vm448, %v712, -inf
        %718 = vmax.xlane.f32.xlu0 %v717
        %v719 = vpop.xlane.xlu0 %718
        %v720 = vsub.f32 %v712, %v719
        %v721 = vmul.f32 %v720, 1.442695
        %v722 = vpow.pop %v721
        %v723 = vsel %vm448, %v722, 0.0
        %724 = vadd.xlane.f32.xlu0 %v723
        %v725 = vpop.xlane.xlu0 %724
        %v726 = vrcp.pop %v725
        %v727 = vmul.f32 %v722, %v726
        %v728 = vpack.c.bf16 %v727, %v727
        %729 = vrot.lane.b32.xlu0 %v444, 48
        %v730 = vpop.permute.xlu0 %729
        %v732 = vsel %vm448, %v728, 0
        %v735 = vsel %vm512, %v730, 0
        %737 = vmatprep.subr.bf16.mxu0 0
        %738 = vmatpush1.bf16.msra.mxu0 %v735
        %739 = vmatprep.subr.bf16.mxu0 0
        %740 = vmatpush1.bf16.msra.mxu0 0
        %741 = vmatprep.subr.bf16.mxu0 0
        %742 = vmatpush1.bf16.msra.mxu0 0
        %743 = vmatprep.subr.bf16.mxu0 0
        %744 = vmatpush1.bf16.msra.mxu0 0
        %745 = vmatprep.subr.bf16.mxu0 0
        %746 = vmatpush1.bf16.msra.mxu0 0
        %747 = vmatprep.subr.bf16.mxu0 0
        %748 = vmatpush1.bf16.msra.mxu0 0
        %749 = vmatprep.subr.bf16.mxu0 0
        %750 = vmatpush1.bf16.msra.mxu0 0
        %751 = vmatprep.subr.bf16.mxu0 0
        %752 = vmatpush1.bf16.msra.mxu0 0
        %753 = vmatprep.subr.bf16.mxu0 0
        %754 = vmatpush1.bf16.msra.mxu0 0
        %755 = vmatprep.subr.bf16.mxu0 0
        %756 = vmatpush1.bf16.msra.mxu0 0
        %757 = vmatprep.subr.bf16.mxu0 0
        %758 = vmatpush1.bf16.msra.mxu0 0
        %759 = vmatprep.subr.bf16.mxu0 0
        %760 = vmatpush1.bf16.msra.mxu0 0
        %761 = vmatprep.subr.bf16.mxu0 0
        %762 = vmatpush1.bf16.msra.mxu0 0
        %763 = vmatprep.subr.bf16.mxu0 0
        %764 = vmatpush1.bf16.msra.mxu0 0
        %765 = vmatprep.subr.bf16.mxu0 0
        %766 = vmatpush1.bf16.msra.mxu0 0
        %767 = vmatprep.subr.bf16.mxu0 0
        %768 = vmatpush1.bf16.msra.mxu0 0
        %769 = vmatprep.mubr.bf16.mxu0 0
        %770 = vmatmul.mubr.bf16.gmra.mrb[0].mxu0 %v732
        %v771 = vpop.f32.mrb[0].mxu0
        %v772 = vadd.f32 0.0, %v771
        %v773 = vpop.f32.mrb[0].mxu0
        %v774 = vpop.f32.mrb[0].mxu0
        %v775 = vpop.f32.mrb[0].mxu0
        %776 = vdwg.mxu0
        %777 = vrot.lane.b32.xlu0 %v443, 104
        %v778 = vpop.permute.xlu0 %777
        %779 = vrot.lane.b32.xlu0 %v444, 72
        %v780 = vpop.permute.xlu0 %779
        %v782 = vsel %vm448, %v778, 0
        %v785 = vsel %vm448, %v780, 0
        %787 = vmatprep.subr.bf16.mxu0 0
        %788 = vmatpush1.bf16.xpose.msra.mxu0 %v785
        %789 = vmatprep.subr.bf16.mxu0 0
        %790 = vmatpush1.bf16.xpose.msra.mxu0 0
        %791 = vmatprep.subr.bf16.mxu0 0
        %792 = vmatpush1.bf16.xpose.msra.mxu0 0
        %793 = vmatprep.subr.bf16.mxu0 0
        %794 = vmatpush1.bf16.xpose.msra.mxu0 0
        %795 = vmatprep.subr.bf16.mxu0 0
        %796 = vmatpush1.bf16.xpose.msra.mxu0 0
        %797 = vmatprep.subr.bf16.mxu0 0
        %798 = vmatpush1.bf16.xpose.msra.mxu0 0
        %799 = vmatprep.subr.bf16.mxu0 0
        %800 = vmatpush1.bf16.xpose.msra.mxu0 0
        %801 = vmatprep.subr.bf16.mxu0 0
        %802 = vmatpush1.bf16.xpose.msra.mxu0 0
        %803 = vmatprep.subr.bf16.mxu0 0
        %804 = vmatpush1.bf16.xpose.msra.mxu0 0
        %805 = vmatprep.subr.bf16.mxu0 0
        %806 = vmatpush1.bf16.xpose.msra.mxu0 0
        %807 = vmatprep.subr.bf16.mxu0 0
        %808 = vmatpush1.bf16.xpose.msra.mxu0 0
        %809 = vmatprep.subr.bf16.mxu0 0
        %810 = vmatpush1.bf16.xpose.msra.mxu0 0
        %811 = vmatprep.subr.bf16.mxu0 0
        %812 = vmatpush1.bf16.xpose.msra.mxu0 0
        %813 = vmatprep.subr.bf16.mxu0 0
        %814 = vmatpush1.bf16.xpose.msra.mxu0 0
        %815 = vmatprep.subr.bf16.mxu0 0
        %816 = vmatpush1.bf16.xpose.msra.mxu0 0
        %817 = vmatprep.subr.bf16.mxu0 0
        %818 = vmatpush1.bf16.xpose.msra.mxu0 0
        %819 = vmatprep.mubr.bf16.mxu0 0
        %820 = vmatmul.mubr.bf16.gmra.mrb[0].mxu0 %v782
        %v821 = vpop.f32.mrb[0].mxu0
        %v822 = vadd.f32 0.0, %v821
        %v823 = vpop.f32.mrb[0].mxu0
        %v824 = vpop.f32.mrb[0].mxu0
        %v825 = vpop.f32.mrb[0].mxu0
        %826 = vdwg.mxu0
        %v827 = vsel %vm448, %v822, -inf
        %828 = vmax.xlane.f32.xlu0 %v827
        %v829 = vpop.xlane.xlu0 %828
        %v830 = vsub.f32 %v822, %v829
        %v831 = vmul.f32 %v830, 1.442695
        %v832 = vpow.pop %v831
        %v833 = vsel %vm448, %v832, 0.0
        %834 = vadd.xlane.f32.xlu0 %v833
        %v835 = vpop.xlane.xlu0 %834
        %v836 = vrcp.pop %v835
        %v837 = vmul.f32 %v832, %v836
        %v838 = vpack.c.bf16 %v837, %v837
        %839 = vrot.lane.b32.xlu0 %v444, 40
        %v840 = vpop.permute.xlu0 %839
        %v842 = vsel %vm448, %v838, 0
        %v845 = vsel %vm512, %v840, 0
        %847 = vmatprep.subr.bf16.mxu0 0
        %848 = vmatpush1.bf16.msra.mxu0 %v845
        %849 = vmatprep.subr.bf16.mxu0 0
        %850 = vmatpush1.bf16.msra.mxu0 0
        %851 = vmatprep.subr.bf16.mxu0 0
        %852 = vmatpush1.bf16.msra.mxu0 0
        %853 = vmatprep.subr.bf16.mxu0 0
        %854 = vmatpush1.bf16.msra.mxu0 0
        %855 = vmatprep.subr.bf16.mxu0 0
        %856 = vmatpush1.bf16.msra.mxu0 0
        %857 = vmatprep.subr.bf16.mxu0 0
        %858 = vmatpush1.bf16.msra.mxu0 0
        %859 = vmatprep.subr.bf16.mxu0 0
        %860 = vmatpush1.bf16.msra.mxu0 0
        %861 = vmatprep.subr.bf16.mxu0 0
        %862 = vmatpush1.bf16.msra.mxu0 0
        %863 = vmatprep.subr.bf16.mxu0 0
        %864 = vmatpush1.bf16.msra.mxu0 0
        %865 = vmatprep.subr.bf16.mxu0 0
        %866 = vmatpush1.bf16.msra.mxu0 0
        %867 = vmatprep.subr.bf16.mxu0 0
        %868 = vmatpush1.bf16.msra.mxu0 0
        %869 = vmatprep.subr.bf16.mxu0 0
        %870 = vmatpush1.bf16.msra.mxu0 0
        %871 = vmatprep.subr.bf16.mxu0 0
        %872 = vmatpush1.bf16.msra.mxu0 0
        %873 = vmatprep.subr.bf16.mxu0 0
        %874 = vmatpush1.bf16.msra.mxu0 0
        %875 = vmatprep.subr.bf16.mxu0 0
        %876 = vmatpush1.bf16.msra.mxu0 0
        %877 = vmatprep.subr.bf16.mxu0 0
        %878 = vmatpush1.bf16.msra.mxu0 0
        %879 = vmatprep.mubr.bf16.mxu0 0
        %880 = vmatmul.mubr.bf16.gmra.mrb[0].mxu0 %v842
        %v881 = vpop.f32.mrb[0].mxu0
        %v882 = vadd.f32 0.0, %v881
        %v883 = vpop.f32.mrb[0].mxu0
        %v884 = vpop.f32.mrb[0].mxu0
        %v885 = vpop.f32.mrb[0].mxu0
        %886 = vdwg.mxu0
        %888 = vrot.lane.b32.xlu0 %v662, 8
        %v889 = vpop.permute.xlu0 %888
        %892 = vrot.lane.b32.xlu0 %v772, 16
        %v893 = vpop.permute.xlu0 %892
        %896 = vrot.lane.b32.xlu0 %v882, 24
        %v897 = vpop.permute.xlu0 %896
        %v899 = vsel %vm448, %v551, %v889
        %vm900 = vcmask 130048
        %v901 = vsel %vm900, %v899, %v893
        %vm902 = vcmask 195584
        %v903 = vsel %vm902, %v901, %v897
        %v904 = vpack.c.bf16 %v903, %v903
        %v905 = vld [vmem:[#allocation8] sm:$0xf]
        %v906 = vld [vmem:[#allocation8 + $0x4] sm:$0xf]
        %v907 = vld [vmem:[#allocation8 + $0x8] sm:$0xf]
        %v908 = vld [vmem:[#allocation8 + $0xc] sm:$0xf]
        %v909 = vld [vmem:[#allocation10] sm:$0x1]
        %v911 = vlaneseq
        %v912 = vshrl.u32 %v911, 7
        %v913 = vsub.s32 0, %v912
        %v914 = vrot.slane %v909, %v913
        %v920 = vunpack.c.l.b16 %v905
        %v921 = vunpack.c.l.b16 %v906
        %v922 = vunpack.c.l.b16 %v907
        %v923 = vunpack.c.l.b16 %v908
        %v924 = vpack.c.b16 %v921, %v920
        %v925 = vpack.c.b16 %v923, %v922
        %v929 = vsel %vm398, %v904, 0
        %931 = vmatprep.subr.bf16.mxu0 0
        %932 = vmatpush1.bf16.msra.mxu0 %v924
        %933 = vmatprep.subr.bf16.mxu0 0
        %934 = vmatpush1.bf16.msra.mxu0 %v925
        %935 = vmatprep.subr.bf16.mxu0 0
        %936 = vmatpush1.bf16.msra.mxu0 0
        %937 = vmatprep.subr.bf16.mxu0 0
        %938 = vmatpush1.bf16.msra.mxu0 0
        %939 = vmatprep.subr.bf16.mxu0 0
        %940 = vmatpush1.bf16.msra.mxu0 0
        %941 = vmatprep.subr.bf16.mxu0 0
        %942 = vmatpush1.bf16.msra.mxu0 0
        %943 = vmatprep.subr.bf16.mxu0 0
        %944 = vmatpush1.bf16.msra.mxu0 0
        %945 = vmatprep.subr.bf16.mxu0 0
        %946 = vmatpush1.bf16.msra.mxu0 0
        %947 = vmatprep.subr.bf16.mxu0 0
        %948 = vmatpush1.bf16.msra.mxu0 0
        %949 = vmatprep.subr.bf16.mxu0 0
        %950 = vmatpush1.bf16.msra.mxu0 0
        %951 = vmatprep.subr.bf16.mxu0 0
        %952 = vmatpush1.bf16.msra.mxu0 0
        %953 = vmatprep.subr.bf16.mxu0 0
        %954 = vmatpush1.bf16.msra.mxu0 0
        %955 = vmatprep.subr.bf16.mxu0 0
        %956 = vmatpush1.bf16.msra.mxu0 0
        %957 = vmatprep.subr.bf16.mxu0 0
        %958 = vmatpush1.bf16.msra.mxu0 0
        %959 = vmatprep.subr.bf16.mxu0 0
        %960 = vmatpush1.bf16.msra.mxu0 0
        %961 = vmatprep.subr.bf16.mxu0 0
        %962 = vmatpush1.bf16.msra.mxu0 0
        %963 = vmatprep.mubr.bf16.mxu0 0
        %964 = vmatmul.mubr.bf16.gmra.mrb[0].mxu0 %v929
        %v965 = vpop.f32.mrb[0].mxu0
        %v966 = vadd.f32 %v914, %v965
        %v967 = vpop.f32.mrb[0].mxu0
        %v968 = vpop.f32.mrb[0].mxu0
        %v969 = vpop.f32.mrb[0].mxu0
        %970 = vdwg.mxu0
        %v971 = vunpack.c.l.bf16 %v374
        %v972 = vadd.f32 %v966, %v971
        %v973 = vld [vmem:[#allocation11] sm:$0x1]
        %v974 = vld [vmem:[#allocation13] sm:$0x1]
        %v975 = vsel %vm398, %v972, 0.0
        %976 = vadd.xlane.f32.xlu0 %v975
        %v977 = vpop.xlane.xlu0 %976
        %v978 = vrcp.pop 32.0
        %v979 = vmul.f32 %v977, %v978
        %v980 = vsub.f32 %v972, %v979
        %v981 = vmul.f32 %v980, %v980
        %v982 = vsel %vm398, %v981, 0.0
        %983 = vadd.xlane.f32.xlu0 %v982
        %v984 = vpop.xlane.xlu0 %983
        %v985 = vmul.f32 %v984, %v978
        %v986 = vadd.f32 %v985, 1e-12
        %v987 = vrsqrt.pop %v986
        %v988 = vmul.f32 %v980, %v987
        %v990 = vlaneseq
        %v991 = vshrl.u32 %v990, 7
        %v992 = vsub.s32 0, %v991
        %v993 = vrot.slane %v973, %v992
        %v995 = vmul.f32 %v988, %v993
        %v997 = vlaneseq
        %v998 = vshrl.u32 %v997, 7
        %v999 = vsub.s32 0, %v998
        %v1000 = vrot.slane %v974, %v999
        %v1002 = vadd.f32 %v995, %v1000
        %v1003 = vpack.c.bf16 %v1002, %v1002
        %vm1004 = vcmask 257024
        %1005 = vst.msk [vmem:[%s372] sm:$0xf] %vm1004, %v1003
        %s1006 = sand.u32 %s187, 1
        %s1007 = scalar_lea.sflag [#allocation4], %s1006
        %s1008 = sand.u32 %s187, 1
        %s1009 = smul.addr %s1008, 4
        %s1010 = scalar_lea.vmem [#allocation14], %s1009
        // Predicated region
        $region77: #{sft_forward.8} parent=47 // pred_check
          %p1011 = pneg %p197
        $region78: #{sft_forward.8} parent=47 // pred_check_branch
          %1013 = sbr.rel (%p1011) target = $region80
        $region79: #{sft_forward.8} parent=47 // pred_region
          %s1015 = ssub.s32 64, 64
          %1016 = vsyncadd %s1007, %s1015
          %s1017 = smul.addr %s27, 64
          %s1018 = scalar_lea.hbm %s7, %s1017
          %s1020 = sshll.u32 %s1010, 4
          %s1021 = int_to_ptr.vmem [resolvable:$true] %s1020
          %1023 = dma.vmem_to_hbm [thread:$0]  %s1021, 64, %s1018, %s1007
        $region80: #{sft_forward.8} parent=47 // pred_fallthru
          _
      $region48: #{sft_forward.8} parent=5 // pred_fallthru
        _
      %p1024 = scmp.le.s32.totalorder 2, %s22
      // Predicated region
      $region81: #{sft_forward.8} parent=5 // pred_check
        %p1025 = pneg %p1024
      $region82: #{sft_forward.8} parent=5 // pred_check_branch
        %1027 = sbr.rel (%p1025) target = $region84
      $region83: #{sft_forward.8} parent=5 // pred_region
        %s1028 = ssub.s32 %s22, 2
        // Predicated region
        $region85: #{sft_forward.8} parent=83 // pred_check
          %p1029 = pneg %p203
        $region86: #{sft_forward.8} parent=83 // pred_check_branch
          %1031 = sbr.rel (%p1029) target = $region88
        $region87: #{sft_forward.8} parent=83 // pred_region
          %s1032 = sand.u32 %s188, 1
          %s1033 = scalar_lea.sflag [#allocation4], %s1032
          %s1034 = sand.u32 %s188, 1
          %s1035 = smul.addr %s1034, 4
          %s1036 = scalar_lea.vmem [#allocation14], %s1035
          %1037 = dma.done %s1033, 64
        $region88: #{sft_forward.8} parent=83 // pred_fallthru
          _
      $region84: #{sft_forward.8} parent=5 // pred_fallthru
        _
    $region6: #{sft_forward.8} parent=1 // loop_footer
      %s26 = sadd.s32 1, %s22
    $region7: #{sft_forward.8} parent=1 // loop_footer_branch
      %21 = sbr.rel target = $region3
    $region8: #{sft_forward.8} parent=1 // loop_exit
      _
    %1038 = vsyncpa [#allocation3], 1
    %s1039 = scalar_lea.sflag [#allocation3], 1
    %1040 = vsyncpa %s1039, 1
    %1041 = vsyncpa [#allocation6], 1
    %1042 = vsyncpa [#allocation9], 1
    %1043 = vsyncpa [#allocation12], 1
    %1044 = vsyncpa [#allocation4], 1
    %s1045 = scalar_lea.sflag [#allocation4], 1
    %1046 = vsyncpa %s1045, 1

// kernel: sft_forward.13
$region0: #{sft_forward.13}
  #allocation0 [shape = 'u32[]', space=smem, size = 0x4, offset = 0x4, fixed_abs, tag = 'smem constant byte address 0x4 - core index']
  #allocation1 [shape = 'u32[144,128]{1,0:T(1,128)}', space=vmem, size = 0x12000, scoped, tag = 'internal scratch']
  %s0 = inlined_call_operand.hbm [shape: bf16[16,32], index: 0, kind: input, shape index: {}]
  %s1 = inlined_call_operand.hbm [shape: bf16[32,64], index: 1, kind: input, shape index: {}]
  %s2 = inlined_call_operand.hbm [shape: f32[1,64], index: 2, kind: input, shape index: {}]
  %s3 = inlined_call_operand.hbm [shape: f32[16,1], index: 3, kind: input, shape index: {}]
  %s4 = inlined_call_operand.hbm [shape: f32[16,1], index: 4, kind: input, shape index: {}]
  %s5 = inlined_call_operand.hbm [shape: f32[16,64], index: 5, kind: output, shape index: {}]
  %s6 = sld [smem:[#allocation0]]
  $region50: #{sft_forward.13} parent=0
    _
  %s8 = ssub.s32 1, %s6
  %s9 = scalar_select 0, %s8, %s6
  $region1: #{sft_forward.13} parent=0
    #allocation2 [shape = 'u8[4096]{0}', space=vmem, size = 0x1000, scoped, tag = 'input window, operand 0, single buffered']
    #allocation3 [shape = 's32[1]{0}', space=sflag, size = 0x4, scoped, tag = 'scoped memory for sft_forward.13']
    #allocation4 [shape = 's32[1]{0}', space=sflag, size = 0x4, scoped, tag = 'scoped memory for sft_forward.13']
    #allocation5 [shape = 'u8[8192]{0}', space=vmem, size = 0x2000, scoped, tag = 'input window, operand 1, single buffered']
    #allocation6 [shape = 's32[1]{0}', space=sflag, size = 0x4, scoped, tag = 'scoped memory for sft_forward.13']
    #allocation7 [shape = 'u8[512]{0}', space=vmem, size = 0x400, scoped, tag = 'input window, operand 2, single buffered']
    #allocation8 [shape = 'u8[8192]{0}', space=vmem, size = 0x2000, scoped, tag = 'input window, operand 3, single buffered']
    #allocation9 [shape = 's32[1]{0}', space=sflag, size = 0x4, scoped, tag = 'scoped memory for sft_forward.13']
    #allocation10 [shape = 'u8[8192]{0}', space=vmem, size = 0x2000, scoped, tag = 'input window, operand 4, single buffered']
    #allocation11 [shape = 'u8[8192]{0}', space=vmem, size = 0x2000, scoped, tag = 'output window, operand 0, single buffered']
    %10 = vsyncpa [#allocation3], 0
    %11 = vsyncpa [#allocation6], 0
    %12 = vsyncpa [#allocation9], 0
    %13 = vsyncpa [#allocation4], 0
    // Predicated region
    $region2: #{sft_forward.13} parent=1 // pred_check
      _
    $region3: #{sft_forward.13} parent=1 // pred_check_branch
      %15 = sbr.rel (0) target = $region5
    $region4: #{sft_forward.13} parent=1 // pred_region
      %s17 = ssub.s32 128, 128
      %18 = vsyncadd [#allocation3], %s17
      %s19 = sshll.u32 [#allocation2], 4
      %s20 = int_to_ptr.vmem [resolvable:$true] %s19
      %25 = dma.hbm_to_vmem [thread:$0]  %s0, 128, %s20, [#allocation3], 64, 64, 4
    $region5: #{sft_forward.13} parent=1 // pred_fallthru
      _
    // Predicated region
    $region6: #{sft_forward.13} parent=1 // pred_check
      _
    $region7: #{sft_forward.13} parent=1 // pred_check_branch
      %27 = sbr.rel (0) target = $region9
    $region8: #{sft_forward.13} parent=1 // pred_region
      %s29 = ssub.s32 256, 256
      %30 = vsyncadd [#allocation6], %s29
      %s31 = sshll.u32 [#allocation5], 4
      %s32 = int_to_ptr.vmem [resolvable:$true] %s31
      %37 = dma.hbm_to_vmem [thread:$0]  %s1, 256, %s32, [#allocation6], 64, 64, 4
    $region9: #{sft_forward.13} parent=1 // pred_fallthru
      _
    // Predicated region
    $region10: #{sft_forward.13} parent=1 // pred_check
      _
    $region11: #{sft_forward.13} parent=1 // pred_check_branch
      %39 = sbr.rel (0) target = $region13
    $region12: #{sft_forward.13} parent=1 // pred_region
      %s41 = ssub.s32 16, 16
      %42 = vsyncadd [#allocation6], %s41
      %s44 = sshll.u32 [#allocation7], 4
      %s45 = int_to_ptr.vmem [resolvable:$true] %s44
      %47 = dma.hbm_to_vmem [thread:$0]  %s2, 16, %s45, [#allocation6]
    $region13: #{sft_forward.13} parent=1 // pred_fallthru
      _
    // Predicated region
    $region14: #{sft_forward.13} parent=1 // pred_check
      _
    $region15: #{sft_forward.13} parent=1 // pred_check_branch
      %49 = sbr.rel (0) target = $region17
    $region16: #{sft_forward.13} parent=1 // pred_region
      %s51 = ssub.s32 256, 256
      %52 = vsyncadd [#allocation9], %s51
      %s53 = sshll.u32 [#allocation8], 4
      %s54 = int_to_ptr.vmem [resolvable:$true] %s53
      %59 = dma.hbm_to_vmem [thread:$0]  %s3, 256, %s54, [#allocation9], 128, 128, 8
    $region17: #{sft_forward.13} parent=1 // pred_fallthru
      _
    // Predicated region
    $region18: #{sft_forward.13} parent=1 // pred_check
      _
    $region19: #{sft_forward.13} parent=1 // pred_check_branch
      %61 = sbr.rel (0) target = $region21
    $region20: #{sft_forward.13} parent=1 // pred_region
      %s63 = ssub.s32 256, 256
      %64 = vsyncadd [#allocation9], %s63
      %s65 = sshll.u32 [#allocation10], 4
      %s66 = int_to_ptr.vmem [resolvable:$true] %s65
      %71 = dma.hbm_to_vmem [thread:$0]  %s4, 256, %s66, [#allocation9], 128, 128, 8
    $region21: #{sft_forward.13} parent=1 // pred_fallthru
      _
    // Predicated region
    $region22: #{sft_forward.13} parent=1 // pred_check
      _
    $region23: #{sft_forward.13} parent=1 // pred_check_branch
      %73 = sbr.rel (0) target = $region25
    $region24: #{sft_forward.13} parent=1 // pred_region
      %74 = dma.done [#allocation3], 128
    $region25: #{sft_forward.13} parent=1 // pred_fallthru
      _
    // Predicated region
    $region26: #{sft_forward.13} parent=1 // pred_check
      _
    $region27: #{sft_forward.13} parent=1 // pred_check_branch
      %76 = sbr.rel (0) target = $region29
    $region28: #{sft_forward.13} parent=1 // pred_region
      %77 = dma.done [#allocation6], 256
    $region29: #{sft_forward.13} parent=1 // pred_fallthru
      _
    // Predicated region
    $region30: #{sft_forward.13} parent=1 // pred_check
      _
    $region31: #{sft_forward.13} parent=1 // pred_check_branch
      %79 = sbr.rel (0) target = $region33
    $region32: #{sft_forward.13} parent=1 // pred_region
      %80 = dma.done [#allocation6], 16
    $region33: #{sft_forward.13} parent=1 // pred_fallthru
      _
    // Predicated region
    $region34: #{sft_forward.13} parent=1 // pred_check
      _
    $region35: #{sft_forward.13} parent=1 // pred_check_branch
      %82 = sbr.rel (0) target = $region37
    $region36: #{sft_forward.13} parent=1 // pred_region
      %83 = dma.done [#allocation9], 256
    $region37: #{sft_forward.13} parent=1 // pred_fallthru
      _
    // Predicated region
    $region38: #{sft_forward.13} parent=1 // pred_check
      _
    $region39: #{sft_forward.13} parent=1 // pred_check_branch
      %85 = sbr.rel (0) target = $region41
    $region40: #{sft_forward.13} parent=1 // pred_region
      %86 = dma.done [#allocation9], 256
    $region41: #{sft_forward.13} parent=1 // pred_fallthru
      _
    %v88 = vld [vmem:[#allocation2] sm:$0xf]
    %v89 = vld [vmem:[#allocation2 + $0x4] sm:$0xf]
    %v90 = vld [vmem:[#allocation5] sm:$0xf]
    %v91 = vld [vmem:[#allocation5 + $0x4] sm:$0xf]
    %v92 = vld [vmem:[#allocation5 + $0x8] sm:$0xf]
    %v93 = vld [vmem:[#allocation5 + $0xc] sm:$0xf]
    %v94 = vld [vmem:[#allocation7] sm:$0x1]
    %v96 = vlaneseq
    %v97 = vshrl.u32 %v96, 7
    %v98 = vsub.s32 0, %v97
    %v99 = vrot.slane %v94, %v98
    %v103 = vunpack.c.l.b16 %v88
    %v104 = vunpack.c.l.b16 %v89
    %v105 = vpack.c.b16 %v104, %v103
    %v110 = vunpack.c.l.b16 %v90
    %v111 = vunpack.c.l.b16 %v91
    %v112 = vunpack.c.l.b16 %v92
    %v113 = vunpack.c.l.b16 %v93
    %v114 = vpack.c.b16 %v111, %v110
    %v115 = vpack.c.b16 %v113, %v112
    %vm118 = vcmask 261120
    %v120 = vsel %vm118, %v105, 0
    %122 = vmatprep.subr.bf16.mxu0 0
    %123 = vmatpush1.bf16.msra.mxu0 %v114
    %124 = vmatprep.subr.bf16.mxu0 0
    %125 = vmatpush1.bf16.msra.mxu0 %v115
    %126 = vmatprep.subr.bf16.mxu0 0
    %127 = vmatpush1.bf16.msra.mxu0 0
    %128 = vmatprep.subr.bf16.mxu0 0
    %129 = vmatpush1.bf16.msra.mxu0 0
    %130 = vmatprep.subr.bf16.mxu0 0
    %131 = vmatpush1.bf16.msra.mxu0 0
    %132 = vmatprep.subr.bf16.mxu0 0
    %133 = vmatpush1.bf16.msra.mxu0 0
    %134 = vmatprep.subr.bf16.mxu0 0
    %135 = vmatpush1.bf16.msra.mxu0 0
    %136 = vmatprep.subr.bf16.mxu0 0
    %137 = vmatpush1.bf16.msra.mxu0 0
    %138 = vmatprep.subr.bf16.mxu0 0
    %139 = vmatpush1.bf16.msra.mxu0 0
    %140 = vmatprep.subr.bf16.mxu0 0
    %141 = vmatpush1.bf16.msra.mxu0 0
    %142 = vmatprep.subr.bf16.mxu0 0
    %143 = vmatpush1.bf16.msra.mxu0 0
    %144 = vmatprep.subr.bf16.mxu0 0
    %145 = vmatpush1.bf16.msra.mxu0 0
    %146 = vmatprep.subr.bf16.mxu0 0
    %147 = vmatpush1.bf16.msra.mxu0 0
    %148 = vmatprep.subr.bf16.mxu0 0
    %149 = vmatpush1.bf16.msra.mxu0 0
    %150 = vmatprep.subr.bf16.mxu0 0
    %151 = vmatpush1.bf16.msra.mxu0 0
    %152 = vmatprep.subr.bf16.mxu0 0
    %153 = vmatpush1.bf16.msra.mxu0 0
    %154 = vmatprep.mubr.bf16.mxu0 0
    %155 = vmatmul.mubr.bf16.gmra.mrb[0].mxu0 %v120
    %v156 = vpop.f32.mrb[0].mxu0
    %v157 = vadd.f32 %v99, %v156
    %v158 = vpop.f32.mrb[0].mxu0
    %v159 = vpop.f32.mrb[0].mxu0
    %v160 = vadd.f32 %v99, %v159
    %v161 = vpop.f32.mrb[0].mxu0
    %162 = vdwg.mxu0
    %v163 = vld [vmem:[#allocation8] sm:$0xff]
    %v164 = vld [vmem:[#allocation8 + $0x8] sm:$0xff]
    %166 = vset.pattern.permute.xlu0 0
    %167 = vperm.xlu0 %166, %v163
    %v168 = vpop.permute.xlu0 %167
    %171 = vset.pattern.permute.xlu0 0
    %172 = vperm.xlu0 %171, %v164
    %v173 = vpop.permute.xlu0 %172
    %v175 = vsub.f32 %v157, %v168
    %v176 = vsub.f32 %v160, %v173
    %v177 = vmul.f32 %v175, 1.442695
    %v178 = vpow.pop %v177
    %v179 = vmul.f32 %v176, 1.442695
    %v180 = vpow.pop %v179
    %v181 = vld [vmem:[#allocation10] sm:$0xff]
    %v182 = vld [vmem:[#allocation10 + $0x8] sm:$0xff]
    %184 = vset.pattern.permute.xlu0 0
    %185 = vperm.xlu0 %184, %v181
    %v186 = vpop.permute.xlu0 %185
    %189 = vset.pattern.permute.xlu0 0
    %190 = vperm.xlu0 %189, %v182
    %v191 = vpop.permute.xlu0 %190
    %v193 = vrcp.pop %v186
    %v194 = vmul.f32 %v178, %v193
    %v195 = vrcp.pop %v191
    %v196 = vmul.f32 %v180, %v195
    %vm197 = vcmask 523264
    %198 = vst.msk [vmem:[#allocation11] sm:$0xff] %vm197, %v194
    %199 = vst.msk [vmem:[#allocation11 + $0x8] sm:$0xff] %vm197, %v196
    // Predicated region
    $region42: #{sft_forward.13} parent=1 // pred_check
      _
    $region43: #{sft_forward.13} parent=1 // pred_check_branch
      %201 = sbr.rel (0) target = $region45
    $region44: #{sft_forward.13} parent=1 // pred_region
      %s203 = ssub.s32 256, 256
      %204 = vsyncadd [#allocation4], %s203
      %s205 = sshll.u32 [#allocation11], 4
      %s206 = int_to_ptr.vmem [resolvable:$true] %s205
      %211 = dma.vmem_to_hbm [thread:$0]  %s206, 256, %s5, [#allocation4], 128, 128, 8
    $region45: #{sft_forward.13} parent=1 // pred_fallthru
      _
    // Predicated region
    $region46: #{sft_forward.13} parent=1 // pred_check
      _
    $region47: #{sft_forward.13} parent=1 // pred_check_branch
      %213 = sbr.rel (0) target = $region49
    $region48: #{sft_forward.13} parent=1 // pred_region
      %214 = dma.done [#allocation4], 256
    $region49: #{sft_forward.13} parent=1 // pred_fallthru
      _
    %215 = vsyncpa [#allocation3], 1
    %216 = vsyncpa [#allocation6], 1
    %217 = vsyncpa [#allocation9], 1
    %218 = vsyncpa [#allocation4], 1

</llo_original>
